<compile_context>
chip_gen: v7x
topology: tpu7x:2x2x1
jax: 0.10.0
libtpu: 0.0.40
codegen_flags: <defaults>
</compile_context>

<pallas_src>
import functools

import numpy as np
import jax
import jax.numpy as jnp
from jax import lax
from jax.experimental import pallas as pl
from jax.experimental.pallas import tpu as pltpu

N_FEATS = 4            # n_feats (channels)
KSIZE = 3              # conv kernel size ("SAME" padding, stride 1)
PAD = KSIZE // 2
H = W = 16
BATCH = 2

C_PAD = 8              # channels zero-padded to one full f32 sublane group
KK = KSIZE * KSIZE
assert N_FEATS <= C_PAD


def _resblock_kernel(x_ref, w1_ref, b1_ref, w2_ref, b2_ref, w3_ref, b3_ref,
                     a1_ref, a2_ref, a3_ref, mask_ref, scales_ref, out_ref,
                     *, height, width):
    """Fused ResBlock on a (C_PAD, N*H*W) channels-on-sublanes slab.

    Each 3x3 SAME conv = sum over 9 taps of
        W_tap (C_PAD x C_PAD) @ (mask_tap * lane_roll_tap(x)) (C_PAD x L),
    accumulated directly — no im2col slab is ever materialized.
    """
    cpad, total = x_ref.shape

    # --- scalar scales: SMEM reads issued up-front ---------------------------
    s1 = scales_ref[0]
    s2 = scales_ref[1]
    s3 = scales_ref[2]
    s4 = scales_ref[3]
    s5 = scales_ref[4]

    b1 = b1_ref[...]; b2 = b2_ref[...]; b3 = b3_ref[...]
    a1 = a1_ref[...]; a2 = a2_ref[...]; a3 = a3_ref[...]

    # Tap order must match the host-side weight / mask packing (kh-major).
    tap_offsets = [(kh - PAD, kw - PAD)
                   for kh in range(KSIZE) for kw in range(KSIZE)]

    def prelu(v, alpha):              # v: (C_PAD, L); alpha: (C_PAD, 1)
        return jnp.where(v > 0, v, alpha * v)

    def conv3x3(v, w_ref, bias):
        # Per-tap accumulating matmuls.  The host-prebuilt masks (reused by all
        # three convs) implement the SAME zero padding: any lane whose rolled
        # value came from a wrap-around / neighbouring-image position has an
        # out-of-bounds (hh+dy, ww+dx) and is masked to zero.  The centre tap
        # (off == 0) needs no roll and no mask.
        acc = None
        m_idx = 0
        for t, (dy, dx) in enumerate(tap_offsets):
            off = dy * width + dx     # == 0 only for the centre tap (width > PAD)
            if off == 0:
                shifted = v
            else:
                shifted = pltpu.roll(v, shift=(-off) % total, axis=1)
                shifted = shifted * mask_ref[pl.ds(m_idx * cpad, cpad), :]
                m_idx += 1
            w_tap = w_ref[pl.ds(t * cpad, cpad), :]            # (C_PAD, C_PAD)
            contrib = jnp.dot(w_tap, shifted,
                              preferred_element_type=jnp.float32)
            acc = contrib if acc is None else acc + contrib
        return acc + bias

    x = x_ref[...].astype(jnp.float32)
    yn = x
    k1 = conv3x3(prelu(x, a1), w1_ref, b1)
    yn_1 = k1 * s1 + yn
    k2 = conv3x3(prelu(yn_1, a2), w2_ref, b2)
    yn_2 = yn + s2 * k2 + k1 * s3
    k3 = conv3x3(prelu(yn_2, a3), w3_ref, b3)
    yn_3 = (k3 + k2 * s4 + k1) * s5
    out_ref[...] = (yn_3 + yn).astype(out_ref.dtype)


# --------------------------- one-time preparation ----------------------------

def _build_mask_slab(n, h, w):
    """((KK-1)*C_PAD, n*h*w) f32 boundary masks for the 8 non-centre taps."""
    total = n * h * w
    p = np.arange(total) % (h * w)
    hh, ww = p // w, p % w
    rows = []
    for kh in range(KSIZE):
        for kw in range(KSIZE):
            dy, dx = kh - PAD, kw - PAD
            if dy == 0 and dx == 0:
                continue                       # centre tap: always valid
            valid = ((hh + dy >= 0) & (hh + dy < h) &
                     (ww + dx >= 0) & (ww + dx < w)).astype(np.float32)
            rows.append(np.broadcast_to(valid[None, :], (C_PAD, total)))
    return jnp.asarray(np.concatenate(rows, axis=0))


def prepare_resblock(params, batch, height, width):
    """One-time parameter / mask prepacking (hoisted out of the per-call path)."""
    w1, b1, w2, b2, w3, b3, a1, a2, a3, scales = params
    C = w1.shape[2]
    assert C <= C_PAD and width > PAD

    def prep_w(w):                    # HWIO (3,3,C,C) -> (KK*C_PAD, C_PAD)
        # Tap-major rows; each (C_PAD, C_PAD) tile is W_tap[out, in].
        wt = jnp.transpose(w, (0, 1, 3, 2)).reshape(KK, C, C)   # (KK, out, in)
        wt = jnp.pad(wt, ((0, 0), (0, C_PAD - C), (0, C_PAD - C)))
        return wt.reshape(KK * C_PAD, C_PAD)

    def prep_vec(v):                  # (C,) -> (C_PAD, 1)
        # Pad stays ZERO so padded channel rows remain exactly zero through the
        # whole block (prelu(0, alpha=0) = 0; zero weight rows/cols + zero bias).
        return jnp.pad(v, (0, C_PAD - C)).reshape(C_PAD, 1)

    mask_slab = _build_mask_slab(batch, height, width)
    return (prep_w(w1), prep_vec(b1), prep_w(w2), prep_vec(b2),
            prep_w(w3), prep_vec(b3),
            prep_vec(a1), prep_vec(a2), prep_vec(a3),
            mask_slab, scales.astype(jnp.float32))


# ------------------------------- kernel call ----------------------------------

def resblock_apply_slab(x_slab, prepped, *, height, width):
    """x_slab: (C_PAD, N*H*W) channels-on-sublanes f32 activations."""
    (w1p, b1p, w2p, b2p, w3p, b3p, a1p, a2p, a3p, mask_slab, scales) = prepped
    cpad, total = x_slab.shape
    vmem = pltpu.MemorySpace.VMEM
    smem = pltpu.MemorySpace.SMEM
    in_specs = ([pl.BlockSpec(memory_space=vmem)] * 11 +
                [pl.BlockSpec(memory_space=smem)])       # 5 scalar scales
    return pl.pallas_call(
        functools.partial(_resblock_kernel, height=height, width=width),
        out_shape=jax.ShapeDtypeStruct((cpad, total), x_slab.dtype),
        in_specs=in_specs,
        out_specs=pl.BlockSpec(memory_space=vmem),
    )(x_slab, w1p, b1p, w2p, b2p, w3p, b3p, a1p, a2p, a3p, mask_slab, scales)


def nhwc_to_slab(x):                  # NHWC -> (C_PAD, N*H*W)
    n, h, w, c = x.shape
    v = jnp.transpose(x, (3, 0, 1, 2)).reshape(c, n * h * w)
    return jnp.pad(v, ((0, C_PAD - c), (0, 0)))


def slab_to_nhwc(slab, n, h, w, c):
    return jnp.transpose(slab[:c].reshape(c, n, h, w), (1, 2, 3, 0))


def resblock_forward(x, prepped):
    """NHWC convenience wrapper (test path).  For stacked ResBlocks, keep the
    activation in slab layout and chain resblock_apply_slab calls instead."""
    n, h, w, c = x.shape
    out_slab = resblock_apply_slab(nhwc_to_slab(x), prepped, height=h, width=w)
    return slab_to_nhwc(out_slab, n, h, w, c)


# ------------------------------- reference ------------------------------------

def resblock_reference(x, params):
    """Pure-JAX reference (NHWC / HWIO), mirrors the PyTorch forward exactly."""
    w1, b1, w2, b2, w3, b3, a1, a2, a3, scales = params

    def prelu(v, a):
        return jnp.where(v > 0, v, a.reshape(1, 1, 1, -1) * v)

    def conv(v, w, b):
        y = lax.conv_general_dilated(
            v, w, window_strides=(1, 1), padding="SAME",
            dimension_numbers=("NHWC", "HWIO", "NHWC"),
            precision=lax.Precision.HIGHEST)
        return y + b.reshape(1, 1, 1, -1)

    s1, s2, s3, s4, s5 = (scales[i] for i in range(5))
    yn = x
    k1 = conv(prelu(x, a1), w1, b1)
    yn_1 = k1 * s1 + yn
    k2 = conv(prelu(yn_1, a2), w2, b2)
    yn_2 = yn + s2 * k2 + k1 * s3
    k3 = conv(prelu(yn_2, a3), w3, b3)
    yn_3 = (k3 + k2 * s4 + k1) * s5
    return yn_3 + yn


def make_params(key):
    ks = jax.random.split(key, 10)
    C = N_FEATS
    w_shape = (KSIZE, KSIZE, C, C)                    # HWIO
    w1 = 0.1 * jax.random.normal(ks[0], w_shape, jnp.float32)
    w2 = 0.1 * jax.random.normal(ks[1], w_shape, jnp.float32)
    w3 = 0.1 * jax.random.normal(ks[2], w_shape, jnp.float32)
    b1 = 0.05 * jax.random.normal(ks[3], (C,), jnp.float32)
    b2 = 0.05 * jax.random.normal(ks[4], (C,), jnp.float32)
    b3 = 0.05 * jax.random.normal(ks[5], (C,), jnp.float32)
    # nn.PReLU(n_feats, 0.25): per-channel slope initialized at 0.25
    # (small perturbation to exercise the per-channel path).
    a1 = 0.25 + 0.05 * jax.random.uniform(ks[6], (C,), jnp.float32)
    a2 = 0.25 + 0.05 * jax.random.uniform(ks[7], (C,), jnp.float32)
    a3 = 0.25 + 0.05 * jax.random.uniform(ks[8], (C,), jnp.float32)
    scales = jnp.array([0.5, 2.0, -1.0, 4.0, 1.0 / 6.0], jnp.float32)
    return (w1, b1, w2, b2, w3, b3, a1, a2, a3, scales)


if __name__ == "__main__":
    key = jax.random.PRNGKey(0)
    k_x, k_p = jax.random.split(key)
    # NHWC input, the layout-permuted equivalent of PyTorch NCHW (2, 4, 16, 16).
    x = jax.random.normal(k_x, (BATCH, H, W, N_FEATS), jnp.float32)
    params = make_params(k_p)

    prepped = prepare_resblock(params, BATCH, H, W)      # one-time prepacking
    fwd = jax.jit(resblock_forward)

    out = jax.block_until_ready(fwd(x, prepped))
    ref = resblock_reference(x, params)

    # Tolerance accommodates the MXU's f32 pass decomposition relative to the
    # HIGHEST-precision XLA conv reference; any structural bug (wrong tap,
    # mask, weight layout or scale ordering) produces errors orders of
    # magnitude larger than this.
    np.testing.assert_allclose(np.asarray(out), np.asarray(ref),
                               rtol=1e-2, atol=1e-2)
    print("KERNEL_OK")
</pallas_src>

<mosaic_0001>
module attributes {stable_mosaic.version = 11 : i64} {
  func.func @_resblock_kernel(%arg0: memref<8x512xf32, #tpu.memory_space<vmem>>, %arg1: memref<72x8xf32, #tpu.memory_space<vmem>>, %arg2: memref<8x1xf32, #tpu.memory_space<vmem>>, %arg3: memref<72x8xf32, #tpu.memory_space<vmem>>, %arg4: memref<8x1xf32, #tpu.memory_space<vmem>>, %arg5: memref<72x8xf32, #tpu.memory_space<vmem>>, %arg6: memref<8x1xf32, #tpu.memory_space<vmem>>, %arg7: memref<8x1xf32, #tpu.memory_space<vmem>>, %arg8: memref<8x1xf32, #tpu.memory_space<vmem>>, %arg9: memref<8x1xf32, #tpu.memory_space<vmem>>, %arg10: memref<64x512xf32, #tpu.memory_space<vmem>>, %arg11: memref<5xf32, #tpu.memory_space<smem>>, %arg12: memref<8x512xf32, #tpu.memory_space<vmem>>) attributes {dimension_semantics = [], scalar_prefetch = 0 : i64, scratch_operands = 0 : i64, tpu.core_type = #tpu.core_type<tc>} {
    %c0 = arith.constant 0 : index
    %0 = memref.load %arg11[%c0] : memref<5xf32, #tpu.memory_space<smem>>
    %c1 = arith.constant 1 : index
    %1 = memref.load %arg11[%c1] : memref<5xf32, #tpu.memory_space<smem>>
    %c2 = arith.constant 2 : index
    %2 = memref.load %arg11[%c2] : memref<5xf32, #tpu.memory_space<smem>>
    %c3 = arith.constant 3 : index
    %3 = memref.load %arg11[%c3] : memref<5xf32, #tpu.memory_space<smem>>
    %c4 = arith.constant 4 : index
    %4 = memref.load %arg11[%c4] : memref<5xf32, #tpu.memory_space<smem>>
    %c0_0 = arith.constant 0 : index
    %c0_1 = arith.constant 0 : index
    %5 = vector.load %arg2[%c0_0, %c0_1] : memref<8x1xf32, #tpu.memory_space<vmem>>, vector<8x1xf32>
    %c0_2 = arith.constant 0 : index
    %c0_3 = arith.constant 0 : index
    %6 = vector.load %arg4[%c0_2, %c0_3] : memref<8x1xf32, #tpu.memory_space<vmem>>, vector<8x1xf32>
    %c0_4 = arith.constant 0 : index
    %c0_5 = arith.constant 0 : index
    %7 = vector.load %arg6[%c0_4, %c0_5] : memref<8x1xf32, #tpu.memory_space<vmem>>, vector<8x1xf32>
    %c0_6 = arith.constant 0 : index
    %c0_7 = arith.constant 0 : index
    %8 = vector.load %arg7[%c0_6, %c0_7] : memref<8x1xf32, #tpu.memory_space<vmem>>, vector<8x1xf32>
    %c0_8 = arith.constant 0 : index
    %c0_9 = arith.constant 0 : index
    %9 = vector.load %arg8[%c0_8, %c0_9] : memref<8x1xf32, #tpu.memory_space<vmem>>, vector<8x1xf32>
    %c0_10 = arith.constant 0 : index
    %c0_11 = arith.constant 0 : index
    %10 = vector.load %arg9[%c0_10, %c0_11] : memref<8x1xf32, #tpu.memory_space<vmem>>, vector<8x1xf32>
    %c0_12 = arith.constant 0 : index
    %c0_13 = arith.constant 0 : index
    %11 = vector.load %arg0[%c0_12, %c0_13] : memref<8x512xf32, #tpu.memory_space<vmem>>, vector<8x512xf32>
    %cst = arith.constant 0.000000e+00 : f32
    %12 = vector.broadcast %cst : f32 to vector<8x512xf32>
    %13 = arith.cmpf ogt, %11, %12 : vector<8x512xf32>
    %14 = vector.broadcast %8 : vector<8x1xf32> to vector<8x512xf32>
    %15 = arith.mulf %14, %11 : vector<8x512xf32>
    %16 = arith.select %13, %11, %15 : vector<8x512xi1>, vector<8x512xf32>
    %c17_i32 = arith.constant 17 : i32
    %17 = tpu.dynamic_rotate %16 by %c17_i32 dim 1 : vector<8x512xf32>, i32 -> vector<8x512xf32>
    %c0_14 = arith.constant 0 : index
    %c0_15 = arith.constant 0 : index
    %18 = vector.load %arg10[%c0_14, %c0_15] : memref<64x512xf32, #tpu.memory_space<vmem>>, vector<8x512xf32>
    %19 = arith.mulf %17, %18 : vector<8x512xf32>
    %c0_16 = arith.constant 0 : index
    %c0_17 = arith.constant 0 : index
    %20 = vector.load %arg1[%c0_16, %c0_17] : memref<72x8xf32, #tpu.memory_space<vmem>>, vector<8x8xf32>
    %cst_18 = arith.constant dense<0.000000e+00> : vector<8x512xf32>
    %21 = tpu.matmul %20, %19, %cst_18 {dimension_numbers = #tpu.dot_dimension_numbers<[1], [0], [0], [1], [0, 0, 1, 1], [], []>} : vector<8x8xf32>, vector<8x512xf32>, vector<8x512xf32> -> vector<8x512xf32>
    %c16_i32 = arith.constant 16 : i32
    %22 = tpu.dynamic_rotate %16 by %c16_i32 dim 1 : vector<8x512xf32>, i32 -> vector<8x512xf32>
    %c8 = arith.constant 8 : index
    %c0_19 = arith.constant 0 : index
    %23 = vector.load %arg10[%c8, %c0_19] : memref<64x512xf32, #tpu.memory_space<vmem>>, vector<8x512xf32>
    %24 = arith.mulf %22, %23 : vector<8x512xf32>
    %c8_20 = arith.constant 8 : index
    %c0_21 = arith.constant 0 : index
    %25 = vector.load %arg1[%c8_20, %c0_21] : memref<72x8xf32, #tpu.memory_space<vmem>>, vector<8x8xf32>
    %cst_22 = arith.constant dense<0.000000e+00> : vector<8x512xf32>
    %26 = tpu.matmul %25, %24, %cst_22 {dimension_numbers = #tpu.dot_dimension_numbers<[1], [0], [0], [1], [0, 0, 1, 1], [], []>} : vector<8x8xf32>, vector<8x512xf32>, vector<8x512xf32> -> vector<8x512xf32>
    %27 = arith.addf %21, %26 : vector<8x512xf32>
    %c15_i32 = arith.constant 15 : i32
    %28 = tpu.dynamic_rotate %16 by %c15_i32 dim 1 : vector<8x512xf32>, i32 -> vector<8x512xf32>
    %c16 = arith.constant 16 : index
    %c0_23 = arith.constant 0 : index
    %29 = vector.load %arg10[%c16, %c0_23] : memref<64x512xf32, #tpu.memory_space<vmem>>, vector<8x512xf32>
    %30 = arith.mulf %28, %29 : vector<8x512xf32>
    %c16_24 = arith.constant 16 : index
    %c0_25 = arith.constant 0 : index
    %31 = vector.load %arg1[%c16_24, %c0_25] : memref<72x8xf32, #tpu.memory_space<vmem>>, vector<8x8xf32>
    %cst_26 = arith.constant dense<0.000000e+00> : vector<8x512xf32>
    %32 = tpu.matmul %31, %30, %cst_26 {dimension_numbers = #tpu.dot_dimension_numbers<[1], [0], [0], [1], [0, 0, 1, 1], [], []>} : vector<8x8xf32>, vector<8x512xf32>, vector<8x512xf32> -> vector<8x512xf32>
    %33 = arith.addf %27, %32 : vector<8x512xf32>
    %c1_i32 = arith.constant 1 : i32
    %34 = tpu.dynamic_rotate %16 by %c1_i32 dim 1 : vector<8x512xf32>, i32 -> vector<8x512xf32>
    %c24 = arith.constant 24 : index
    %c0_27 = arith.constant 0 : index
    %35 = vector.load %arg10[%c24, %c0_27] : memref<64x512xf32, #tpu.memory_space<vmem>>, vector<8x512xf32>
    %36 = arith.mulf %34, %35 : vector<8x512xf32>
    %c24_28 = arith.constant 24 : index
    %c0_29 = arith.constant 0 : index
    %37 = vector.load %arg1[%c24_28, %c0_29] : memref<72x8xf32, #tpu.memory_space<vmem>>, vector<8x8xf32>
    %cst_30 = arith.constant dense<0.000000e+00> : vector<8x512xf32>
    %38 = tpu.matmul %37, %36, %cst_30 {dimension_numbers = #tpu.dot_dimension_numbers<[1], [0], [0], [1], [0, 0, 1, 1], [], []>} : vector<8x8xf32>, vector<8x512xf32>, vector<8x512xf32> -> vector<8x512xf32>
    %39 = arith.addf %33, %38 : vector<8x512xf32>
    %c32 = arith.constant 32 : index
    %c0_31 = arith.constant 0 : index
    %40 = vector.load %arg1[%c32, %c0_31] : memref<72x8xf32, #tpu.memory_space<vmem>>, vector<8x8xf32>
    %cst_32 = arith.constant dense<0.000000e+00> : vector<8x512xf32>
    %41 = tpu.matmul %40, %16, %cst_32 {dimension_numbers = #tpu.dot_dimension_numbers<[1], [0], [0], [1], [0, 0, 1, 1], [], []>} : vector<8x8xf32>, vector<8x512xf32>, vector<8x512xf32> -> vector<8x512xf32>
    %42 = arith.addf %39, %41 : vector<8x512xf32>
    %c511_i32 = arith.constant 511 : i32
    %43 = tpu.dynamic_rotate %16 by %c511_i32 dim 1 : vector<8x512xf32>, i32 -> vector<8x512xf32>
    %c32_33 = arith.constant 32 : index
    %c0_34 = arith.constant 0 : index
    %44 = vector.load %arg10[%c32_33, %c0_34] : memref<64x512xf32, #tpu.memory_space<vmem>>, vector<8x512xf32>
    %45 = arith.mulf %43, %44 : vector<8x512xf32>
    %c40 = arith.constant 40 : index
    %c0_35 = arith.constant 0 : index
    %46 = vector.load %arg1[%c40, %c0_35] : memref<72x8xf32, #tpu.memory_space<vmem>>, vector<8x8xf32>
    %cst_36 = arith.constant dense<0.000000e+00> : vector<8x512xf32>
    %47 = tpu.matmul %46, %45, %cst_36 {dimension_numbers = #tpu.dot_dimension_numbers<[1], [0], [0], [1], [0, 0, 1, 1], [], []>} : vector<8x8xf32>, vector<8x512xf32>, vector<8x512xf32> -> vector<8x512xf32>
    %48 = arith.addf %42, %47 : vector<8x512xf32>
    %c497_i32 = arith.constant 497 : i32
    %49 = tpu.dynamic_rotate %16 by %c497_i32 dim 1 : vector<8x512xf32>, i32 -> vector<8x512xf32>
    %c40_37 = arith.constant 40 : index
    %c0_38 = arith.constant 0 : index
    %50 = vector.load %arg10[%c40_37, %c0_38] : memref<64x512xf32, #tpu.memory_space<vmem>>, vector<8x512xf32>
    %51 = arith.mulf %49, %50 : vector<8x512xf32>
    %c48 = arith.constant 48 : index
    %c0_39 = arith.constant 0 : index
    %52 = vector.load %arg1[%c48, %c0_39] : memref<72x8xf32, #tpu.memory_space<vmem>>, vector<8x8xf32>
    %cst_40 = arith.constant dense<0.000000e+00> : vector<8x512xf32>
    %53 = tpu.matmul %52, %51, %cst_40 {dimension_numbers = #tpu.dot_dimension_numbers<[1], [0], [0], [1], [0, 0, 1, 1], [], []>} : vector<8x8xf32>, vector<8x512xf32>, vector<8x512xf32> -> vector<8x512xf32>
    %54 = arith.addf %48, %53 : vector<8x512xf32>
    %c496_i32 = arith.constant 496 : i32
    %55 = tpu.dynamic_rotate %16 by %c496_i32 dim 1 : vector<8x512xf32>, i32 -> vector<8x512xf32>
    %c48_41 = arith.constant 48 : index
    %c0_42 = arith.constant 0 : index
    %56 = vector.load %arg10[%c48_41, %c0_42] : memref<64x512xf32, #tpu.memory_space<vmem>>, vector<8x512xf32>
    %57 = arith.mulf %55, %56 : vector<8x512xf32>
    %c56 = arith.constant 56 : index
    %c0_43 = arith.constant 0 : index
    %58 = vector.load %arg1[%c56, %c0_43] : memref<72x8xf32, #tpu.memory_space<vmem>>, vector<8x8xf32>
    %cst_44 = arith.constant dense<0.000000e+00> : vector<8x512xf32>
    %59 = tpu.matmul %58, %57, %cst_44 {dimension_numbers = #tpu.dot_dimension_numbers<[1], [0], [0], [1], [0, 0, 1, 1], [], []>} : vector<8x8xf32>, vector<8x512xf32>, vector<8x512xf32> -> vector<8x512xf32>
    %60 = arith.addf %54, %59 : vector<8x512xf32>
    %c495_i32 = arith.constant 495 : i32
    %61 = tpu.dynamic_rotate %16 by %c495_i32 dim 1 : vector<8x512xf32>, i32 -> vector<8x512xf32>
    %c56_45 = arith.constant 56 : index
    %c0_46 = arith.constant 0 : index
    %62 = vector.load %arg10[%c56_45, %c0_46] : memref<64x512xf32, #tpu.memory_space<vmem>>, vector<8x512xf32>
    %63 = arith.mulf %61, %62 : vector<8x512xf32>
    %c64 = arith.constant 64 : index
    %c0_47 = arith.constant 0 : index
    %64 = vector.load %arg1[%c64, %c0_47] : memref<72x8xf32, #tpu.memory_space<vmem>>, vector<8x8xf32>
    %cst_48 = arith.constant dense<0.000000e+00> : vector<8x512xf32>
    %65 = tpu.matmul %64, %63, %cst_48 {dimension_numbers = #tpu.dot_dimension_numbers<[1], [0], [0], [1], [0, 0, 1, 1], [], []>} : vector<8x8xf32>, vector<8x512xf32>, vector<8x512xf32> -> vector<8x512xf32>
    %66 = arith.addf %60, %65 : vector<8x512xf32>
    %67 = vector.broadcast %5 : vector<8x1xf32> to vector<8x512xf32>
    %68 = arith.addf %66, %67 : vector<8x512xf32>
    %69 = vector.broadcast %0 : f32 to vector<8x512xf32>
    %70 = arith.mulf %68, %69 : vector<8x512xf32>
    %71 = arith.addf %70, %11 : vector<8x512xf32>
    %cst_49 = arith.constant 0.000000e+00 : f32
    %72 = vector.broadcast %cst_49 : f32 to vector<8x512xf32>
    %73 = arith.cmpf ogt, %71, %72 : vector<8x512xf32>
    %74 = vector.broadcast %9 : vector<8x1xf32> to vector<8x512xf32>
    %75 = arith.mulf %74, %71 : vector<8x512xf32>
    %76 = arith.select %73, %71, %75 : vector<8x512xi1>, vector<8x512xf32>
    %c17_i32_50 = arith.constant 17 : i32
    %77 = tpu.dynamic_rotate %76 by %c17_i32_50 dim 1 : vector<8x512xf32>, i32 -> vector<8x512xf32>
    %c0_51 = arith.constant 0 : index
    %c0_52 = arith.constant 0 : index
    %78 = vector.load %arg10[%c0_51, %c0_52] : memref<64x512xf32, #tpu.memory_space<vmem>>, vector<8x512xf32>
    %79 = arith.mulf %77, %78 : vector<8x512xf32>
    %c0_53 = arith.constant 0 : index
    %c0_54 = arith.constant 0 : index
    %80 = vector.load %arg3[%c0_53, %c0_54] : memref<72x8xf32, #tpu.memory_space<vmem>>, vector<8x8xf32>
    %cst_55 = arith.constant dense<0.000000e+00> : vector<8x512xf32>
    %81 = tpu.matmul %80, %79, %cst_55 {dimension_numbers = #tpu.dot_dimension_numbers<[1], [0], [0], [1], [0, 0, 1, 1], [], []>} : vector<8x8xf32>, vector<8x512xf32>, vector<8x512xf32> -> vector<8x512xf32>
    %c16_i32_56 = arith.constant 16 : i32
    %82 = tpu.dynamic_rotate %76 by %c16_i32_56 dim 1 : vector<8x512xf32>, i32 -> vector<8x512xf32>
    %c8_57 = arith.constant 8 : index
    %c0_58 = arith.constant 0 : index
    %83 = vector.load %arg10[%c8_57, %c0_58] : memref<64x512xf32, #tpu.memory_space<vmem>>, vector<8x512xf32>
    %84 = arith.mulf %82, %83 : vector<8x512xf32>
    %c8_59 = arith.constant 8 : index
    %c0_60 = arith.constant 0 : index
    %85 = vector.load %arg3[%c8_59, %c0_60] : memref<72x8xf32, #tpu.memory_space<vmem>>, vector<8x8xf32>
    %cst_61 = arith.constant dense<0.000000e+00> : vector<8x512xf32>
    %86 = tpu.matmul %85, %84, %cst_61 {dimension_numbers = #tpu.dot_dimension_numbers<[1], [0], [0], [1], [0, 0, 1, 1], [], []>} : vector<8x8xf32>, vector<8x512xf32>, vector<8x512xf32> -> vector<8x512xf32>
    %87 = arith.addf %81, %86 : vector<8x512xf32>
    %c15_i32_62 = arith.constant 15 : i32
    %88 = tpu.dynamic_rotate %76 by %c15_i32_62 dim 1 : vector<8x512xf32>, i32 -> vector<8x512xf32>
    %c16_63 = arith.constant 16 : index
    %c0_64 = arith.constant 0 : index
    %89 = vector.load %arg10[%c16_63, %c0_64] : memref<64x512xf32, #tpu.memory_space<vmem>>, vector<8x512xf32>
    %90 = arith.mulf %88, %89 : vector<8x512xf32>
    %c16_65 = arith.constant 16 : index
    %c0_66 = arith.constant 0 : index
    %91 = vector.load %arg3[%c16_65, %c0_66] : memref<72x8xf32, #tpu.memory_space<vmem>>, vector<8x8xf32>
    %cst_67 = arith.constant dense<0.000000e+00> : vector<8x512xf32>
    %92 = tpu.matmul %91, %90, %cst_67 {dimension_numbers = #tpu.dot_dimension_numbers<[1], [0], [0], [1], [0, 0, 1, 1], [], []>} : vector<8x8xf32>, vector<8x512xf32>, vector<8x512xf32> -> vector<8x512xf32>
    %93 = arith.addf %87, %92 : vector<8x512xf32>
    %c1_i32_68 = arith.constant 1 : i32
    %94 = tpu.dynamic_rotate %76 by %c1_i32_68 dim 1 : vector<8x512xf32>, i32 -> vector<8x512xf32>
    %c24_69 = arith.constant 24 : index
    %c0_70 = arith.constant 0 : index
    %95 = vector.load %arg10[%c24_69, %c0_70] : memref<64x512xf32, #tpu.memory_space<vmem>>, vector<8x512xf32>
    %96 = arith.mulf %94, %95 : vector<8x512xf32>
    %c24_71 = arith.constant 24 : index
    %c0_72 = arith.constant 0 : index
    %97 = vector.load %arg3[%c24_71, %c0_72] : memref<72x8xf32, #tpu.memory_space<vmem>>, vector<8x8xf32>
    %cst_73 = arith.constant dense<0.000000e+00> : vector<8x512xf32>
    %98 = tpu.matmul %97, %96, %cst_73 {dimension_numbers = #tpu.dot_dimension_numbers<[1], [0], [0], [1], [0, 0, 1, 1], [], []>} : vector<8x8xf32>, vector<8x512xf32>, vector<8x512xf32> -> vector<8x512xf32>
    %99 = arith.addf %93, %98 : vector<8x512xf32>
    %c32_74 = arith.constant 32 : index
    %c0_75 = arith.constant 0 : index
    %100 = vector.load %arg3[%c32_74, %c0_75] : memref<72x8xf32, #tpu.memory_space<vmem>>, vector<8x8xf32>
    %cst_76 = arith.constant dense<0.000000e+00> : vector<8x512xf32>
    %101 = tpu.matmul %100, %76, %cst_76 {dimension_numbers = #tpu.dot_dimension_numbers<[1], [0], [0], [1], [0, 0, 1, 1], [], []>} : vector<8x8xf32>, vector<8x512xf32>, vector<8x512xf32> -> vector<8x512xf32>
    %102 = arith.addf %99, %101 : vector<8x512xf32>
    %c511_i32_77 = arith.constant 511 : i32
    %103 = tpu.dynamic_rotate %76 by %c511_i32_77 dim 1 : vector<8x512xf32>, i32 -> vector<8x512xf32>
    %c32_78 = arith.constant 32 : index
    %c0_79 = arith.constant 0 : index
    %104 = vector.load %arg10[%c32_78, %c0_79] : memref<64x512xf32, #tpu.memory_space<vmem>>, vector<8x512xf32>
    %105 = arith.mulf %103, %104 : vector<8x512xf32>
    %c40_80 = arith.constant 40 : index
    %c0_81 = arith.constant 0 : index
    %106 = vector.load %arg3[%c40_80, %c0_81] : memref<72x8xf32, #tpu.memory_space<vmem>>, vector<8x8xf32>
    %cst_82 = arith.constant dense<0.000000e+00> : vector<8x512xf32>
    %107 = tpu.matmul %106, %105, %cst_82 {dimension_numbers = #tpu.dot_dimension_numbers<[1], [0], [0], [1], [0, 0, 1, 1], [], []>} : vector<8x8xf32>, vector<8x512xf32>, vector<8x512xf32> -> vector<8x512xf32>
    %108 = arith.addf %102, %107 : vector<8x512xf32>
    %c497_i32_83 = arith.constant 497 : i32
    %109 = tpu.dynamic_rotate %76 by %c497_i32_83 dim 1 : vector<8x512xf32>, i32 -> vector<8x512xf32>
    %c40_84 = arith.constant 40 : index
    %c0_85 = arith.constant 0 : index
    %110 = vector.load %arg10[%c40_84, %c0_85] : memref<64x512xf32, #tpu.memory_space<vmem>>, vector<8x512xf32>
    %111 = arith.mulf %109, %110 : vector<8x512xf32>
    %c48_86 = arith.constant 48 : index
    %c0_87 = arith.constant 0 : index
    %112 = vector.load %arg3[%c48_86, %c0_87] : memref<72x8xf32, #tpu.memory_space<vmem>>, vector<8x8xf32>
    %cst_88 = arith.constant dense<0.000000e+00> : vector<8x512xf32>
    %113 = tpu.matmul %112, %111, %cst_88 {dimension_numbers = #tpu.dot_dimension_numbers<[1], [0], [0], [1], [0, 0, 1, 1], [], []>} : vector<8x8xf32>, vector<8x512xf32>, vector<8x512xf32> -> vector<8x512xf32>
    %114 = arith.addf %108, %113 : vector<8x512xf32>
    %c496_i32_89 = arith.constant 496 : i32
    %115 = tpu.dynamic_rotate %76 by %c496_i32_89 dim 1 : vector<8x512xf32>, i32 -> vector<8x512xf32>
    %c48_90 = arith.constant 48 : index
    %c0_91 = arith.constant 0 : index
    %116 = vector.load %arg10[%c48_90, %c0_91] : memref<64x512xf32, #tpu.memory_space<vmem>>, vector<8x512xf32>
    %117 = arith.mulf %115, %116 : vector<8x512xf32>
    %c56_92 = arith.constant 56 : index
    %c0_93 = arith.constant 0 : index
    %118 = vector.load %arg3[%c56_92, %c0_93] : memref<72x8xf32, #tpu.memory_space<vmem>>, vector<8x8xf32>
    %cst_94 = arith.constant dense<0.000000e+00> : vector<8x512xf32>
    %119 = tpu.matmul %118, %117, %cst_94 {dimension_numbers = #tpu.dot_dimension_numbers<[1], [0], [0], [1], [0, 0, 1, 1], [], []>} : vector<8x8xf32>, vector<8x512xf32>, vector<8x512xf32> -> vector<8x512xf32>
    %120 = arith.addf %114, %119 : vector<8x512xf32>
    %c495_i32_95 = arith.constant 495 : i32
    %121 = tpu.dynamic_rotate %76 by %c495_i32_95 dim 1 : vector<8x512xf32>, i32 -> vector<8x512xf32>
    %c56_96 = arith.constant 56 : index
    %c0_97 = arith.constant 0 : index
    %122 = vector.load %arg10[%c56_96, %c0_97] : memref<64x512xf32, #tpu.memory_space<vmem>>, vector<8x512xf32>
    %123 = arith.mulf %121, %122 : vector<8x512xf32>
    %c64_98 = arith.constant 64 : index
    %c0_99 = arith.constant 0 : index
    %124 = vector.load %arg3[%c64_98, %c0_99] : memref<72x8xf32, #tpu.memory_space<vmem>>, vector<8x8xf32>
    %cst_100 = arith.constant dense<0.000000e+00> : vector<8x512xf32>
    %125 = tpu.matmul %124, %123, %cst_100 {dimension_numbers = #tpu.dot_dimension_numbers<[1], [0], [0], [1], [0, 0, 1, 1], [], []>} : vector<8x8xf32>, vector<8x512xf32>, vector<8x512xf32> -> vector<8x512xf32>
    %126 = arith.addf %120, %125 : vector<8x512xf32>
    %127 = vector.broadcast %6 : vector<8x1xf32> to vector<8x512xf32>
    %128 = arith.addf %126, %127 : vector<8x512xf32>
    %129 = vector.broadcast %1 : f32 to vector<8x512xf32>
    %130 = arith.mulf %129, %128 : vector<8x512xf32>
    %131 = arith.addf %11, %130 : vector<8x512xf32>
    %132 = vector.broadcast %2 : f32 to vector<8x512xf32>
    %133 = arith.mulf %68, %132 : vector<8x512xf32>
    %134 = arith.addf %131, %133 : vector<8x512xf32>
    %cst_101 = arith.constant 0.000000e+00 : f32
    %135 = vector.broadcast %cst_101 : f32 to vector<8x512xf32>
    %136 = arith.cmpf ogt, %134, %135 : vector<8x512xf32>
    %137 = vector.broadcast %10 : vector<8x1xf32> to vector<8x512xf32>
    %138 = arith.mulf %137, %134 : vector<8x512xf32>
    %139 = arith.select %136, %134, %138 : vector<8x512xi1>, vector<8x512xf32>
    %c17_i32_102 = arith.constant 17 : i32
    %140 = tpu.dynamic_rotate %139 by %c17_i32_102 dim 1 : vector<8x512xf32>, i32 -> vector<8x512xf32>
    %c0_103 = arith.constant 0 : index
    %c0_104 = arith.constant 0 : index
    %141 = vector.load %arg10[%c0_103, %c0_104] : memref<64x512xf32, #tpu.memory_space<vmem>>, vector<8x512xf32>
    %142 = arith.mulf %140, %141 : vector<8x512xf32>
    %c0_105 = arith.constant 0 : index
    %c0_106 = arith.constant 0 : index
    %143 = vector.load %arg5[%c0_105, %c0_106] : memref<72x8xf32, #tpu.memory_space<vmem>>, vector<8x8xf32>
    %cst_107 = arith.constant dense<0.000000e+00> : vector<8x512xf32>
    %144 = tpu.matmul %143, %142, %cst_107 {dimension_numbers = #tpu.dot_dimension_numbers<[1], [0], [0], [1], [0, 0, 1, 1], [], []>} : vector<8x8xf32>, vector<8x512xf32>, vector<8x512xf32> -> vector<8x512xf32>
    %c16_i32_108 = arith.constant 16 : i32
    %145 = tpu.dynamic_rotate %139 by %c16_i32_108 dim 1 : vector<8x512xf32>, i32 -> vector<8x512xf32>
    %c8_109 = arith.constant 8 : index
    %c0_110 = arith.constant 0 : index
    %146 = vector.load %arg10[%c8_109, %c0_110] : memref<64x512xf32, #tpu.memory_space<vmem>>, vector<8x512xf32>
    %147 = arith.mulf %145, %146 : vector<8x512xf32>
    %c8_111 = arith.constant 8 : index
    %c0_112 = arith.constant 0 : index
    %148 = vector.load %arg5[%c8_111, %c0_112] : memref<72x8xf32, #tpu.memory_space<vmem>>, vector<8x8xf32>
    %cst_113 = arith.constant dense<0.000000e+00> : vector<8x512xf32>
    %149 = tpu.matmul %148, %147, %cst_113 {dimension_numbers = #tpu.dot_dimension_numbers<[1], [0], [0], [1], [0, 0, 1, 1], [], []>} : vector<8x8xf32>, vector<8x512xf32>, vector<8x512xf32> -> vector<8x512xf32>
    %150 = arith.addf %144, %149 : vector<8x512xf32>
    %c15_i32_114 = arith.constant 15 : i32
    %151 = tpu.dynamic_rotate %139 by %c15_i32_114 dim 1 : vector<8x512xf32>, i32 -> vector<8x512xf32>
    %c16_115 = arith.constant 16 : index
    %c0_116 = arith.constant 0 : index
    %152 = vector.load %arg10[%c16_115, %c0_116] : memref<64x512xf32, #tpu.memory_space<vmem>>, vector<8x512xf32>
    %153 = arith.mulf %151, %152 : vector<8x512xf32>
    %c16_117 = arith.constant 16 : index
    %c0_118 = arith.constant 0 : index
    %154 = vector.load %arg5[%c16_117, %c0_118] : memref<72x8xf32, #tpu.memory_space<vmem>>, vector<8x8xf32>
    %cst_119 = arith.constant dense<0.000000e+00> : vector<8x512xf32>
    %155 = tpu.matmul %154, %153, %cst_119 {dimension_numbers = #tpu.dot_dimension_numbers<[1], [0], [0], [1], [0, 0, 1, 1], [], []>} : vector<8x8xf32>, vector<8x512xf32>, vector<8x512xf32> -> vector<8x512xf32>
    %156 = arith.addf %150, %155 : vector<8x512xf32>
    %c1_i32_120 = arith.constant 1 : i32
    %157 = tpu.dynamic_rotate %139 by %c1_i32_120 dim 1 : vector<8x512xf32>, i32 -> vector<8x512xf32>
    %c24_121 = arith.constant 24 : index
    %c0_122 = arith.constant 0 : index
    %158 = vector.load %arg10[%c24_121, %c0_122] : memref<64x512xf32, #tpu.memory_space<vmem>>, vector<8x512xf32>
    %159 = arith.mulf %157, %158 : vector<8x512xf32>
    %c24_123 = arith.constant 24 : index
    %c0_124 = arith.constant 0 : index
    %160 = vector.load %arg5[%c24_123, %c0_124] : memref<72x8xf32, #tpu.memory_space<vmem>>, vector<8x8xf32>
    %cst_125 = arith.constant dense<0.000000e+00> : vector<8x512xf32>
    %161 = tpu.matmul %160, %159, %cst_125 {dimension_numbers = #tpu.dot_dimension_numbers<[1], [0], [0], [1], [0, 0, 1, 1], [], []>} : vector<8x8xf32>, vector<8x512xf32>, vector<8x512xf32> -> vector<8x512xf32>
    %162 = arith.addf %156, %161 : vector<8x512xf32>
    %c32_126 = arith.constant 32 : index
    %c0_127 = arith.constant 0 : index
    %163 = vector.load %arg5[%c32_126, %c0_127] : memref<72x8xf32, #tpu.memory_space<vmem>>, vector<8x8xf32>
    %cst_128 = arith.constant dense<0.000000e+00> : vector<8x512xf32>
    %164 = tpu.matmul %163, %139, %cst_128 {dimension_numbers = #tpu.dot_dimension_numbers<[1], [0], [0], [1], [0, 0, 1, 1], [], []>} : vector<8x8xf32>, vector<8x512xf32>, vector<8x512xf32> -> vector<8x512xf32>
    %165 = arith.addf %162, %164 : vector<8x512xf32>
    %c511_i32_129 = arith.constant 511 : i32
    %166 = tpu.dynamic_rotate %139 by %c511_i32_129 dim 1 : vector<8x512xf32>, i32 -> vector<8x512xf32>
    %c32_130 = arith.constant 32 : index
    %c0_131 = arith.constant 0 : index
    %167 = vector.load %arg10[%c32_130, %c0_131] : memref<64x512xf32, #tpu.memory_space<vmem>>, vector<8x512xf32>
    %168 = arith.mulf %166, %167 : vector<8x512xf32>
    %c40_132 = arith.constant 40 : index
    %c0_133 = arith.constant 0 : index
    %169 = vector.load %arg5[%c40_132, %c0_133] : memref<72x8xf32, #tpu.memory_space<vmem>>, vector<8x8xf32>
    %cst_134 = arith.constant dense<0.000000e+00> : vector<8x512xf32>
    %170 = tpu.matmul %169, %168, %cst_134 {dimension_numbers = #tpu.dot_dimension_numbers<[1], [0], [0], [1], [0, 0, 1, 1], [], []>} : vector<8x8xf32>, vector<8x512xf32>, vector<8x512xf32> -> vector<8x512xf32>
    %171 = arith.addf %165, %170 : vector<8x512xf32>
    %c497_i32_135 = arith.constant 497 : i32
    %172 = tpu.dynamic_rotate %139 by %c497_i32_135 dim 1 : vector<8x512xf32>, i32 -> vector<8x512xf32>
    %c40_136 = arith.constant 40 : index
    %c0_137 = arith.constant 0 : index
    %173 = vector.load %arg10[%c40_136, %c0_137] : memref<64x512xf32, #tpu.memory_space<vmem>>, vector<8x512xf32>
    %174 = arith.mulf %172, %173 : vector<8x512xf32>
    %c48_138 = arith.constant 48 : index
    %c0_139 = arith.constant 0 : index
    %175 = vector.load %arg5[%c48_138, %c0_139] : memref<72x8xf32, #tpu.memory_space<vmem>>, vector<8x8xf32>
    %cst_140 = arith.constant dense<0.000000e+00> : vector<8x512xf32>
    %176 = tpu.matmul %175, %174, %cst_140 {dimension_numbers = #tpu.dot_dimension_numbers<[1], [0], [0], [1], [0, 0, 1, 1], [], []>} : vector<8x8xf32>, vector<8x512xf32>, vector<8x512xf32> -> vector<8x512xf32>
    %177 = arith.addf %171, %176 : vector<8x512xf32>
    %c496_i32_141 = arith.constant 496 : i32
    %178 = tpu.dynamic_rotate %139 by %c496_i32_141 dim 1 : vector<8x512xf32>, i32 -> vector<8x512xf32>
    %c48_142 = arith.constant 48 : index
    %c0_143 = arith.constant 0 : index
    %179 = vector.load %arg10[%c48_142, %c0_143] : memref<64x512xf32, #tpu.memory_space<vmem>>, vector<8x512xf32>
    %180 = arith.mulf %178, %179 : vector<8x512xf32>
    %c56_144 = arith.constant 56 : index
    %c0_145 = arith.constant 0 : index
    %181 = vector.load %arg5[%c56_144, %c0_145] : memref<72x8xf32, #tpu.memory_space<vmem>>, vector<8x8xf32>
    %cst_146 = arith.constant dense<0.000000e+00> : vector<8x512xf32>
    %182 = tpu.matmul %181, %180, %cst_146 {dimension_numbers = #tpu.dot_dimension_numbers<[1], [0], [0], [1], [0, 0, 1, 1], [], []>} : vector<8x8xf32>, vector<8x512xf32>, vector<8x512xf32> -> vector<8x512xf32>
    %183 = arith.addf %177, %182 : vector<8x512xf32>
    %c495_i32_147 = arith.constant 495 : i32
    %184 = tpu.dynamic_rotate %139 by %c495_i32_147 dim 1 : vector<8x512xf32>, i32 -> vector<8x512xf32>
    %c56_148 = arith.constant 56 : index
    %c0_149 = arith.constant 0 : index
    %185 = vector.load %arg10[%c56_148, %c0_149] : memref<64x512xf32, #tpu.memory_space<vmem>>, vector<8x512xf32>
    %186 = arith.mulf %184, %185 : vector<8x512xf32>
    %c64_150 = arith.constant 64 : index
    %c0_151 = arith.constant 0 : index
    %187 = vector.load %arg5[%c64_150, %c0_151] : memref<72x8xf32, #tpu.memory_space<vmem>>, vector<8x8xf32>
    %cst_152 = arith.constant dense<0.000000e+00> : vector<8x512xf32>
    %188 = tpu.matmul %187, %186, %cst_152 {dimension_numbers = #tpu.dot_dimension_numbers<[1], [0], [0], [1], [0, 0, 1, 1], [], []>} : vector<8x8xf32>, vector<8x512xf32>, vector<8x512xf32> -> vector<8x512xf32>
    %189 = arith.addf %183, %188 : vector<8x512xf32>
    %190 = vector.broadcast %7 : vector<8x1xf32> to vector<8x512xf32>
    %191 = arith.addf %189, %190 : vector<8x512xf32>
    %192 = vector.broadcast %3 : f32 to vector<8x512xf32>
    %193 = arith.mulf %128, %192 : vector<8x512xf32>
    %194 = arith.addf %191, %193 : vector<8x512xf32>
    %195 = arith.addf %194, %68 : vector<8x512xf32>
    %196 = vector.broadcast %4 : f32 to vector<8x512xf32>
    %197 = arith.mulf %195, %196 : vector<8x512xf32>
    %198 = arith.addf %197, %11 : vector<8x512xf32>
    %c0_153 = arith.constant 0 : index
    %c0_154 = arith.constant 0 : index
    %199 = vector.load %arg12[%c0_153, %c0_154] : memref<8x512xf32, #tpu.memory_space<vmem>>, vector<8x512xf32>
    tpu.vector_store %arg12[%c0_153, %c0_154], %198 {strides = array<i32>} : memref<8x512xf32, #tpu.memory_space<vmem>>, vector<8x512xf32>,
    return
  }
}

</mosaic_0001>

<llo_original>
// kernel: resblock_forward.1
$region0: #{resblock_forward.1}
  #allocation0 [shape = 'u32[]', space=smem, size = 0x4, offset = 0x4, fixed_abs, tag = 'smem constant byte address 0x4 - core index']
  #allocation1 [shape = 'u32[144,128]{1,0:T(1,128)}', space=vmem, size = 0x12000, scoped, tag = 'internal scratch']
  %s0 = inlined_call_operand.vmem [shape: f32[8,512], index: 0, kind: input, shape index: {}]
  %s1 = inlined_call_operand.vmem [shape: f32[72,8], index: 1, kind: input, shape index: {}]
  %s2 = inlined_call_operand.vmem [shape: f32[8,1], index: 2, kind: input, shape index: {}]
  %s3 = inlined_call_operand.vmem [shape: f32[72,8], index: 3, kind: input, shape index: {}]
  %s4 = inlined_call_operand.vmem [shape: f32[8,1], index: 4, kind: input, shape index: {}]
  %s5 = inlined_call_operand.vmem [shape: f32[72,8], index: 5, kind: input, shape index: {}]
  %s6 = inlined_call_operand.vmem [shape: f32[8,1], index: 6, kind: input, shape index: {}]
  %s7 = inlined_call_operand.vmem [shape: f32[8,1], index: 7, kind: input, shape index: {}]
  %s8 = inlined_call_operand.vmem [shape: f32[8,1], index: 8, kind: input, shape index: {}]
  %s9 = inlined_call_operand.vmem [shape: f32[8,1], index: 9, kind: input, shape index: {}]
  %s10 = inlined_call_operand.vmem [shape: f32[64,512], index: 10, kind: input, shape index: {}]
  %s11 = inlined_call_operand.vmem [shape: f32[5], index: 11, kind: input, shape index: {}]
  %s12 = inlined_call_operand.vmem [shape: f32[8,512], index: 12, kind: output, shape index: {}]
  %s13 = sld [smem:[#allocation0]]
  $region62: #{resblock_forward.1} parent=0
    _
  %s15 = ssub.s32 1, %s13
  %s16 = scalar_select 0, %s15, %s13
  $region1: #{resblock_forward.1} parent=0
    #allocation2 [shape = 'u8[512]{0}', space=smem, size = 0x200, scoped, tag = 'input window, operand 11, single buffered']
    #allocation3 [shape = 's32[1]{0}', space=sflag, size = 0x4, scoped, tag = 'scoped memory for resblock_forward.1']
    %17 = vsyncpa [#allocation3], 0
    // Predicated region
    $region2: #{resblock_forward.1} parent=1 // pred_check
      _
    $region3: #{resblock_forward.1} parent=1 // pred_check_branch
      %19 = sbr.rel (0) target = $region5
    $region4: #{resblock_forward.1} parent=1 // pred_region
      _
    $region5: #{resblock_forward.1} parent=1 // pred_fallthru
      _
    // Predicated region
    $region6: #{resblock_forward.1} parent=1 // pred_check
      _
    $region7: #{resblock_forward.1} parent=1 // pred_check_branch
      %21 = sbr.rel (0) target = $region9
    $region8: #{resblock_forward.1} parent=1 // pred_region
      _
    $region9: #{resblock_forward.1} parent=1 // pred_fallthru
      _
    // Predicated region
    $region10: #{resblock_forward.1} parent=1 // pred_check
      _
    $region11: #{resblock_forward.1} parent=1 // pred_check_branch
      %23 = sbr.rel (0) target = $region13
    $region12: #{resblock_forward.1} parent=1 // pred_region
      _
    $region13: #{resblock_forward.1} parent=1 // pred_fallthru
      _
    // Predicated region
    $region14: #{resblock_forward.1} parent=1 // pred_check
      _
    $region15: #{resblock_forward.1} parent=1 // pred_check_branch
      %25 = sbr.rel (0) target = $region17
    $region16: #{resblock_forward.1} parent=1 // pred_region
      _
    $region17: #{resblock_forward.1} parent=1 // pred_fallthru
      _
    // Predicated region
    $region18: #{resblock_forward.1} parent=1 // pred_check
      _
    $region19: #{resblock_forward.1} parent=1 // pred_check_branch
      %27 = sbr.rel (0) target = $region21
    $region20: #{resblock_forward.1} parent=1 // pred_region
      _
    $region21: #{resblock_forward.1} parent=1 // pred_fallthru
      _
    // Predicated region
    $region22: #{resblock_forward.1} parent=1 // pred_check
      _
    $region23: #{resblock_forward.1} parent=1 // pred_check_branch
      %29 = sbr.rel (0) target = $region25
    $region24: #{resblock_forward.1} parent=1 // pred_region
      _
    $region25: #{resblock_forward.1} parent=1 // pred_fallthru
      _
    // Predicated region
    $region26: #{resblock_forward.1} parent=1 // pred_check
      _
    $region27: #{resblock_forward.1} parent=1 // pred_check_branch
      %31 = sbr.rel (0) target = $region29
    $region28: #{resblock_forward.1} parent=1 // pred_region
      _
    $region29: #{resblock_forward.1} parent=1 // pred_fallthru
      _
    // Predicated region
    $region30: #{resblock_forward.1} parent=1 // pred_check
      _
    $region31: #{resblock_forward.1} parent=1 // pred_check_branch
      %33 = sbr.rel (0) target = $region33
    $region32: #{resblock_forward.1} parent=1 // pred_region
      _
    $region33: #{resblock_forward.1} parent=1 // pred_fallthru
      _
    // Predicated region
    $region34: #{resblock_forward.1} parent=1 // pred_check
      _
    $region35: #{resblock_forward.1} parent=1 // pred_check_branch
      %35 = sbr.rel (0) target = $region37
    $region36: #{resblock_forward.1} parent=1 // pred_region
      _
    $region37: #{resblock_forward.1} parent=1 // pred_fallthru
      _
    // Predicated region
    $region38: #{resblock_forward.1} parent=1 // pred_check
      _
    $region39: #{resblock_forward.1} parent=1 // pred_check_branch
      %37 = sbr.rel (0) target = $region41
    $region40: #{resblock_forward.1} parent=1 // pred_region
      _
    $region41: #{resblock_forward.1} parent=1 // pred_fallthru
      _
    // Predicated region
    $region42: #{resblock_forward.1} parent=1 // pred_check
      _
    $region43: #{resblock_forward.1} parent=1 // pred_check_branch
      %39 = sbr.rel (0) target = $region45
    $region44: #{resblock_forward.1} parent=1 // pred_region
      _
    $region45: #{resblock_forward.1} parent=1 // pred_fallthru
      _
    // Predicated region
    $region46: #{resblock_forward.1} parent=1 // pred_check
      _
    $region47: #{resblock_forward.1} parent=1 // pred_check_branch
      %41 = sbr.rel (0) target = $region49
    $region48: #{resblock_forward.1} parent=1 // pred_region
      %s43 = ssub.s32 16, 16
      %44 = vsyncadd [#allocation3], %s43
      %s46 = sshll.u32 %s11, 4
      %s47 = int_to_ptr.vmem [resolvable:$true] %s46
      %49 = dma.vmem_to_smem %s47, 16, [#allocation2], [#allocation3]
    $region49: #{resblock_forward.1} parent=1 // pred_fallthru
      _
    // Predicated region
    $region50: #{resblock_forward.1} parent=1 // pred_check
      _
    $region51: #{resblock_forward.1} parent=1 // pred_check_branch
      %51 = sbr.rel (0) target = $region53
    $region52: #{resblock_forward.1} parent=1 // pred_region
      %52 = dma.done [#allocation3], 16
    $region53: #{resblock_forward.1} parent=1 // pred_fallthru
      _
    %53 = sfence
    %s54 = sld [smem:[#allocation2]]
    %s55 = sld [smem:[#allocation2 + $0x1]]
    %s56 = sld [smem:[#allocation2 + $0x2]]
    %s57 = sld [smem:[#allocation2 + $0x3]]
    %s58 = sld [smem:[#allocation2 + $0x4]]
    %v59 = vld [vmem:[%s2] sm:$0xff]
    %v60 = vld [vmem:[%s4] sm:$0xff]
    %v61 = vld [vmem:[%s6] sm:$0xff]
    %v62 = vld [vmem:[%s7] sm:$0xff]
    %v63 = vld [vmem:[%s8] sm:$0xff]
    %v64 = vld [vmem:[%s9] sm:$0xff]
    %v65 = vld [vmem:[%s0] sm:$0xff]
    %v66 = vld [vmem:[%s0 + $0x8] sm:$0xff]
    %v67 = vld [vmem:[%s0 + $0x10] sm:$0xff]
    %v68 = vld [vmem:[%s0 + $0x18] sm:$0xff]
    %vm69 = vcmp.gt.f32.partialorder %v65, 0.0
    %vm70 = vcmp.gt.f32.partialorder %v66, 0.0
    %vm71 = vcmp.gt.f32.partialorder %v67, 0.0
    %vm72 = vcmp.gt.f32.partialorder %v68, 0.0
    %74 = vset.pattern.permute.xlu0 0
    %75 = vperm.xlu0 %74, %v62
    %v76 = vpop.permute.xlu0 %75
    %v78 = vmul.f32 %v76, %v65
    %v79 = vmul.f32 %v76, %v66
    %v80 = vmul.f32 %v76, %v67
    %v81 = vmul.f32 %v76, %v68
    %v82 = vsel %vm69, %v65, %v78
    %v83 = vsel %vm70, %v66, %v79
    %v84 = vsel %vm71, %v67, %v80
    %v85 = vsel %vm72, %v68, %v81
    %86 = vrot.lane.b32.xlu0 %v82, 17
    %v87 = vpop.permute.xlu0 %86
    %88 = vrot.lane.b32.xlu0 %v83, 17
    %v89 = vpop.permute.xlu0 %88
    %90 = vrot.lane.b32.xlu0 %v84, 17
    %v91 = vpop.permute.xlu0 %90
    %92 = vrot.lane.b32.xlu0 %v85, 17
    %v93 = vpop.permute.xlu0 %92
    %v94 = vlaneseq
    %v95 = vand.u32 %v94, 127
    %vm96 = vcmp.lt.s32.totalorder %v95, 17
    %v97 = vsel %vm96, %v91, %v93
    %v98 = vsel %vm96, %v89, %v91
    %v99 = vsel %vm96, %v87, %v89
    %v100 = vsel %vm96, %v93, %v87
    %v101 = vld [vmem:[%s10] sm:$0xff]
    %v102 = vld [vmem:[%s10 + $0x8] sm:$0xff]
    %v103 = vld [vmem:[%s10 + $0x10] sm:$0xff]
    %v104 = vld [vmem:[%s10 + $0x18] sm:$0xff]
    %v105 = vmul.f32 %v100, %v101
    %v106 = vmul.f32 %v99, %v102
    %v107 = vmul.f32 %v98, %v103
    %v108 = vmul.f32 %v97, %v104
    %v109 = vld [vmem:[%s1] sm:$0xff]
    %110 = vrot.lane.b32.xlu0 %v82, 16
    %v111 = vpop.permute.xlu0 %110
    %112 = vrot.lane.b32.xlu0 %v83, 16
    %v113 = vpop.permute.xlu0 %112
    %114 = vrot.lane.b32.xlu0 %v84, 16
    %v115 = vpop.permute.xlu0 %114
    %116 = vrot.lane.b32.xlu0 %v85, 16
    %v117 = vpop.permute.xlu0 %116
    %vm118 = vcmp.lt.s32.totalorder %v95, 16
    %v119 = vsel %vm118, %v115, %v117
    %v120 = vsel %vm118, %v113, %v115
    %v121 = vsel %vm118, %v111, %v113
    %v122 = vsel %vm118, %v117, %v111
    %v123 = vld [vmem:[%s10 + $0x20] sm:$0xff]
    %v124 = vld [vmem:[%s10 + $0x28] sm:$0xff]
    %v125 = vld [vmem:[%s10 + $0x30] sm:$0xff]
    %v126 = vld [vmem:[%s10 + $0x38] sm:$0xff]
    %v127 = vmul.f32 %v122, %v123
    %v128 = vmul.f32 %v121, %v124
    %v129 = vmul.f32 %v120, %v125
    %v130 = vmul.f32 %v119, %v126
    %v131 = vld [vmem:[%s1 + $0x8] sm:$0xff]
    %vm132 = vcmask 64512
    %v134 = vsel %vm132, %v131, 0
    %136 = vmatprep.subr.mxu0 %v128
    %137 = vmatpush1.msra.mxu0 %v127
    %138 = vmatprep.subr.mxu0 0.0
    %139 = vmatpush1.msra.mxu0 0.0
    %140 = vmatprep.subr.mxu0 0.0
    %141 = vmatpush1.msra.mxu0 0.0
    %142 = vmatprep.subr.mxu0 0.0
    %143 = vmatpush1.msra.mxu0 0.0
    %144 = vmatprep.subr.mxu0 0.0
    %145 = vmatpush1.msra.mxu0 0.0
    %146 = vmatprep.subr.mxu0 0.0
    %147 = vmatpush1.msra.mxu0 0.0
    %148 = vmatprep.subr.mxu0 0.0
    %149 = vmatpush1.msra.mxu0 0.0
    %150 = vmatprep.subr.mxu0 0.0
    %151 = vmatpush1.msra.mxu0 0.0
    %152 = vmatprep.subr.mxu0 0.0
    %153 = vmatpush1.msra.mxu0 0.0
    %154 = vmatprep.subr.mxu0 0.0
    %155 = vmatpush1.msra.mxu0 0.0
    %156 = vmatprep.subr.mxu0 0.0
    %157 = vmatpush1.msra.mxu0 0.0
    %158 = vmatprep.subr.mxu0 0.0
    %159 = vmatpush1.msra.mxu0 0.0
    %160 = vmatprep.subr.mxu0 0.0
    %161 = vmatpush1.msra.mxu0 0.0
    %162 = vmatprep.subr.mxu0 0.0
    %163 = vmatpush1.msra.mxu0 0.0
    %164 = vmatprep.subr.mxu0 0.0
    %165 = vmatpush1.msra.mxu0 0.0
    %166 = vmatprep.subr.mxu0 0.0
    %167 = vmatpush1.msra.mxu0 0.0
    %168 = vmatprep.subr.mxu0 0.0
    %169 = vmatpush1.msra.mxu0 0.0
    %170 = vmatprep.subr.mxu0 0.0
    %171 = vmatpush1.msra.mxu0 0.0
    %172 = vmatprep.subr.mxu0 0.0
    %173 = vmatpush1.msra.mxu0 0.0
    %174 = vmatprep.subr.mxu0 0.0
    %175 = vmatpush1.msra.mxu0 0.0
    %176 = vmatprep.subr.mxu0 0.0
    %177 = vmatpush1.msra.mxu0 0.0
    %178 = vmatprep.subr.mxu0 0.0
    %179 = vmatpush1.msra.mxu0 0.0
    %180 = vmatprep.subr.mxu0 0.0
    %181 = vmatpush1.msra.mxu0 0.0
    %182 = vmatprep.subr.mxu0 0.0
    %183 = vmatpush1.msra.mxu0 0.0
    %184 = vmatprep.subr.mxu0 0.0
    %185 = vmatpush1.msra.mxu0 0.0
    %186 = vmatprep.subr.mxu0 0.0
    %187 = vmatpush1.msra.mxu0 0.0
    %188 = vmatprep.subr.mxu0 0.0
    %189 = vmatpush1.msra.mxu0 0.0
    %190 = vmatprep.subr.mxu0 0.0
    %191 = vmatpush1.msra.mxu0 0.0
    %192 = vmatprep.subr.mxu0 0.0
    %193 = vmatpush1.msra.mxu0 0.0
    %194 = vmatprep.subr.mxu0 0.0
    %195 = vmatpush1.msra.mxu0 0.0
    %196 = vmatprep.subr.mxu0 0.0
    %197 = vmatpush1.msra.mxu0 0.0
    %198 = vmatprep.subr.mxu0 0.0
    %199 = vmatpush1.msra.mxu0 0.0
    %200 = vmatprep.mubr.f32.mxu0 0.0
    %201 = vmatmul.mubr.f32.gmra.mrb[0].mxu0 %v134
    %v202 = vpop.f32.mrb[0].mxu0
    %v203 = vadd.f32 0.0, %v202
    %v204 = vpop.f32.mrb[0].mxu0
    %v205 = vadd.f32 0.0, %v204
    %206 = vdwg.mxu0
    %207 = vmatprep.subr.mxu0 %v130
    %208 = vmatpush1.msra.mxu0 %v129
    %209 = vmatprep.subr.mxu0 0.0
    %210 = vmatpush1.msra.mxu0 0.0
    %211 = vmatprep.subr.mxu0 0.0
    %212 = vmatpush1.msra.mxu0 0.0
    %213 = vmatprep.subr.mxu0 0.0
    %214 = vmatpush1.msra.mxu0 0.0
    %215 = vmatprep.subr.mxu0 0.0
    %216 = vmatpush1.msra.mxu0 0.0
    %217 = vmatprep.subr.mxu0 0.0
    %218 = vmatpush1.msra.mxu0 0.0
    %219 = vmatprep.subr.mxu0 0.0
    %220 = vmatpush1.msra.mxu0 0.0
    %221 = vmatprep.subr.mxu0 0.0
    %222 = vmatpush1.msra.mxu0 0.0
    %223 = vmatprep.subr.mxu0 0.0
    %224 = vmatpush1.msra.mxu0 0.0
    %225 = vmatprep.subr.mxu0 0.0
    %226 = vmatpush1.msra.mxu0 0.0
    %227 = vmatprep.subr.mxu0 0.0
    %228 = vmatpush1.msra.mxu0 0.0
    %229 = vmatprep.subr.mxu0 0.0
    %230 = vmatpush1.msra.mxu0 0.0
    %231 = vmatprep.subr.mxu0 0.0
    %232 = vmatpush1.msra.mxu0 0.0
    %233 = vmatprep.subr.mxu0 0.0
    %234 = vmatpush1.msra.mxu0 0.0
    %235 = vmatprep.subr.mxu0 0.0
    %236 = vmatpush1.msra.mxu0 0.0
    %237 = vmatprep.subr.mxu0 0.0
    %238 = vmatpush1.msra.mxu0 0.0
    %239 = vmatprep.subr.mxu0 0.0
    %240 = vmatpush1.msra.mxu0 0.0
    %241 = vmatprep.subr.mxu0 0.0
    %242 = vmatpush1.msra.mxu0 0.0
    %243 = vmatprep.subr.mxu0 0.0
    %244 = vmatpush1.msra.mxu0 0.0
    %245 = vmatprep.subr.mxu0 0.0
    %246 = vmatpush1.msra.mxu0 0.0
    %247 = vmatprep.subr.mxu0 0.0
    %248 = vmatpush1.msra.mxu0 0.0
    %249 = vmatprep.subr.mxu0 0.0
    %250 = vmatpush1.msra.mxu0 0.0
    %251 = vmatprep.subr.mxu0 0.0
    %252 = vmatpush1.msra.mxu0 0.0
    %253 = vmatprep.subr.mxu0 0.0
    %254 = vmatpush1.msra.mxu0 0.0
    %255 = vmatprep.subr.mxu0 0.0
    %256 = vmatpush1.msra.mxu0 0.0
    %257 = vmatprep.subr.mxu0 0.0
    %258 = vmatpush1.msra.mxu0 0.0
    %259 = vmatprep.subr.mxu0 0.0
    %260 = vmatpush1.msra.mxu0 0.0
    %261 = vmatprep.subr.mxu0 0.0
    %262 = vmatpush1.msra.mxu0 0.0
    %263 = vmatprep.subr.mxu0 0.0
    %264 = vmatpush1.msra.mxu0 0.0
    %265 = vmatprep.subr.mxu0 0.0
    %266 = vmatpush1.msra.mxu0 0.0
    %267 = vmatprep.subr.mxu0 0.0
    %268 = vmatpush1.msra.mxu0 0.0
    %269 = vmatprep.subr.mxu0 0.0
    %270 = vmatpush1.msra.mxu0 0.0
    %271 = vmatprep.mubr.f32.mxu0 0.0
    %272 = vmatmul.mubr.f32.gmra.mrb[0].mxu0 %v134
    %v273 = vpop.f32.mrb[0].mxu0
    %v274 = vadd.f32 0.0, %v273
    %v275 = vpop.f32.mrb[0].mxu0
    %v276 = vadd.f32 0.0, %v275
    %277 = vdwg.mxu0
    %v279 = vsel %vm132, %v109, 0
    %281 = vmatprep.subr.mxu0 %v106
    %282 = vmatpush1.msra.mxu0 %v105
    %283 = vmatprep.subr.mxu0 0.0
    %284 = vmatpush1.msra.mxu0 0.0
    %285 = vmatprep.subr.mxu0 0.0
    %286 = vmatpush1.msra.mxu0 0.0
    %287 = vmatprep.subr.mxu0 0.0
    %288 = vmatpush1.msra.mxu0 0.0
    %289 = vmatprep.subr.mxu0 0.0
    %290 = vmatpush1.msra.mxu0 0.0
    %291 = vmatprep.subr.mxu0 0.0
    %292 = vmatpush1.msra.mxu0 0.0
    %293 = vmatprep.subr.mxu0 0.0
    %294 = vmatpush1.msra.mxu0 0.0
    %295 = vmatprep.subr.mxu0 0.0
    %296 = vmatpush1.msra.mxu0 0.0
    %297 = vmatprep.subr.mxu0 0.0
    %298 = vmatpush1.msra.mxu0 0.0
    %299 = vmatprep.subr.mxu0 0.0
    %300 = vmatpush1.msra.mxu0 0.0
    %301 = vmatprep.subr.mxu0 0.0
    %302 = vmatpush1.msra.mxu0 0.0
    %303 = vmatprep.subr.mxu0 0.0
    %304 = vmatpush1.msra.mxu0 0.0
    %305 = vmatprep.subr.mxu0 0.0
    %306 = vmatpush1.msra.mxu0 0.0
    %307 = vmatprep.subr.mxu0 0.0
    %308 = vmatpush1.msra.mxu0 0.0
    %309 = vmatprep.subr.mxu0 0.0
    %310 = vmatpush1.msra.mxu0 0.0
    %311 = vmatprep.subr.mxu0 0.0
    %312 = vmatpush1.msra.mxu0 0.0
    %313 = vmatprep.subr.mxu0 0.0
    %314 = vmatpush1.msra.mxu0 0.0
    %315 = vmatprep.subr.mxu0 0.0
    %316 = vmatpush1.msra.mxu0 0.0
    %317 = vmatprep.subr.mxu0 0.0
    %318 = vmatpush1.msra.mxu0 0.0
    %319 = vmatprep.subr.mxu0 0.0
    %320 = vmatpush1.msra.mxu0 0.0
    %321 = vmatprep.subr.mxu0 0.0
    %322 = vmatpush1.msra.mxu0 0.0
    %323 = vmatprep.subr.mxu0 0.0
    %324 = vmatpush1.msra.mxu0 0.0
    %325 = vmatprep.subr.mxu0 0.0
    %326 = vmatpush1.msra.mxu0 0.0
    %327 = vmatprep.subr.mxu0 0.0
    %328 = vmatpush1.msra.mxu0 0.0
    %329 = vmatprep.subr.mxu0 0.0
    %330 = vmatpush1.msra.mxu0 0.0
    %331 = vmatprep.subr.mxu0 0.0
    %332 = vmatpush1.msra.mxu0 0.0
    %333 = vmatprep.subr.mxu0 0.0
    %334 = vmatpush1.msra.mxu0 0.0
    %335 = vmatprep.subr.mxu0 0.0
    %336 = vmatpush1.msra.mxu0 0.0
    %337 = vmatprep.subr.mxu0 0.0
    %338 = vmatpush1.msra.mxu0 0.0
    %339 = vmatprep.subr.mxu0 0.0
    %340 = vmatpush1.msra.mxu0 0.0
    %341 = vmatprep.subr.mxu0 0.0
    %342 = vmatpush1.msra.mxu0 0.0
    %343 = vmatprep.subr.mxu0 0.0
    %344 = vmatpush1.msra.mxu0 0.0
    %345 = vmatprep.mubr.f32.mxu0 0.0
    %346 = vmatmul.mubr.f32.gmra.mrb[0].mxu0 %v279
    %v347 = vpop.f32.mrb[0].mxu0
    %v348 = vadd.f32 %v203, %v347
    %v349 = vpop.f32.mrb[0].mxu0
    %v350 = vadd.f32 %v205, %v349
    %351 = vdwg.mxu0
    %352 = vmatprep.subr.mxu0 %v108
    %353 = vmatpush1.msra.mxu0 %v107
    %354 = vmatprep.subr.mxu0 0.0
    %355 = vmatpush1.msra.mxu0 0.0
    %356 = vmatprep.subr.mxu0 0.0
    %357 = vmatpush1.msra.mxu0 0.0
    %358 = vmatprep.subr.mxu0 0.0
    %359 = vmatpush1.msra.mxu0 0.0
    %360 = vmatprep.subr.mxu0 0.0
    %361 = vmatpush1.msra.mxu0 0.0
    %362 = vmatprep.subr.mxu0 0.0
    %363 = vmatpush1.msra.mxu0 0.0
    %364 = vmatprep.subr.mxu0 0.0
    %365 = vmatpush1.msra.mxu0 0.0
    %366 = vmatprep.subr.mxu0 0.0
    %367 = vmatpush1.msra.mxu0 0.0
    %368 = vmatprep.subr.mxu0 0.0
    %369 = vmatpush1.msra.mxu0 0.0
    %370 = vmatprep.subr.mxu0 0.0
    %371 = vmatpush1.msra.mxu0 0.0
    %372 = vmatprep.subr.mxu0 0.0
    %373 = vmatpush1.msra.mxu0 0.0
    %374 = vmatprep.subr.mxu0 0.0
    %375 = vmatpush1.msra.mxu0 0.0
    %376 = vmatprep.subr.mxu0 0.0
    %377 = vmatpush1.msra.mxu0 0.0
    %378 = vmatprep.subr.mxu0 0.0
    %379 = vmatpush1.msra.mxu0 0.0
    %380 = vmatprep.subr.mxu0 0.0
    %381 = vmatpush1.msra.mxu0 0.0
    %382 = vmatprep.subr.mxu0 0.0
    %383 = vmatpush1.msra.mxu0 0.0
    %384 = vmatprep.subr.mxu0 0.0
    %385 = vmatpush1.msra.mxu0 0.0
    %386 = vmatprep.subr.mxu0 0.0
    %387 = vmatpush1.msra.mxu0 0.0
    %388 = vmatprep.subr.mxu0 0.0
    %389 = vmatpush1.msra.mxu0 0.0
    %390 = vmatprep.subr.mxu0 0.0
    %391 = vmatpush1.msra.mxu0 0.0
    %392 = vmatprep.subr.mxu0 0.0
    %393 = vmatpush1.msra.mxu0 0.0
    %394 = vmatprep.subr.mxu0 0.0
    %395 = vmatpush1.msra.mxu0 0.0
    %396 = vmatprep.subr.mxu0 0.0
    %397 = vmatpush1.msra.mxu0 0.0
    %398 = vmatprep.subr.mxu0 0.0
    %399 = vmatpush1.msra.mxu0 0.0
    %400 = vmatprep.subr.mxu0 0.0
    %401 = vmatpush1.msra.mxu0 0.0
    %402 = vmatprep.subr.mxu0 0.0
    %403 = vmatpush1.msra.mxu0 0.0
    %404 = vmatprep.subr.mxu0 0.0
    %405 = vmatpush1.msra.mxu0 0.0
    %406 = vmatprep.subr.mxu0 0.0
    %407 = vmatpush1.msra.mxu0 0.0
    %408 = vmatprep.subr.mxu0 0.0
    %409 = vmatpush1.msra.mxu0 0.0
    %410 = vmatprep.subr.mxu0 0.0
    %411 = vmatpush1.msra.mxu0 0.0
    %412 = vmatprep.subr.mxu0 0.0
    %413 = vmatpush1.msra.mxu0 0.0
    %414 = vmatprep.subr.mxu0 0.0
    %415 = vmatpush1.msra.mxu0 0.0
    %416 = vmatprep.mubr.f32.mxu0 0.0
    %417 = vmatmul.mubr.f32.gmra.mrb[0].mxu0 %v279
    %v418 = vpop.f32.mrb[0].mxu0
    %v419 = vadd.f32 %v274, %v418
    %v420 = vpop.f32.mrb[0].mxu0
    %v421 = vadd.f32 %v276, %v420
    %422 = vdwg.mxu0
    %423 = vrot.lane.b32.xlu0 %v82, 15
    %v424 = vpop.permute.xlu0 %423
    %425 = vrot.lane.b32.xlu0 %v83, 15
    %v426 = vpop.permute.xlu0 %425
    %427 = vrot.lane.b32.xlu0 %v84, 15
    %v428 = vpop.permute.xlu0 %427
    %429 = vrot.lane.b32.xlu0 %v85, 15
    %v430 = vpop.permute.xlu0 %429
    %vm431 = vcmp.lt.s32.totalorder %v95, 15
    %v432 = vsel %vm431, %v428, %v430
    %v433 = vsel %vm431, %v426, %v428
    %v434 = vsel %vm431, %v424, %v426
    %v435 = vsel %vm431, %v430, %v424
    %v436 = vld [vmem:[%s10 + $0x40] sm:$0xff]
    %v437 = vld [vmem:[%s10 + $0x48] sm:$0xff]
    %v438 = vld [vmem:[%s10 + $0x50] sm:$0xff]
    %v439 = vld [vmem:[%s10 + $0x58] sm:$0xff]
    %v440 = vmul.f32 %v435, %v436
    %v441 = vmul.f32 %v434, %v437
    %v442 = vmul.f32 %v433, %v438
    %v443 = vmul.f32 %v432, %v439
    %v444 = vld [vmem:[%s1 + $0x10] sm:$0xff]
    %v446 = vsel %vm132, %v444, 0
    %448 = vmatprep.subr.mxu0 %v441
    %449 = vmatpush1.msra.mxu0 %v440
    %450 = vmatprep.subr.mxu0 0.0
    %451 = vmatpush1.msra.mxu0 0.0
    %452 = vmatprep.subr.mxu0 0.0
    %453 = vmatpush1.msra.mxu0 0.0
    %454 = vmatprep.subr.mxu0 0.0
    %455 = vmatpush1.msra.mxu0 0.0
    %456 = vmatprep.subr.mxu0 0.0
    %457 = vmatpush1.msra.mxu0 0.0
    %458 = vmatprep.subr.mxu0 0.0
    %459 = vmatpush1.msra.mxu0 0.0
    %460 = vmatprep.subr.mxu0 0.0
    %461 = vmatpush1.msra.mxu0 0.0
    %462 = vmatprep.subr.mxu0 0.0
    %463 = vmatpush1.msra.mxu0 0.0
    %464 = vmatprep.subr.mxu0 0.0
    %465 = vmatpush1.msra.mxu0 0.0
    %466 = vmatprep.subr.mxu0 0.0
    %467 = vmatpush1.msra.mxu0 0.0
    %468 = vmatprep.subr.mxu0 0.0
    %469 = vmatpush1.msra.mxu0 0.0
    %470 = vmatprep.subr.mxu0 0.0
    %471 = vmatpush1.msra.mxu0 0.0
    %472 = vmatprep.subr.mxu0 0.0
    %473 = vmatpush1.msra.mxu0 0.0
    %474 = vmatprep.subr.mxu0 0.0
    %475 = vmatpush1.msra.mxu0 0.0
    %476 = vmatprep.subr.mxu0 0.0
    %477 = vmatpush1.msra.mxu0 0.0
    %478 = vmatprep.subr.mxu0 0.0
    %479 = vmatpush1.msra.mxu0 0.0
    %480 = vmatprep.subr.mxu0 0.0
    %481 = vmatpush1.msra.mxu0 0.0
    %482 = vmatprep.subr.mxu0 0.0
    %483 = vmatpush1.msra.mxu0 0.0
    %484 = vmatprep.subr.mxu0 0.0
    %485 = vmatpush1.msra.mxu0 0.0
    %486 = vmatprep.subr.mxu0 0.0
    %487 = vmatpush1.msra.mxu0 0.0
    %488 = vmatprep.subr.mxu0 0.0
    %489 = vmatpush1.msra.mxu0 0.0
    %490 = vmatprep.subr.mxu0 0.0
    %491 = vmatpush1.msra.mxu0 0.0
    %492 = vmatprep.subr.mxu0 0.0
    %493 = vmatpush1.msra.mxu0 0.0
    %494 = vmatprep.subr.mxu0 0.0
    %495 = vmatpush1.msra.mxu0 0.0
    %496 = vmatprep.subr.mxu0 0.0
    %497 = vmatpush1.msra.mxu0 0.0
    %498 = vmatprep.subr.mxu0 0.0
    %499 = vmatpush1.msra.mxu0 0.0
    %500 = vmatprep.subr.mxu0 0.0
    %501 = vmatpush1.msra.mxu0 0.0
    %502 = vmatprep.subr.mxu0 0.0
    %503 = vmatpush1.msra.mxu0 0.0
    %504 = vmatprep.subr.mxu0 0.0
    %505 = vmatpush1.msra.mxu0 0.0
    %506 = vmatprep.subr.mxu0 0.0
    %507 = vmatpush1.msra.mxu0 0.0
    %508 = vmatprep.subr.mxu0 0.0
    %509 = vmatpush1.msra.mxu0 0.0
    %510 = vmatprep.subr.mxu0 0.0
    %511 = vmatpush1.msra.mxu0 0.0
    %512 = vmatprep.mubr.f32.mxu0 0.0
    %513 = vmatmul.mubr.f32.gmra.mrb[0].mxu0 %v446
    %v514 = vpop.f32.mrb[0].mxu0
    %v515 = vadd.f32 0.0, %v514
    %v516 = vpop.f32.mrb[0].mxu0
    %v517 = vadd.f32 0.0, %v516
    %518 = vdwg.mxu0
    %519 = vmatprep.subr.mxu0 %v443
    %520 = vmatpush1.msra.mxu0 %v442
    %521 = vmatprep.subr.mxu0 0.0
    %522 = vmatpush1.msra.mxu0 0.0
    %523 = vmatprep.subr.mxu0 0.0
    %524 = vmatpush1.msra.mxu0 0.0
    %525 = vmatprep.subr.mxu0 0.0
    %526 = vmatpush1.msra.mxu0 0.0
    %527 = vmatprep.subr.mxu0 0.0
    %528 = vmatpush1.msra.mxu0 0.0
    %529 = vmatprep.subr.mxu0 0.0
    %530 = vmatpush1.msra.mxu0 0.0
    %531 = vmatprep.subr.mxu0 0.0
    %532 = vmatpush1.msra.mxu0 0.0
    %533 = vmatprep.subr.mxu0 0.0
    %534 = vmatpush1.msra.mxu0 0.0
    %535 = vmatprep.subr.mxu0 0.0
    %536 = vmatpush1.msra.mxu0 0.0
    %537 = vmatprep.subr.mxu0 0.0
    %538 = vmatpush1.msra.mxu0 0.0
    %539 = vmatprep.subr.mxu0 0.0
    %540 = vmatpush1.msra.mxu0 0.0
    %541 = vmatprep.subr.mxu0 0.0
    %542 = vmatpush1.msra.mxu0 0.0
    %543 = vmatprep.subr.mxu0 0.0
    %544 = vmatpush1.msra.mxu0 0.0
    %545 = vmatprep.subr.mxu0 0.0
    %546 = vmatpush1.msra.mxu0 0.0
    %547 = vmatprep.subr.mxu0 0.0
    %548 = vmatpush1.msra.mxu0 0.0
    %549 = vmatprep.subr.mxu0 0.0
    %550 = vmatpush1.msra.mxu0 0.0
    %551 = vmatprep.subr.mxu0 0.0
    %552 = vmatpush1.msra.mxu0 0.0
    %553 = vmatprep.subr.mxu0 0.0
    %554 = vmatpush1.msra.mxu0 0.0
    %555 = vmatprep.subr.mxu0 0.0
    %556 = vmatpush1.msra.mxu0 0.0
    %557 = vmatprep.subr.mxu0 0.0
    %558 = vmatpush1.msra.mxu0 0.0
    %559 = vmatprep.subr.mxu0 0.0
    %560 = vmatpush1.msra.mxu0 0.0
    %561 = vmatprep.subr.mxu0 0.0
    %562 = vmatpush1.msra.mxu0 0.0
    %563 = vmatprep.subr.mxu0 0.0
    %564 = vmatpush1.msra.mxu0 0.0
    %565 = vmatprep.subr.mxu0 0.0
    %566 = vmatpush1.msra.mxu0 0.0
    %567 = vmatprep.subr.mxu0 0.0
    %568 = vmatpush1.msra.mxu0 0.0
    %569 = vmatprep.subr.mxu0 0.0
    %570 = vmatpush1.msra.mxu0 0.0
    %571 = vmatprep.subr.mxu0 0.0
    %572 = vmatpush1.msra.mxu0 0.0
    %573 = vmatprep.subr.mxu0 0.0
    %574 = vmatpush1.msra.mxu0 0.0
    %575 = vmatprep.subr.mxu0 0.0
    %576 = vmatpush1.msra.mxu0 0.0
    %577 = vmatprep.subr.mxu0 0.0
    %578 = vmatpush1.msra.mxu0 0.0
    %579 = vmatprep.subr.mxu0 0.0
    %580 = vmatpush1.msra.mxu0 0.0
    %581 = vmatprep.subr.mxu0 0.0
    %582 = vmatpush1.msra.mxu0 0.0
    %583 = vmatprep.mubr.f32.mxu0 0.0
    %584 = vmatmul.mubr.f32.gmra.mrb[0].mxu0 %v446
    %v585 = vpop.f32.mrb[0].mxu0
    %v586 = vadd.f32 0.0, %v585
    %v587 = vpop.f32.mrb[0].mxu0
    %v588 = vadd.f32 0.0, %v587
    %589 = vdwg.mxu0
    %v590 = vadd.f32 %v348, %v515
    %v591 = vadd.f32 %v350, %v517
    %v592 = vadd.f32 %v419, %v586
    %v593 = vadd.f32 %v421, %v588
    %594 = vrot.lane.b32.xlu0 %v82, 1
    %v595 = vpop.permute.xlu0 %594
    %596 = vrot.lane.b32.xlu0 %v83, 1
    %v597 = vpop.permute.xlu0 %596
    %598 = vrot.lane.b32.xlu0 %v84, 1
    %v599 = vpop.permute.xlu0 %598
    %600 = vrot.lane.b32.xlu0 %v85, 1
    %v601 = vpop.permute.xlu0 %600
    %vm602 = vcmp.lt.s32.totalorder %v95, 1
    %v603 = vsel %vm602, %v599, %v601
    %v604 = vsel %vm602, %v597, %v599
    %v605 = vsel %vm602, %v595, %v597
    %v606 = vsel %vm602, %v601, %v595
    %v607 = vld [vmem:[%s10 + $0x60] sm:$0xff]
    %v608 = vld [vmem:[%s10 + $0x68] sm:$0xff]
    %v609 = vld [vmem:[%s10 + $0x70] sm:$0xff]
    %v610 = vld [vmem:[%s10 + $0x78] sm:$0xff]
    %v611 = vmul.f32 %v606, %v607
    %v612 = vmul.f32 %v605, %v608
    %v613 = vmul.f32 %v604, %v609
    %v614 = vmul.f32 %v603, %v610
    %v615 = vld [vmem:[%s1 + $0x18] sm:$0xff]
    %v617 = vsel %vm132, %v615, 0
    %619 = vmatprep.subr.mxu0 %v612
    %620 = vmatpush1.msra.mxu0 %v611
    %621 = vmatprep.subr.mxu0 0.0
    %622 = vmatpush1.msra.mxu0 0.0
    %623 = vmatprep.subr.mxu0 0.0
    %624 = vmatpush1.msra.mxu0 0.0
    %625 = vmatprep.subr.mxu0 0.0
    %626 = vmatpush1.msra.mxu0 0.0
    %627 = vmatprep.subr.mxu0 0.0
    %628 = vmatpush1.msra.mxu0 0.0
    %629 = vmatprep.subr.mxu0 0.0
    %630 = vmatpush1.msra.mxu0 0.0
    %631 = vmatprep.subr.mxu0 0.0
    %632 = vmatpush1.msra.mxu0 0.0
    %633 = vmatprep.subr.mxu0 0.0
    %634 = vmatpush1.msra.mxu0 0.0
    %635 = vmatprep.subr.mxu0 0.0
    %636 = vmatpush1.msra.mxu0 0.0
    %637 = vmatprep.subr.mxu0 0.0
    %638 = vmatpush1.msra.mxu0 0.0
    %639 = vmatprep.subr.mxu0 0.0
    %640 = vmatpush1.msra.mxu0 0.0
    %641 = vmatprep.subr.mxu0 0.0
    %642 = vmatpush1.msra.mxu0 0.0
    %643 = vmatprep.subr.mxu0 0.0
    %644 = vmatpush1.msra.mxu0 0.0
    %645 = vmatprep.subr.mxu0 0.0
    %646 = vmatpush1.msra.mxu0 0.0
    %647 = vmatprep.subr.mxu0 0.0
    %648 = vmatpush1.msra.mxu0 0.0
    %649 = vmatprep.subr.mxu0 0.0
    %650 = vmatpush1.msra.mxu0 0.0
    %651 = vmatprep.subr.mxu0 0.0
    %652 = vmatpush1.msra.mxu0 0.0
    %653 = vmatprep.subr.mxu0 0.0
    %654 = vmatpush1.msra.mxu0 0.0
    %655 = vmatprep.subr.mxu0 0.0
    %656 = vmatpush1.msra.mxu0 0.0
    %657 = vmatprep.subr.mxu0 0.0
    %658 = vmatpush1.msra.mxu0 0.0
    %659 = vmatprep.subr.mxu0 0.0
    %660 = vmatpush1.msra.mxu0 0.0
    %661 = vmatprep.subr.mxu0 0.0
    %662 = vmatpush1.msra.mxu0 0.0
    %663 = vmatprep.subr.mxu0 0.0
    %664 = vmatpush1.msra.mxu0 0.0
    %665 = vmatprep.subr.mxu0 0.0
    %666 = vmatpush1.msra.mxu0 0.0
    %667 = vmatprep.subr.mxu0 0.0
    %668 = vmatpush1.msra.mxu0 0.0
    %669 = vmatprep.subr.mxu0 0.0
    %670 = vmatpush1.msra.mxu0 0.0
    %671 = vmatprep.subr.mxu0 0.0
    %672 = vmatpush1.msra.mxu0 0.0
    %673 = vmatprep.subr.mxu0 0.0
    %674 = vmatpush1.msra.mxu0 0.0
    %675 = vmatprep.subr.mxu0 0.0
    %676 = vmatpush1.msra.mxu0 0.0
    %677 = vmatprep.subr.mxu0 0.0
    %678 = vmatpush1.msra.mxu0 0.0
    %679 = vmatprep.subr.mxu0 0.0
    %680 = vmatpush1.msra.mxu0 0.0
    %681 = vmatprep.subr.mxu0 0.0
    %682 = vmatpush1.msra.mxu0 0.0
    %683 = vmatprep.mubr.f32.mxu0 0.0
    %684 = vmatmul.mubr.f32.gmra.mrb[0].mxu0 %v617
    %v685 = vpop.f32.mrb[0].mxu0
    %v686 = vadd.f32 0.0, %v685
    %v687 = vpop.f32.mrb[0].mxu0
    %v688 = vadd.f32 0.0, %v687
    %689 = vdwg.mxu0
    %690 = vmatprep.subr.mxu0 %v614
    %691 = vmatpush1.msra.mxu0 %v613
    %692 = vmatprep.subr.mxu0 0.0
    %693 = vmatpush1.msra.mxu0 0.0
    %694 = vmatprep.subr.mxu0 0.0
    %695 = vmatpush1.msra.mxu0 0.0
    %696 = vmatprep.subr.mxu0 0.0
    %697 = vmatpush1.msra.mxu0 0.0
    %698 = vmatprep.subr.mxu0 0.0
    %699 = vmatpush1.msra.mxu0 0.0
    %700 = vmatprep.subr.mxu0 0.0
    %701 = vmatpush1.msra.mxu0 0.0
    %702 = vmatprep.subr.mxu0 0.0
    %703 = vmatpush1.msra.mxu0 0.0
    %704 = vmatprep.subr.mxu0 0.0
    %705 = vmatpush1.msra.mxu0 0.0
    %706 = vmatprep.subr.mxu0 0.0
    %707 = vmatpush1.msra.mxu0 0.0
    %708 = vmatprep.subr.mxu0 0.0
    %709 = vmatpush1.msra.mxu0 0.0
    %710 = vmatprep.subr.mxu0 0.0
    %711 = vmatpush1.msra.mxu0 0.0
    %712 = vmatprep.subr.mxu0 0.0
    %713 = vmatpush1.msra.mxu0 0.0
    %714 = vmatprep.subr.mxu0 0.0
    %715 = vmatpush1.msra.mxu0 0.0
    %716 = vmatprep.subr.mxu0 0.0
    %717 = vmatpush1.msra.mxu0 0.0
    %718 = vmatprep.subr.mxu0 0.0
    %719 = vmatpush1.msra.mxu0 0.0
    %720 = vmatprep.subr.mxu0 0.0
    %721 = vmatpush1.msra.mxu0 0.0
    %722 = vmatprep.subr.mxu0 0.0
    %723 = vmatpush1.msra.mxu0 0.0
    %724 = vmatprep.subr.mxu0 0.0
    %725 = vmatpush1.msra.mxu0 0.0
    %726 = vmatprep.subr.mxu0 0.0
    %727 = vmatpush1.msra.mxu0 0.0
    %728 = vmatprep.subr.mxu0 0.0
    %729 = vmatpush1.msra.mxu0 0.0
    %730 = vmatprep.subr.mxu0 0.0
    %731 = vmatpush1.msra.mxu0 0.0
    %732 = vmatprep.subr.mxu0 0.0
    %733 = vmatpush1.msra.mxu0 0.0
    %734 = vmatprep.subr.mxu0 0.0
    %735 = vmatpush1.msra.mxu0 0.0
    %736 = vmatprep.subr.mxu0 0.0
    %737 = vmatpush1.msra.mxu0 0.0
    %738 = vmatprep.subr.mxu0 0.0
    %739 = vmatpush1.msra.mxu0 0.0
    %740 = vmatprep.subr.mxu0 0.0
    %741 = vmatpush1.msra.mxu0 0.0
    %742 = vmatprep.subr.mxu0 0.0
    %743 = vmatpush1.msra.mxu0 0.0
    %744 = vmatprep.subr.mxu0 0.0
    %745 = vmatpush1.msra.mxu0 0.0
    %746 = vmatprep.subr.mxu0 0.0
    %747 = vmatpush1.msra.mxu0 0.0
    %748 = vmatprep.subr.mxu0 0.0
    %749 = vmatpush1.msra.mxu0 0.0
    %750 = vmatprep.subr.mxu0 0.0
    %751 = vmatpush1.msra.mxu0 0.0
    %752 = vmatprep.subr.mxu0 0.0
    %753 = vmatpush1.msra.mxu0 0.0
    %754 = vmatprep.mubr.f32.mxu0 0.0
    %755 = vmatmul.mubr.f32.gmra.mrb[0].mxu0 %v617
    %v756 = vpop.f32.mrb[0].mxu0
    %v757 = vadd.f32 0.0, %v756
    %v758 = vpop.f32.mrb[0].mxu0
    %v759 = vadd.f32 0.0, %v758
    %760 = vdwg.mxu0
    %v761 = vadd.f32 %v590, %v686
    %v762 = vadd.f32 %v591, %v688
    %v763 = vadd.f32 %v592, %v757
    %v764 = vadd.f32 %v593, %v759
    %v765 = vld [vmem:[%s1 + $0x20] sm:$0xff]
    %v767 = vsel %vm132, %v765, 0
    %769 = vmatprep.subr.mxu0 %v83
    %770 = vmatpush1.msra.mxu0 %v82
    %771 = vmatprep.subr.mxu0 0.0
    %772 = vmatpush1.msra.mxu0 0.0
    %773 = vmatprep.subr.mxu0 0.0
    %774 = vmatpush1.msra.mxu0 0.0
    %775 = vmatprep.subr.mxu0 0.0
    %776 = vmatpush1.msra.mxu0 0.0
    %777 = vmatprep.subr.mxu0 0.0
    %778 = vmatpush1.msra.mxu0 0.0
    %779 = vmatprep.subr.mxu0 0.0
    %780 = vmatpush1.msra.mxu0 0.0
    %781 = vmatprep.subr.mxu0 0.0
    %782 = vmatpush1.msra.mxu0 0.0
    %783 = vmatprep.subr.mxu0 0.0
    %784 = vmatpush1.msra.mxu0 0.0
    %785 = vmatprep.subr.mxu0 0.0
    %786 = vmatpush1.msra.mxu0 0.0
    %787 = vmatprep.subr.mxu0 0.0
    %788 = vmatpush1.msra.mxu0 0.0
    %789 = vmatprep.subr.mxu0 0.0
    %790 = vmatpush1.msra.mxu0 0.0
    %791 = vmatprep.subr.mxu0 0.0
    %792 = vmatpush1.msra.mxu0 0.0
    %793 = vmatprep.subr.mxu0 0.0
    %794 = vmatpush1.msra.mxu0 0.0
    %795 = vmatprep.subr.mxu0 0.0
    %796 = vmatpush1.msra.mxu0 0.0
    %797 = vmatprep.subr.mxu0 0.0
    %798 = vmatpush1.msra.mxu0 0.0
    %799 = vmatprep.subr.mxu0 0.0
    %800 = vmatpush1.msra.mxu0 0.0
    %801 = vmatprep.subr.mxu0 0.0
    %802 = vmatpush1.msra.mxu0 0.0
    %803 = vmatprep.subr.mxu0 0.0
    %804 = vmatpush1.msra.mxu0 0.0
    %805 = vmatprep.subr.mxu0 0.0
    %806 = vmatpush1.msra.mxu0 0.0
    %807 = vmatprep.subr.mxu0 0.0
    %808 = vmatpush1.msra.mxu0 0.0
    %809 = vmatprep.subr.mxu0 0.0
    %810 = vmatpush1.msra.mxu0 0.0
    %811 = vmatprep.subr.mxu0 0.0
    %812 = vmatpush1.msra.mxu0 0.0
    %813 = vmatprep.subr.mxu0 0.0
    %814 = vmatpush1.msra.mxu0 0.0
    %815 = vmatprep.subr.mxu0 0.0
    %816 = vmatpush1.msra.mxu0 0.0
    %817 = vmatprep.subr.mxu0 0.0
    %818 = vmatpush1.msra.mxu0 0.0
    %819 = vmatprep.subr.mxu0 0.0
    %820 = vmatpush1.msra.mxu0 0.0
    %821 = vmatprep.subr.mxu0 0.0
    %822 = vmatpush1.msra.mxu0 0.0
    %823 = vmatprep.subr.mxu0 0.0
    %824 = vmatpush1.msra.mxu0 0.0
    %825 = vmatprep.subr.mxu0 0.0
    %826 = vmatpush1.msra.mxu0 0.0
    %827 = vmatprep.subr.mxu0 0.0
    %828 = vmatpush1.msra.mxu0 0.0
    %829 = vmatprep.subr.mxu0 0.0
    %830 = vmatpush1.msra.mxu0 0.0
    %831 = vmatprep.subr.mxu0 0.0
    %832 = vmatpush1.msra.mxu0 0.0
    %833 = vmatprep.mubr.f32.mxu0 0.0
    %834 = vmatmul.mubr.f32.gmra.mrb[0].mxu0 %v767
    %v835 = vpop.f32.mrb[0].mxu0
    %v836 = vadd.f32 0.0, %v835
    %v837 = vpop.f32.mrb[0].mxu0
    %v838 = vadd.f32 0.0, %v837
    %839 = vdwg.mxu0
    %840 = vmatprep.subr.mxu0 %v85
    %841 = vmatpush1.msra.mxu0 %v84
    %842 = vmatprep.subr.mxu0 0.0
    %843 = vmatpush1.msra.mxu0 0.0
    %844 = vmatprep.subr.mxu0 0.0
    %845 = vmatpush1.msra.mxu0 0.0
    %846 = vmatprep.subr.mxu0 0.0
    %847 = vmatpush1.msra.mxu0 0.0
    %848 = vmatprep.subr.mxu0 0.0
    %849 = vmatpush1.msra.mxu0 0.0
    %850 = vmatprep.subr.mxu0 0.0
    %851 = vmatpush1.msra.mxu0 0.0
    %852 = vmatprep.subr.mxu0 0.0
    %853 = vmatpush1.msra.mxu0 0.0
    %854 = vmatprep.subr.mxu0 0.0
    %855 = vmatpush1.msra.mxu0 0.0
    %856 = vmatprep.subr.mxu0 0.0
    %857 = vmatpush1.msra.mxu0 0.0
    %858 = vmatprep.subr.mxu0 0.0
    %859 = vmatpush1.msra.mxu0 0.0
    %860 = vmatprep.subr.mxu0 0.0
    %861 = vmatpush1.msra.mxu0 0.0
    %862 = vmatprep.subr.mxu0 0.0
    %863 = vmatpush1.msra.mxu0 0.0
    %864 = vmatprep.subr.mxu0 0.0
    %865 = vmatpush1.msra.mxu0 0.0
    %866 = vmatprep.subr.mxu0 0.0
    %867 = vmatpush1.msra.mxu0 0.0
    %868 = vmatprep.subr.mxu0 0.0
    %869 = vmatpush1.msra.mxu0 0.0
    %870 = vmatprep.subr.mxu0 0.0
    %871 = vmatpush1.msra.mxu0 0.0
    %872 = vmatprep.subr.mxu0 0.0
    %873 = vmatpush1.msra.mxu0 0.0
    %874 = vmatprep.subr.mxu0 0.0
    %875 = vmatpush1.msra.mxu0 0.0
    %876 = vmatprep.subr.mxu0 0.0
    %877 = vmatpush1.msra.mxu0 0.0
    %878 = vmatprep.subr.mxu0 0.0
    %879 = vmatpush1.msra.mxu0 0.0
    %880 = vmatprep.subr.mxu0 0.0
    %881 = vmatpush1.msra.mxu0 0.0
    %882 = vmatprep.subr.mxu0 0.0
    %883 = vmatpush1.msra.mxu0 0.0
    %884 = vmatprep.subr.mxu0 0.0
    %885 = vmatpush1.msra.mxu0 0.0
    %886 = vmatprep.subr.mxu0 0.0
    %887 = vmatpush1.msra.mxu0 0.0
    %888 = vmatprep.subr.mxu0 0.0
    %889 = vmatpush1.msra.mxu0 0.0
    %890 = vmatprep.subr.mxu0 0.0
    %891 = vmatpush1.msra.mxu0 0.0
    %892 = vmatprep.subr.mxu0 0.0
    %893 = vmatpush1.msra.mxu0 0.0
    %894 = vmatprep.subr.mxu0 0.0
    %895 = vmatpush1.msra.mxu0 0.0
    %896 = vmatprep.subr.mxu0 0.0
    %897 = vmatpush1.msra.mxu0 0.0
    %898 = vmatprep.subr.mxu0 0.0
    %899 = vmatpush1.msra.mxu0 0.0
    %900 = vmatprep.subr.mxu0 0.0
    %901 = vmatpush1.msra.mxu0 0.0
    %902 = vmatprep.subr.mxu0 0.0
    %903 = vmatpush1.msra.mxu0 0.0
    %904 = vmatprep.mubr.f32.mxu0 0.0
    %905 = vmatmul.mubr.f32.gmra.mrb[0].mxu0 %v767
    %v906 = vpop.f32.mrb[0].mxu0
    %v907 = vadd.f32 0.0, %v906
    %v908 = vpop.f32.mrb[0].mxu0
    %v909 = vadd.f32 0.0, %v908
    %910 = vdwg.mxu0
    %v911 = vadd.f32 %v761, %v836
    %v912 = vadd.f32 %v762, %v838
    %v913 = vadd.f32 %v763, %v907
    %v914 = vadd.f32 %v764, %v909
    %915 = vrot.lane.b32.xlu0 %v82, 127
    %v916 = vpop.permute.xlu0 %915
    %917 = vrot.lane.b32.xlu0 %v83, 127
    %v918 = vpop.permute.xlu0 %917
    %919 = vrot.lane.b32.xlu0 %v84, 127
    %v920 = vpop.permute.xlu0 %919
    %921 = vrot.lane.b32.xlu0 %v85, 127
    %v922 = vpop.permute.xlu0 %921
    %vm923 = vcmp.lt.s32.totalorder %v95, 127
    %v924 = vsel %vm923, %v920, %v922
    %v925 = vsel %vm923, %v918, %v920
    %v926 = vsel %vm923, %v916, %v918
    %v927 = vsel %vm923, %v922, %v916
    %v928 = vld [vmem:[%s10 + $0x80] sm:$0xff]
    %v929 = vld [vmem:[%s10 + $0x88] sm:$0xff]
    %v930 = vld [vmem:[%s10 + $0x90] sm:$0xff]
    %v931 = vld [vmem:[%s10 + $0x98] sm:$0xff]
    %v932 = vmul.f32 %v926, %v928
    %v933 = vmul.f32 %v925, %v929
    %v934 = vmul.f32 %v924, %v930
    %v935 = vmul.f32 %v927, %v931
    %v936 = vld [vmem:[%s1 + $0x28] sm:$0xff]
    %v938 = vsel %vm132, %v936, 0
    %940 = vmatprep.subr.mxu0 %v933
    %941 = vmatpush1.msra.mxu0 %v932
    %942 = vmatprep.subr.mxu0 0.0
    %943 = vmatpush1.msra.mxu0 0.0
    %944 = vmatprep.subr.mxu0 0.0
    %945 = vmatpush1.msra.mxu0 0.0
    %946 = vmatprep.subr.mxu0 0.0
    %947 = vmatpush1.msra.mxu0 0.0
    %948 = vmatprep.subr.mxu0 0.0
    %949 = vmatpush1.msra.mxu0 0.0
    %950 = vmatprep.subr.mxu0 0.0
    %951 = vmatpush1.msra.mxu0 0.0
    %952 = vmatprep.subr.mxu0 0.0
    %953 = vmatpush1.msra.mxu0 0.0
    %954 = vmatprep.subr.mxu0 0.0
    %955 = vmatpush1.msra.mxu0 0.0
    %956 = vmatprep.subr.mxu0 0.0
    %957 = vmatpush1.msra.mxu0 0.0
    %958 = vmatprep.subr.mxu0 0.0
    %959 = vmatpush1.msra.mxu0 0.0
    %960 = vmatprep.subr.mxu0 0.0
    %961 = vmatpush1.msra.mxu0 0.0
    %962 = vmatprep.subr.mxu0 0.0
    %963 = vmatpush1.msra.mxu0 0.0
    %964 = vmatprep.subr.mxu0 0.0
    %965 = vmatpush1.msra.mxu0 0.0
    %966 = vmatprep.subr.mxu0 0.0
    %967 = vmatpush1.msra.mxu0 0.0
    %968 = vmatprep.subr.mxu0 0.0
    %969 = vmatpush1.msra.mxu0 0.0
    %970 = vmatprep.subr.mxu0 0.0
    %971 = vmatpush1.msra.mxu0 0.0
    %972 = vmatprep.subr.mxu0 0.0
    %973 = vmatpush1.msra.mxu0 0.0
    %974 = vmatprep.subr.mxu0 0.0
    %975 = vmatpush1.msra.mxu0 0.0
    %976 = vmatprep.subr.mxu0 0.0
    %977 = vmatpush1.msra.mxu0 0.0
    %978 = vmatprep.subr.mxu0 0.0
    %979 = vmatpush1.msra.mxu0 0.0
    %980 = vmatprep.subr.mxu0 0.0
    %981 = vmatpush1.msra.mxu0 0.0
    %982 = vmatprep.subr.mxu0 0.0
    %983 = vmatpush1.msra.mxu0 0.0
    %984 = vmatprep.subr.mxu0 0.0
    %985 = vmatpush1.msra.mxu0 0.0
    %986 = vmatprep.subr.mxu0 0.0
    %987 = vmatpush1.msra.mxu0 0.0
    %988 = vmatprep.subr.mxu0 0.0
    %989 = vmatpush1.msra.mxu0 0.0
    %990 = vmatprep.subr.mxu0 0.0
    %991 = vmatpush1.msra.mxu0 0.0
    %992 = vmatprep.subr.mxu0 0.0
    %993 = vmatpush1.msra.mxu0 0.0
    %994 = vmatprep.subr.mxu0 0.0
    %995 = vmatpush1.msra.mxu0 0.0
    %996 = vmatprep.subr.mxu0 0.0
    %997 = vmatpush1.msra.mxu0 0.0
    %998 = vmatprep.subr.mxu0 0.0
    %999 = vmatpush1.msra.mxu0 0.0
    %1000 = vmatprep.subr.mxu0 0.0
    %1001 = vmatpush1.msra.mxu0 0.0
    %1002 = vmatprep.subr.mxu0 0.0
    %1003 = vmatpush1.msra.mxu0 0.0
    %1004 = vmatprep.mubr.f32.mxu0 0.0
    %1005 = vmatmul.mubr.f32.gmra.mrb[0].mxu0 %v938
    %v1006 = vpop.f32.mrb[0].mxu0
    %v1007 = vadd.f32 0.0, %v1006
    %v1008 = vpop.f32.mrb[0].mxu0
    %v1009 = vadd.f32 0.0, %v1008
    %1010 = vdwg.mxu0
    %1011 = vmatprep.subr.mxu0 %v935
    %1012 = vmatpush1.msra.mxu0 %v934
    %1013 = vmatprep.subr.mxu0 0.0
    %1014 = vmatpush1.msra.mxu0 0.0
    %1015 = vmatprep.subr.mxu0 0.0
    %1016 = vmatpush1.msra.mxu0 0.0
    %1017 = vmatprep.subr.mxu0 0.0
    %1018 = vmatpush1.msra.mxu0 0.0
    %1019 = vmatprep.subr.mxu0 0.0
    %1020 = vmatpush1.msra.mxu0 0.0
    %1021 = vmatprep.subr.mxu0 0.0
    %1022 = vmatpush1.msra.mxu0 0.0
    %1023 = vmatprep.subr.mxu0 0.0
    %1024 = vmatpush1.msra.mxu0 0.0
    %1025 = vmatprep.subr.mxu0 0.0
    %1026 = vmatpush1.msra.mxu0 0.0
    %1027 = vmatprep.subr.mxu0 0.0
    %1028 = vmatpush1.msra.mxu0 0.0
    %1029 = vmatprep.subr.mxu0 0.0
    %1030 = vmatpush1.msra.mxu0 0.0
    %1031 = vmatprep.subr.mxu0 0.0
    %1032 = vmatpush1.msra.mxu0 0.0
    %1033 = vmatprep.subr.mxu0 0.0
    %1034 = vmatpush1.msra.mxu0 0.0
    %1035 = vmatprep.subr.mxu0 0.0
    %1036 = vmatpush1.msra.mxu0 0.0
    %1037 = vmatprep.subr.mxu0 0.0
    %1038 = vmatpush1.msra.mxu0 0.0
    %1039 = vmatprep.subr.mxu0 0.0
    %1040 = vmatpush1.msra.mxu0 0.0
    %1041 = vmatprep.subr.mxu0 0.0
    %1042 = vmatpush1.msra.mxu0 0.0
    %1043 = vmatprep.subr.mxu0 0.0
    %1044 = vmatpush1.msra.mxu0 0.0
    %1045 = vmatprep.subr.mxu0 0.0
    %1046 = vmatpush1.msra.mxu0 0.0
    %1047 = vmatprep.subr.mxu0 0.0
    %1048 = vmatpush1.msra.mxu0 0.0
    %1049 = vmatprep.subr.mxu0 0.0
    %1050 = vmatpush1.msra.mxu0 0.0
    %1051 = vmatprep.subr.mxu0 0.0
    %1052 = vmatpush1.msra.mxu0 0.0
    %1053 = vmatprep.subr.mxu0 0.0
    %1054 = vmatpush1.msra.mxu0 0.0
    %1055 = vmatprep.subr.mxu0 0.0
    %1056 = vmatpush1.msra.mxu0 0.0
    %1057 = vmatprep.subr.mxu0 0.0
    %1058 = vmatpush1.msra.mxu0 0.0
    %1059 = vmatprep.subr.mxu0 0.0
    %1060 = vmatpush1.msra.mxu0 0.0
    %1061 = vmatprep.subr.mxu0 0.0
    %1062 = vmatpush1.msra.mxu0 0.0
    %1063 = vmatprep.subr.mxu0 0.0
    %1064 = vmatpush1.msra.mxu0 0.0
    %1065 = vmatprep.subr.mxu0 0.0
    %1066 = vmatpush1.msra.mxu0 0.0
    %1067 = vmatprep.subr.mxu0 0.0
    %1068 = vmatpush1.msra.mxu0 0.0
    %1069 = vmatprep.subr.mxu0 0.0
    %1070 = vmatpush1.msra.mxu0 0.0
    %1071 = vmatprep.subr.mxu0 0.0
    %1072 = vmatpush1.msra.mxu0 0.0
    %1073 = vmatprep.subr.mxu0 0.0
    %1074 = vmatpush1.msra.mxu0 0.0
    %1075 = vmatprep.mubr.f32.mxu0 0.0
    %1076 = vmatmul.mubr.f32.gmra.mrb[0].mxu0 %v938
    %v1077 = vpop.f32.mrb[0].mxu0
    %v1078 = vadd.f32 0.0, %v1077
    %v1079 = vpop.f32.mrb[0].mxu0
    %v1080 = vadd.f32 0.0, %v1079
    %1081 = vdwg.mxu0
    %v1082 = vadd.f32 %v911, %v1007
    %v1083 = vadd.f32 %v912, %v1009
    %v1084 = vadd.f32 %v913, %v1078
    %v1085 = vadd.f32 %v914, %v1080
    %1086 = vrot.lane.b32.xlu0 %v82, 113
    %v1087 = vpop.permute.xlu0 %1086
    %1088 = vrot.lane.b32.xlu0 %v83, 113
    %v1089 = vpop.permute.xlu0 %1088
    %1090 = vrot.lane.b32.xlu0 %v84, 113
    %v1091 = vpop.permute.xlu0 %1090
    %1092 = vrot.lane.b32.xlu0 %v85, 113
    %v1093 = vpop.permute.xlu0 %1092
    %vm1094 = vcmp.lt.s32.totalorder %v95, 113
    %v1095 = vsel %vm1094, %v1091, %v1093
    %v1096 = vsel %vm1094, %v1089, %v1091
    %v1097 = vsel %vm1094, %v1087, %v1089
    %v1098 = vsel %vm1094, %v1093, %v1087
    %v1099 = vld [vmem:[%s10 + $0xa0] sm:$0xff]
    %v1100 = vld [vmem:[%s10 + $0xa8] sm:$0xff]
    %v1101 = vld [vmem:[%s10 + $0xb0] sm:$0xff]
    %v1102 = vld [vmem:[%s10 + $0xb8] sm:$0xff]
    %v1103 = vmul.f32 %v1097, %v1099
    %v1104 = vmul.f32 %v1096, %v1100
    %v1105 = vmul.f32 %v1095, %v1101
    %v1106 = vmul.f32 %v1098, %v1102
    %v1107 = vld [vmem:[%s1 + $0x30] sm:$0xff]
    %v1109 = vsel %vm132, %v1107, 0
    %1111 = vmatprep.subr.mxu0 %v1104
    %1112 = vmatpush1.msra.mxu0 %v1103
    %1113 = vmatprep.subr.mxu0 0.0
    %1114 = vmatpush1.msra.mxu0 0.0
    %1115 = vmatprep.subr.mxu0 0.0
    %1116 = vmatpush1.msra.mxu0 0.0
    %1117 = vmatprep.subr.mxu0 0.0
    %1118 = vmatpush1.msra.mxu0 0.0
    %1119 = vmatprep.subr.mxu0 0.0
    %1120 = vmatpush1.msra.mxu0 0.0
    %1121 = vmatprep.subr.mxu0 0.0
    %1122 = vmatpush1.msra.mxu0 0.0
    %1123 = vmatprep.subr.mxu0 0.0
    %1124 = vmatpush1.msra.mxu0 0.0
    %1125 = vmatprep.subr.mxu0 0.0
    %1126 = vmatpush1.msra.mxu0 0.0
    %1127 = vmatprep.subr.mxu0 0.0
    %1128 = vmatpush1.msra.mxu0 0.0
    %1129 = vmatprep.subr.mxu0 0.0
    %1130 = vmatpush1.msra.mxu0 0.0
    %1131 = vmatprep.subr.mxu0 0.0
    %1132 = vmatpush1.msra.mxu0 0.0
    %1133 = vmatprep.subr.mxu0 0.0
    %1134 = vmatpush1.msra.mxu0 0.0
    %1135 = vmatprep.subr.mxu0 0.0
    %1136 = vmatpush1.msra.mxu0 0.0
    %1137 = vmatprep.subr.mxu0 0.0
    %1138 = vmatpush1.msra.mxu0 0.0
    %1139 = vmatprep.subr.mxu0 0.0
    %1140 = vmatpush1.msra.mxu0 0.0
    %1141 = vmatprep.subr.mxu0 0.0
    %1142 = vmatpush1.msra.mxu0 0.0
    %1143 = vmatprep.subr.mxu0 0.0
    %1144 = vmatpush1.msra.mxu0 0.0
    %1145 = vmatprep.subr.mxu0 0.0
    %1146 = vmatpush1.msra.mxu0 0.0
    %1147 = vmatprep.subr.mxu0 0.0
    %1148 = vmatpush1.msra.mxu0 0.0
    %1149 = vmatprep.subr.mxu0 0.0
    %1150 = vmatpush1.msra.mxu0 0.0
    %1151 = vmatprep.subr.mxu0 0.0
    %1152 = vmatpush1.msra.mxu0 0.0
    %1153 = vmatprep.subr.mxu0 0.0
    %1154 = vmatpush1.msra.mxu0 0.0
    %1155 = vmatprep.subr.mxu0 0.0
    %1156 = vmatpush1.msra.mxu0 0.0
    %1157 = vmatprep.subr.mxu0 0.0
    %1158 = vmatpush1.msra.mxu0 0.0
    %1159 = vmatprep.subr.mxu0 0.0
    %1160 = vmatpush1.msra.mxu0 0.0
    %1161 = vmatprep.subr.mxu0 0.0
    %1162 = vmatpush1.msra.mxu0 0.0
    %1163 = vmatprep.subr.mxu0 0.0
    %1164 = vmatpush1.msra.mxu0 0.0
    %1165 = vmatprep.subr.mxu0 0.0
    %1166 = vmatpush1.msra.mxu0 0.0
    %1167 = vmatprep.subr.mxu0 0.0
    %1168 = vmatpush1.msra.mxu0 0.0
    %1169 = vmatprep.subr.mxu0 0.0
    %1170 = vmatpush1.msra.mxu0 0.0
    %1171 = vmatprep.subr.mxu0 0.0
    %1172 = vmatpush1.msra.mxu0 0.0
    %1173 = vmatprep.subr.mxu0 0.0
    %1174 = vmatpush1.msra.mxu0 0.0
    %1175 = vmatprep.mubr.f32.mxu0 0.0
    %1176 = vmatmul.mubr.f32.gmra.mrb[0].mxu0 %v1109
    %v1177 = vpop.f32.mrb[0].mxu0
    %v1178 = vadd.f32 0.0, %v1177
    %v1179 = vpop.f32.mrb[0].mxu0
    %v1180 = vadd.f32 0.0, %v1179
    %1181 = vdwg.mxu0
    %1182 = vmatprep.subr.mxu0 %v1106
    %1183 = vmatpush1.msra.mxu0 %v1105
    %1184 = vmatprep.subr.mxu0 0.0
    %1185 = vmatpush1.msra.mxu0 0.0
    %1186 = vmatprep.subr.mxu0 0.0
    %1187 = vmatpush1.msra.mxu0 0.0
    %1188 = vmatprep.subr.mxu0 0.0
    %1189 = vmatpush1.msra.mxu0 0.0
    %1190 = vmatprep.subr.mxu0 0.0
    %1191 = vmatpush1.msra.mxu0 0.0
    %1192 = vmatprep.subr.mxu0 0.0
    %1193 = vmatpush1.msra.mxu0 0.0
    %1194 = vmatprep.subr.mxu0 0.0
    %1195 = vmatpush1.msra.mxu0 0.0
    %1196 = vmatprep.subr.mxu0 0.0
    %1197 = vmatpush1.msra.mxu0 0.0
    %1198 = vmatprep.subr.mxu0 0.0
    %1199 = vmatpush1.msra.mxu0 0.0
    %1200 = vmatprep.subr.mxu0 0.0
    %1201 = vmatpush1.msra.mxu0 0.0
    %1202 = vmatprep.subr.mxu0 0.0
    %1203 = vmatpush1.msra.mxu0 0.0
    %1204 = vmatprep.subr.mxu0 0.0
    %1205 = vmatpush1.msra.mxu0 0.0
    %1206 = vmatprep.subr.mxu0 0.0
    %1207 = vmatpush1.msra.mxu0 0.0
    %1208 = vmatprep.subr.mxu0 0.0
    %1209 = vmatpush1.msra.mxu0 0.0
    %1210 = vmatprep.subr.mxu0 0.0
    %1211 = vmatpush1.msra.mxu0 0.0
    %1212 = vmatprep.subr.mxu0 0.0
    %1213 = vmatpush1.msra.mxu0 0.0
    %1214 = vmatprep.subr.mxu0 0.0
    %1215 = vmatpush1.msra.mxu0 0.0
    %1216 = vmatprep.subr.mxu0 0.0
    %1217 = vmatpush1.msra.mxu0 0.0
    %1218 = vmatprep.subr.mxu0 0.0
    %1219 = vmatpush1.msra.mxu0 0.0
    %1220 = vmatprep.subr.mxu0 0.0
    %1221 = vmatpush1.msra.mxu0 0.0
    %1222 = vmatprep.subr.mxu0 0.0
    %1223 = vmatpush1.msra.mxu0 0.0
    %1224 = vmatprep.subr.mxu0 0.0
    %1225 = vmatpush1.msra.mxu0 0.0
    %1226 = vmatprep.subr.mxu0 0.0
    %1227 = vmatpush1.msra.mxu0 0.0
    %1228 = vmatprep.subr.mxu0 0.0
    %1229 = vmatpush1.msra.mxu0 0.0
    %1230 = vmatprep.subr.mxu0 0.0
    %1231 = vmatpush1.msra.mxu0 0.0
    %1232 = vmatprep.subr.mxu0 0.0
    %1233 = vmatpush1.msra.mxu0 0.0
    %1234 = vmatprep.subr.mxu0 0.0
    %1235 = vmatpush1.msra.mxu0 0.0
    %1236 = vmatprep.subr.mxu0 0.0
    %1237 = vmatpush1.msra.mxu0 0.0
    %1238 = vmatprep.subr.mxu0 0.0
    %1239 = vmatpush1.msra.mxu0 0.0
    %1240 = vmatprep.subr.mxu0 0.0
    %1241 = vmatpush1.msra.mxu0 0.0
    %1242 = vmatprep.subr.mxu0 0.0
    %1243 = vmatpush1.msra.mxu0 0.0
    %1244 = vmatprep.subr.mxu0 0.0
    %1245 = vmatpush1.msra.mxu0 0.0
    %1246 = vmatprep.mubr.f32.mxu0 0.0
    %1247 = vmatmul.mubr.f32.gmra.mrb[0].mxu0 %v1109
    %v1248 = vpop.f32.mrb[0].mxu0
    %v1249 = vadd.f32 0.0, %v1248
    %v1250 = vpop.f32.mrb[0].mxu0
    %v1251 = vadd.f32 0.0, %v1250
    %1252 = vdwg.mxu0
    %v1253 = vadd.f32 %v1082, %v1178
    %v1254 = vadd.f32 %v1083, %v1180
    %v1255 = vadd.f32 %v1084, %v1249
    %v1256 = vadd.f32 %v1085, %v1251
    %1257 = vrot.lane.b32.xlu0 %v82, 112
    %v1258 = vpop.permute.xlu0 %1257
    %1259 = vrot.lane.b32.xlu0 %v83, 112
    %v1260 = vpop.permute.xlu0 %1259
    %1261 = vrot.lane.b32.xlu0 %v84, 112
    %v1262 = vpop.permute.xlu0 %1261
    %1263 = vrot.lane.b32.xlu0 %v85, 112
    %v1264 = vpop.permute.xlu0 %1263
    %vm1265 = vcmp.lt.s32.totalorder %v95, 112
    %v1266 = vsel %vm1265, %v1262, %v1264
    %v1267 = vsel %vm1265, %v1260, %v1262
    %v1268 = vsel %vm1265, %v1258, %v1260
    %v1269 = vsel %vm1265, %v1264, %v1258
    %v1270 = vld [vmem:[%s10 + $0xc0] sm:$0xff]
    %v1271 = vld [vmem:[%s10 + $0xc8] sm:$0xff]
    %v1272 = vld [vmem:[%s10 + $0xd0] sm:$0xff]
    %v1273 = vld [vmem:[%s10 + $0xd8] sm:$0xff]
    %v1274 = vmul.f32 %v1268, %v1270
    %v1275 = vmul.f32 %v1267, %v1271
    %v1276 = vmul.f32 %v1266, %v1272
    %v1277 = vmul.f32 %v1269, %v1273
    %v1278 = vld [vmem:[%s1 + $0x38] sm:$0xff]
    %v1280 = vsel %vm132, %v1278, 0
    %1282 = vmatprep.subr.mxu0 %v1275
    %1283 = vmatpush1.msra.mxu0 %v1274
    %1284 = vmatprep.subr.mxu0 0.0
    %1285 = vmatpush1.msra.mxu0 0.0
    %1286 = vmatprep.subr.mxu0 0.0
    %1287 = vmatpush1.msra.mxu0 0.0
    %1288 = vmatprep.subr.mxu0 0.0
    %1289 = vmatpush1.msra.mxu0 0.0
    %1290 = vmatprep.subr.mxu0 0.0
    %1291 = vmatpush1.msra.mxu0 0.0
    %1292 = vmatprep.subr.mxu0 0.0
    %1293 = vmatpush1.msra.mxu0 0.0
    %1294 = vmatprep.subr.mxu0 0.0
    %1295 = vmatpush1.msra.mxu0 0.0
    %1296 = vmatprep.subr.mxu0 0.0
    %1297 = vmatpush1.msra.mxu0 0.0
    %1298 = vmatprep.subr.mxu0 0.0
    %1299 = vmatpush1.msra.mxu0 0.0
    %1300 = vmatprep.subr.mxu0 0.0
    %1301 = vmatpush1.msra.mxu0 0.0
    %1302 = vmatprep.subr.mxu0 0.0
    %1303 = vmatpush1.msra.mxu0 0.0
    %1304 = vmatprep.subr.mxu0 0.0
    %1305 = vmatpush1.msra.mxu0 0.0
    %1306 = vmatprep.subr.mxu0 0.0
    %1307 = vmatpush1.msra.mxu0 0.0
    %1308 = vmatprep.subr.mxu0 0.0
    %1309 = vmatpush1.msra.mxu0 0.0
    %1310 = vmatprep.subr.mxu0 0.0
    %1311 = vmatpush1.msra.mxu0 0.0
    %1312 = vmatprep.subr.mxu0 0.0
    %1313 = vmatpush1.msra.mxu0 0.0
    %1314 = vmatprep.subr.mxu0 0.0
    %1315 = vmatpush1.msra.mxu0 0.0
    %1316 = vmatprep.subr.mxu0 0.0
    %1317 = vmatpush1.msra.mxu0 0.0
    %1318 = vmatprep.subr.mxu0 0.0
    %1319 = vmatpush1.msra.mxu0 0.0
    %1320 = vmatprep.subr.mxu0 0.0
    %1321 = vmatpush1.msra.mxu0 0.0
    %1322 = vmatprep.subr.mxu0 0.0
    %1323 = vmatpush1.msra.mxu0 0.0
    %1324 = vmatprep.subr.mxu0 0.0
    %1325 = vmatpush1.msra.mxu0 0.0
    %1326 = vmatprep.subr.mxu0 0.0
    %1327 = vmatpush1.msra.mxu0 0.0
    %1328 = vmatprep.subr.mxu0 0.0
    %1329 = vmatpush1.msra.mxu0 0.0
    %1330 = vmatprep.subr.mxu0 0.0
    %1331 = vmatpush1.msra.mxu0 0.0
    %1332 = vmatprep.subr.mxu0 0.0
    %1333 = vmatpush1.msra.mxu0 0.0
    %1334 = vmatprep.subr.mxu0 0.0
    %1335 = vmatpush1.msra.mxu0 0.0
    %1336 = vmatprep.subr.mxu0 0.0
    %1337 = vmatpush1.msra.mxu0 0.0
    %1338 = vmatprep.subr.mxu0 0.0
    %1339 = vmatpush1.msra.mxu0 0.0
    %1340 = vmatprep.subr.mxu0 0.0
    %1341 = vmatpush1.msra.mxu0 0.0
    %1342 = vmatprep.subr.mxu0 0.0
    %1343 = vmatpush1.msra.mxu0 0.0
    %1344 = vmatprep.subr.mxu0 0.0
    %1345 = vmatpush1.msra.mxu0 0.0
    %1346 = vmatprep.mubr.f32.mxu0 0.0
    %1347 = vmatmul.mubr.f32.gmra.mrb[0].mxu0 %v1280
    %v1348 = vpop.f32.mrb[0].mxu0
    %v1349 = vadd.f32 0.0, %v1348
    %v1350 = vpop.f32.mrb[0].mxu0
    %v1351 = vadd.f32 0.0, %v1350
    %1352 = vdwg.mxu0
    %1353 = vmatprep.subr.mxu0 %v1277
    %1354 = vmatpush1.msra.mxu0 %v1276
    %1355 = vmatprep.subr.mxu0 0.0
    %1356 = vmatpush1.msra.mxu0 0.0
    %1357 = vmatprep.subr.mxu0 0.0
    %1358 = vmatpush1.msra.mxu0 0.0
    %1359 = vmatprep.subr.mxu0 0.0
    %1360 = vmatpush1.msra.mxu0 0.0
    %1361 = vmatprep.subr.mxu0 0.0
    %1362 = vmatpush1.msra.mxu0 0.0
    %1363 = vmatprep.subr.mxu0 0.0
    %1364 = vmatpush1.msra.mxu0 0.0
    %1365 = vmatprep.subr.mxu0 0.0
    %1366 = vmatpush1.msra.mxu0 0.0
    %1367 = vmatprep.subr.mxu0 0.0
    %1368 = vmatpush1.msra.mxu0 0.0
    %1369 = vmatprep.subr.mxu0 0.0
    %1370 = vmatpush1.msra.mxu0 0.0
    %1371 = vmatprep.subr.mxu0 0.0
    %1372 = vmatpush1.msra.mxu0 0.0
    %1373 = vmatprep.subr.mxu0 0.0
    %1374 = vmatpush1.msra.mxu0 0.0
    %1375 = vmatprep.subr.mxu0 0.0
    %1376 = vmatpush1.msra.mxu0 0.0
    %1377 = vmatprep.subr.mxu0 0.0
    %1378 = vmatpush1.msra.mxu0 0.0
    %1379 = vmatprep.subr.mxu0 0.0
    %1380 = vmatpush1.msra.mxu0 0.0
    %1381 = vmatprep.subr.mxu0 0.0
    %1382 = vmatpush1.msra.mxu0 0.0
    %1383 = vmatprep.subr.mxu0 0.0
    %1384 = vmatpush1.msra.mxu0 0.0
    %1385 = vmatprep.subr.mxu0 0.0
    %1386 = vmatpush1.msra.mxu0 0.0
    %1387 = vmatprep.subr.mxu0 0.0
    %1388 = vmatpush1.msra.mxu0 0.0
    %1389 = vmatprep.subr.mxu0 0.0
    %1390 = vmatpush1.msra.mxu0 0.0
    %1391 = vmatprep.subr.mxu0 0.0
    %1392 = vmatpush1.msra.mxu0 0.0
    %1393 = vmatprep.subr.mxu0 0.0
    %1394 = vmatpush1.msra.mxu0 0.0
    %1395 = vmatprep.subr.mxu0 0.0
    %1396 = vmatpush1.msra.mxu0 0.0
    %1397 = vmatprep.subr.mxu0 0.0
    %1398 = vmatpush1.msra.mxu0 0.0
    %1399 = vmatprep.subr.mxu0 0.0
    %1400 = vmatpush1.msra.mxu0 0.0
    %1401 = vmatprep.subr.mxu0 0.0
    %1402 = vmatpush1.msra.mxu0 0.0
    %1403 = vmatprep.subr.mxu0 0.0
    %1404 = vmatpush1.msra.mxu0 0.0
    %1405 = vmatprep.subr.mxu0 0.0
    %1406 = vmatpush1.msra.mxu0 0.0
    %1407 = vmatprep.subr.mxu0 0.0
    %1408 = vmatpush1.msra.mxu0 0.0
    %1409 = vmatprep.subr.mxu0 0.0
    %1410 = vmatpush1.msra.mxu0 0.0
    %1411 = vmatprep.subr.mxu0 0.0
    %1412 = vmatpush1.msra.mxu0 0.0
    %1413 = vmatprep.subr.mxu0 0.0
    %1414 = vmatpush1.msra.mxu0 0.0
    %1415 = vmatprep.subr.mxu0 0.0
    %1416 = vmatpush1.msra.mxu0 0.0
    %1417 = vmatprep.mubr.f32.mxu0 0.0
    %1418 = vmatmul.mubr.f32.gmra.mrb[0].mxu0 %v1280
    %v1419 = vpop.f32.mrb[0].mxu0
    %v1420 = vadd.f32 0.0, %v1419
    %v1421 = vpop.f32.mrb[0].mxu0
    %v1422 = vadd.f32 0.0, %v1421
    %1423 = vdwg.mxu0
    %v1424 = vadd.f32 %v1253, %v1349
    %v1425 = vadd.f32 %v1254, %v1351
    %v1426 = vadd.f32 %v1255, %v1420
    %v1427 = vadd.f32 %v1256, %v1422
    %1428 = vrot.lane.b32.xlu0 %v82, 111
    %v1429 = vpop.permute.xlu0 %1428
    %1430 = vrot.lane.b32.xlu0 %v83, 111
    %v1431 = vpop.permute.xlu0 %1430
    %1432 = vrot.lane.b32.xlu0 %v84, 111
    %v1433 = vpop.permute.xlu0 %1432
    %1434 = vrot.lane.b32.xlu0 %v85, 111
    %v1435 = vpop.permute.xlu0 %1434
    %vm1436 = vcmp.lt.s32.totalorder %v95, 111
    %v1437 = vsel %vm1436, %v1433, %v1435
    %v1438 = vsel %vm1436, %v1431, %v1433
    %v1439 = vsel %vm1436, %v1429, %v1431
    %v1440 = vsel %vm1436, %v1435, %v1429
    %v1441 = vld [vmem:[%s10 + $0xe0] sm:$0xff]
    %v1442 = vld [vmem:[%s10 + $0xe8] sm:$0xff]
    %v1443 = vld [vmem:[%s10 + $0xf0] sm:$0xff]
    %v1444 = vld [vmem:[%s10 + $0xf8] sm:$0xff]
    %v1445 = vmul.f32 %v1439, %v1441
    %v1446 = vmul.f32 %v1438, %v1442
    %v1447 = vmul.f32 %v1437, %v1443
    %v1448 = vmul.f32 %v1440, %v1444
    %v1449 = vld [vmem:[%s1 + $0x40] sm:$0xff]
    %v1451 = vsel %vm132, %v1449, 0
    %1453 = vmatprep.subr.mxu0 %v1446
    %1454 = vmatpush1.msra.mxu0 %v1445
    %1455 = vmatprep.subr.mxu0 0.0
    %1456 = vmatpush1.msra.mxu0 0.0
    %1457 = vmatprep.subr.mxu0 0.0
    %1458 = vmatpush1.msra.mxu0 0.0
    %1459 = vmatprep.subr.mxu0 0.0
    %1460 = vmatpush1.msra.mxu0 0.0
    %1461 = vmatprep.subr.mxu0 0.0
    %1462 = vmatpush1.msra.mxu0 0.0
    %1463 = vmatprep.subr.mxu0 0.0
    %1464 = vmatpush1.msra.mxu0 0.0
    %1465 = vmatprep.subr.mxu0 0.0
    %1466 = vmatpush1.msra.mxu0 0.0
    %1467 = vmatprep.subr.mxu0 0.0
    %1468 = vmatpush1.msra.mxu0 0.0
    %1469 = vmatprep.subr.mxu0 0.0
    %1470 = vmatpush1.msra.mxu0 0.0
    %1471 = vmatprep.subr.mxu0 0.0
    %1472 = vmatpush1.msra.mxu0 0.0
    %1473 = vmatprep.subr.mxu0 0.0
    %1474 = vmatpush1.msra.mxu0 0.0
    %1475 = vmatprep.subr.mxu0 0.0
    %1476 = vmatpush1.msra.mxu0 0.0
    %1477 = vmatprep.subr.mxu0 0.0
    %1478 = vmatpush1.msra.mxu0 0.0
    %1479 = vmatprep.subr.mxu0 0.0
    %1480 = vmatpush1.msra.mxu0 0.0
    %1481 = vmatprep.subr.mxu0 0.0
    %1482 = vmatpush1.msra.mxu0 0.0
    %1483 = vmatprep.subr.mxu0 0.0
    %1484 = vmatpush1.msra.mxu0 0.0
    %1485 = vmatprep.subr.mxu0 0.0
    %1486 = vmatpush1.msra.mxu0 0.0
    %1487 = vmatprep.subr.mxu0 0.0
    %1488 = vmatpush1.msra.mxu0 0.0
    %1489 = vmatprep.subr.mxu0 0.0
    %1490 = vmatpush1.msra.mxu0 0.0
    %1491 = vmatprep.subr.mxu0 0.0
    %1492 = vmatpush1.msra.mxu0 0.0
    %1493 = vmatprep.subr.mxu0 0.0
    %1494 = vmatpush1.msra.mxu0 0.0
    %1495 = vmatprep.subr.mxu0 0.0
    %1496 = vmatpush1.msra.mxu0 0.0
    %1497 = vmatprep.subr.mxu0 0.0
    %1498 = vmatpush1.msra.mxu0 0.0
    %1499 = vmatprep.subr.mxu0 0.0
    %1500 = vmatpush1.msra.mxu0 0.0
    %1501 = vmatprep.subr.mxu0 0.0
    %1502 = vmatpush1.msra.mxu0 0.0
    %1503 = vmatprep.subr.mxu0 0.0
    %1504 = vmatpush1.msra.mxu0 0.0
    %1505 = vmatprep.subr.mxu0 0.0
    %1506 = vmatpush1.msra.mxu0 0.0
    %1507 = vmatprep.subr.mxu0 0.0
    %1508 = vmatpush1.msra.mxu0 0.0
    %1509 = vmatprep.subr.mxu0 0.0
    %1510 = vmatpush1.msra.mxu0 0.0
    %1511 = vmatprep.subr.mxu0 0.0
    %1512 = vmatpush1.msra.mxu0 0.0
    %1513 = vmatprep.subr.mxu0 0.0
    %1514 = vmatpush1.msra.mxu0 0.0
    %1515 = vmatprep.subr.mxu0 0.0
    %1516 = vmatpush1.msra.mxu0 0.0
    %1517 = vmatprep.mubr.f32.mxu0 0.0
    %1518 = vmatmul.mubr.f32.gmra.mrb[0].mxu0 %v1451
    %v1519 = vpop.f32.mrb[0].mxu0
    %v1520 = vadd.f32 0.0, %v1519
    %v1521 = vpop.f32.mrb[0].mxu0
    %v1522 = vadd.f32 0.0, %v1521
    %1523 = vdwg.mxu0
    %1524 = vmatprep.subr.mxu0 %v1448
    %1525 = vmatpush1.msra.mxu0 %v1447
    %1526 = vmatprep.subr.mxu0 0.0
    %1527 = vmatpush1.msra.mxu0 0.0
    %1528 = vmatprep.subr.mxu0 0.0
    %1529 = vmatpush1.msra.mxu0 0.0
    %1530 = vmatprep.subr.mxu0 0.0
    %1531 = vmatpush1.msra.mxu0 0.0
    %1532 = vmatprep.subr.mxu0 0.0
    %1533 = vmatpush1.msra.mxu0 0.0
    %1534 = vmatprep.subr.mxu0 0.0
    %1535 = vmatpush1.msra.mxu0 0.0
    %1536 = vmatprep.subr.mxu0 0.0
    %1537 = vmatpush1.msra.mxu0 0.0
    %1538 = vmatprep.subr.mxu0 0.0
    %1539 = vmatpush1.msra.mxu0 0.0
    %1540 = vmatprep.subr.mxu0 0.0
    %1541 = vmatpush1.msra.mxu0 0.0
    %1542 = vmatprep.subr.mxu0 0.0
    %1543 = vmatpush1.msra.mxu0 0.0
    %1544 = vmatprep.subr.mxu0 0.0
    %1545 = vmatpush1.msra.mxu0 0.0
    %1546 = vmatprep.subr.mxu0 0.0
    %1547 = vmatpush1.msra.mxu0 0.0
    %1548 = vmatprep.subr.mxu0 0.0
    %1549 = vmatpush1.msra.mxu0 0.0
    %1550 = vmatprep.subr.mxu0 0.0
    %1551 = vmatpush1.msra.mxu0 0.0
    %1552 = vmatprep.subr.mxu0 0.0
    %1553 = vmatpush1.msra.mxu0 0.0
    %1554 = vmatprep.subr.mxu0 0.0
    %1555 = vmatpush1.msra.mxu0 0.0
    %1556 = vmatprep.subr.mxu0 0.0
    %1557 = vmatpush1.msra.mxu0 0.0
    %1558 = vmatprep.subr.mxu0 0.0
    %1559 = vmatpush1.msra.mxu0 0.0
    %1560 = vmatprep.subr.mxu0 0.0
    %1561 = vmatpush1.msra.mxu0 0.0
    %1562 = vmatprep.subr.mxu0 0.0
    %1563 = vmatpush1.msra.mxu0 0.0
    %1564 = vmatprep.subr.mxu0 0.0
    %1565 = vmatpush1.msra.mxu0 0.0
    %1566 = vmatprep.subr.mxu0 0.0
    %1567 = vmatpush1.msra.mxu0 0.0
    %1568 = vmatprep.subr.mxu0 0.0
    %1569 = vmatpush1.msra.mxu0 0.0
    %1570 = vmatprep.subr.mxu0 0.0
    %1571 = vmatpush1.msra.mxu0 0.0
    %1572 = vmatprep.subr.mxu0 0.0
    %1573 = vmatpush1.msra.mxu0 0.0
    %1574 = vmatprep.subr.mxu0 0.0
    %1575 = vmatpush1.msra.mxu0 0.0
    %1576 = vmatprep.subr.mxu0 0.0
    %1577 = vmatpush1.msra.mxu0 0.0
    %1578 = vmatprep.subr.mxu0 0.0
    %1579 = vmatpush1.msra.mxu0 0.0
    %1580 = vmatprep.subr.mxu0 0.0
    %1581 = vmatpush1.msra.mxu0 0.0
    %1582 = vmatprep.subr.mxu0 0.0
    %1583 = vmatpush1.msra.mxu0 0.0
    %1584 = vmatprep.subr.mxu0 0.0
    %1585 = vmatpush1.msra.mxu0 0.0
    %1586 = vmatprep.subr.mxu0 0.0
    %1587 = vmatpush1.msra.mxu0 0.0
    %1588 = vmatprep.mubr.f32.mxu0 0.0
    %1589 = vmatmul.mubr.f32.gmra.mrb[0].mxu0 %v1451
    %v1590 = vpop.f32.mrb[0].mxu0
    %v1591 = vadd.f32 0.0, %v1590
    %v1592 = vpop.f32.mrb[0].mxu0
    %v1593 = vadd.f32 0.0, %v1592
    %1594 = vdwg.mxu0
    %v1595 = vadd.f32 %v1424, %v1520
    %v1596 = vadd.f32 %v1425, %v1522
    %v1597 = vadd.f32 %v1426, %v1591
    %v1598 = vadd.f32 %v1427, %v1593
    %1600 = vset.pattern.permute.xlu0 0
    %1601 = vperm.xlu0 %1600, %v59
    %v1602 = vpop.permute.xlu0 %1601
    %v1604 = vadd.f32 %v1595, %v1602
    %v1605 = vadd.f32 %v1596, %v1602
    %v1606 = vadd.f32 %v1597, %v1602
    %v1607 = vadd.f32 %v1598, %v1602
    %v1608 = vstv %s54
    %v1609 = vmul.f32 %v1604, %v1608
    %v1610 = vmul.f32 %v1605, %v1608
    %v1611 = vmul.f32 %v1606, %v1608
    %v1612 = vmul.f32 %v1607, %v1608
    %v1613 = vadd.f32 %v1609, %v65
    %v1614 = vadd.f32 %v1610, %v66
    %v1615 = vadd.f32 %v1611, %v67
    %v1616 = vadd.f32 %v1612, %v68
    %vm1617 = vcmp.gt.f32.partialorder %v1613, 0.0
    %vm1618 = vcmp.gt.f32.partialorder %v1614, 0.0
    %vm1619 = vcmp.gt.f32.partialorder %v1615, 0.0
    %vm1620 = vcmp.gt.f32.partialorder %v1616, 0.0
    %1622 = vset.pattern.permute.xlu0 0
    %1623 = vperm.xlu0 %1622, %v63
    %v1624 = vpop.permute.xlu0 %1623
    %v1626 = vmul.f32 %v1624, %v1613
    %v1627 = vmul.f32 %v1624, %v1614
    %v1628 = vmul.f32 %v1624, %v1615
    %v1629 = vmul.f32 %v1624, %v1616
    %v1630 = vsel %vm1617, %v1613, %v1626
    %v1631 = vsel %vm1618, %v1614, %v1627
    %v1632 = vsel %vm1619, %v1615, %v1628
    %v1633 = vsel %vm1620, %v1616, %v1629
    %1634 = vrot.lane.b32.xlu0 %v1630, 17
    %v1635 = vpop.permute.xlu0 %1634
    %1636 = vrot.lane.b32.xlu0 %v1631, 17
    %v1637 = vpop.permute.xlu0 %1636
    %1638 = vrot.lane.b32.xlu0 %v1632, 17
    %v1639 = vpop.permute.xlu0 %1638
    %1640 = vrot.lane.b32.xlu0 %v1633, 17
    %v1641 = vpop.permute.xlu0 %1640
    %v1642 = vsel %vm96, %v1639, %v1641
    %v1643 = vsel %vm96, %v1637, %v1639
    %v1644 = vsel %vm96, %v1635, %v1637
    %v1645 = vsel %vm96, %v1641, %v1635
    %v1646 = vmul.f32 %v1645, %v101
    %v1647 = vmul.f32 %v1644, %v102
    %v1648 = vmul.f32 %v1643, %v103
    %v1649 = vmul.f32 %v1642, %v104
    %v1650 = vld [vmem:[%s3] sm:$0xff]
    %1651 = vrot.lane.b32.xlu0 %v1630, 16
    %v1652 = vpop.permute.xlu0 %1651
    %1653 = vrot.lane.b32.xlu0 %v1631, 16
    %v1654 = vpop.permute.xlu0 %1653
    %1655 = vrot.lane.b32.xlu0 %v1632, 16
    %v1656 = vpop.permute.xlu0 %1655
    %1657 = vrot.lane.b32.xlu0 %v1633, 16
    %v1658 = vpop.permute.xlu0 %1657
    %v1659 = vsel %vm118, %v1656, %v1658
    %v1660 = vsel %vm118, %v1654, %v1656
    %v1661 = vsel %vm118, %v1652, %v1654
    %v1662 = vsel %vm118, %v1658, %v1652
    %v1663 = vmul.f32 %v1662, %v123
    %v1664 = vmul.f32 %v1661, %v124
    %v1665 = vmul.f32 %v1660, %v125
    %v1666 = vmul.f32 %v1659, %v126
    %v1667 = vld [vmem:[%s3 + $0x8] sm:$0xff]
    %v1669 = vsel %vm132, %v1667, 0
    %1671 = vmatprep.subr.mxu0 %v1664
    %1672 = vmatpush1.msra.mxu0 %v1663
    %1673 = vmatprep.subr.mxu0 0.0
    %1674 = vmatpush1.msra.mxu0 0.0
    %1675 = vmatprep.subr.mxu0 0.0
    %1676 = vmatpush1.msra.mxu0 0.0
    %1677 = vmatprep.subr.mxu0 0.0
    %1678 = vmatpush1.msra.mxu0 0.0
    %1679 = vmatprep.subr.mxu0 0.0
    %1680 = vmatpush1.msra.mxu0 0.0
    %1681 = vmatprep.subr.mxu0 0.0
    %1682 = vmatpush1.msra.mxu0 0.0
    %1683 = vmatprep.subr.mxu0 0.0
    %1684 = vmatpush1.msra.mxu0 0.0
    %1685 = vmatprep.subr.mxu0 0.0
    %1686 = vmatpush1.msra.mxu0 0.0
    %1687 = vmatprep.subr.mxu0 0.0
    %1688 = vmatpush1.msra.mxu0 0.0
    %1689 = vmatprep.subr.mxu0 0.0
    %1690 = vmatpush1.msra.mxu0 0.0
    %1691 = vmatprep.subr.mxu0 0.0
    %1692 = vmatpush1.msra.mxu0 0.0
    %1693 = vmatprep.subr.mxu0 0.0
    %1694 = vmatpush1.msra.mxu0 0.0
    %1695 = vmatprep.subr.mxu0 0.0
    %1696 = vmatpush1.msra.mxu0 0.0
    %1697 = vmatprep.subr.mxu0 0.0
    %1698 = vmatpush1.msra.mxu0 0.0
    %1699 = vmatprep.subr.mxu0 0.0
    %1700 = vmatpush1.msra.mxu0 0.0
    %1701 = vmatprep.subr.mxu0 0.0
    %1702 = vmatpush1.msra.mxu0 0.0
    %1703 = vmatprep.subr.mxu0 0.0
    %1704 = vmatpush1.msra.mxu0 0.0
    %1705 = vmatprep.subr.mxu0 0.0
    %1706 = vmatpush1.msra.mxu0 0.0
    %1707 = vmatprep.subr.mxu0 0.0
    %1708 = vmatpush1.msra.mxu0 0.0
    %1709 = vmatprep.subr.mxu0 0.0
    %1710 = vmatpush1.msra.mxu0 0.0
    %1711 = vmatprep.subr.mxu0 0.0
    %1712 = vmatpush1.msra.mxu0 0.0
    %1713 = vmatprep.subr.mxu0 0.0
    %1714 = vmatpush1.msra.mxu0 0.0
    %1715 = vmatprep.subr.mxu0 0.0
    %1716 = vmatpush1.msra.mxu0 0.0
    %1717 = vmatprep.subr.mxu0 0.0
    %1718 = vmatpush1.msra.mxu0 0.0
    %1719 = vmatprep.subr.mxu0 0.0
    %1720 = vmatpush1.msra.mxu0 0.0
    %1721 = vmatprep.subr.mxu0 0.0
    %1722 = vmatpush1.msra.mxu0 0.0
    %1723 = vmatprep.subr.mxu0 0.0
    %1724 = vmatpush1.msra.mxu0 0.0
    %1725 = vmatprep.subr.mxu0 0.0
    %1726 = vmatpush1.msra.mxu0 0.0
    %1727 = vmatprep.subr.mxu0 0.0
    %1728 = vmatpush1.msra.mxu0 0.0
    %1729 = vmatprep.subr.mxu0 0.0
    %1730 = vmatpush1.msra.mxu0 0.0
    %1731 = vmatprep.subr.mxu0 0.0
    %1732 = vmatpush1.msra.mxu0 0.0
    %1733 = vmatprep.subr.mxu0 0.0
    %1734 = vmatpush1.msra.mxu0 0.0
    %1735 = vmatprep.mubr.f32.mxu0 0.0
    %1736 = vmatmul.mubr.f32.gmra.mrb[0].mxu0 %v1669
    %v1737 = vpop.f32.mrb[0].mxu0
    %v1738 = vadd.f32 0.0, %v1737
    %v1739 = vpop.f32.mrb[0].mxu0
    %v1740 = vadd.f32 0.0, %v1739
    %1741 = vdwg.mxu0
    %1742 = vmatprep.subr.mxu0 %v1666
    %1743 = vmatpush1.msra.mxu0 %v1665
    %1744 = vmatprep.subr.mxu0 0.0
    %1745 = vmatpush1.msra.mxu0 0.0
    %1746 = vmatprep.subr.mxu0 0.0
    %1747 = vmatpush1.msra.mxu0 0.0
    %1748 = vmatprep.subr.mxu0 0.0
    %1749 = vmatpush1.msra.mxu0 0.0
    %1750 = vmatprep.subr.mxu0 0.0
    %1751 = vmatpush1.msra.mxu0 0.0
    %1752 = vmatprep.subr.mxu0 0.0
    %1753 = vmatpush1.msra.mxu0 0.0
    %1754 = vmatprep.subr.mxu0 0.0
    %1755 = vmatpush1.msra.mxu0 0.0
    %1756 = vmatprep.subr.mxu0 0.0
    %1757 = vmatpush1.msra.mxu0 0.0
    %1758 = vmatprep.subr.mxu0 0.0
    %1759 = vmatpush1.msra.mxu0 0.0
    %1760 = vmatprep.subr.mxu0 0.0
    %1761 = vmatpush1.msra.mxu0 0.0
    %1762 = vmatprep.subr.mxu0 0.0
    %1763 = vmatpush1.msra.mxu0 0.0
    %1764 = vmatprep.subr.mxu0 0.0
    %1765 = vmatpush1.msra.mxu0 0.0
    %1766 = vmatprep.subr.mxu0 0.0
    %1767 = vmatpush1.msra.mxu0 0.0
    %1768 = vmatprep.subr.mxu0 0.0
    %1769 = vmatpush1.msra.mxu0 0.0
    %1770 = vmatprep.subr.mxu0 0.0
    %1771 = vmatpush1.msra.mxu0 0.0
    %1772 = vmatprep.subr.mxu0 0.0
    %1773 = vmatpush1.msra.mxu0 0.0
    %1774 = vmatprep.subr.mxu0 0.0
    %1775 = vmatpush1.msra.mxu0 0.0
    %1776 = vmatprep.subr.mxu0 0.0
    %1777 = vmatpush1.msra.mxu0 0.0
    %1778 = vmatprep.subr.mxu0 0.0
    %1779 = vmatpush1.msra.mxu0 0.0
    %1780 = vmatprep.subr.mxu0 0.0
    %1781 = vmatpush1.msra.mxu0 0.0
    %1782 = vmatprep.subr.mxu0 0.0
    %1783 = vmatpush1.msra.mxu0 0.0
    %1784 = vmatprep.subr.mxu0 0.0
    %1785 = vmatpush1.msra.mxu0 0.0
    %1786 = vmatprep.subr.mxu0 0.0
    %1787 = vmatpush1.msra.mxu0 0.0
    %1788 = vmatprep.subr.mxu0 0.0
    %1789 = vmatpush1.msra.mxu0 0.0
    %1790 = vmatprep.subr.mxu0 0.0
    %1791 = vmatpush1.msra.mxu0 0.0
    %1792 = vmatprep.subr.mxu0 0.0
    %1793 = vmatpush1.msra.mxu0 0.0
    %1794 = vmatprep.subr.mxu0 0.0
    %1795 = vmatpush1.msra.mxu0 0.0
    %1796 = vmatprep.subr.mxu0 0.0
    %1797 = vmatpush1.msra.mxu0 0.0
    %1798 = vmatprep.subr.mxu0 0.0
    %1799 = vmatpush1.msra.mxu0 0.0
    %1800 = vmatprep.subr.mxu0 0.0
    %1801 = vmatpush1.msra.mxu0 0.0
    %1802 = vmatprep.subr.mxu0 0.0
    %1803 = vmatpush1.msra.mxu0 0.0
    %1804 = vmatprep.subr.mxu0 0.0
    %1805 = vmatpush1.msra.mxu0 0.0
    %1806 = vmatprep.mubr.f32.mxu0 0.0
    %1807 = vmatmul.mubr.f32.gmra.mrb[0].mxu0 %v1669
    %v1808 = vpop.f32.mrb[0].mxu0
    %v1809 = vadd.f32 0.0, %v1808
    %v1810 = vpop.f32.mrb[0].mxu0
    %v1811 = vadd.f32 0.0, %v1810
    %1812 = vdwg.mxu0
    %v1814 = vsel %vm132, %v1650, 0
    %1816 = vmatprep.subr.mxu0 %v1647
    %1817 = vmatpush1.msra.mxu0 %v1646
    %1818 = vmatprep.subr.mxu0 0.0
    %1819 = vmatpush1.msra.mxu0 0.0
    %1820 = vmatprep.subr.mxu0 0.0
    %1821 = vmatpush1.msra.mxu0 0.0
    %1822 = vmatprep.subr.mxu0 0.0
    %1823 = vmatpush1.msra.mxu0 0.0
    %1824 = vmatprep.subr.mxu0 0.0
    %1825 = vmatpush1.msra.mxu0 0.0
    %1826 = vmatprep.subr.mxu0 0.0
    %1827 = vmatpush1.msra.mxu0 0.0
    %1828 = vmatprep.subr.mxu0 0.0
    %1829 = vmatpush1.msra.mxu0 0.0
    %1830 = vmatprep.subr.mxu0 0.0
    %1831 = vmatpush1.msra.mxu0 0.0
    %1832 = vmatprep.subr.mxu0 0.0
    %1833 = vmatpush1.msra.mxu0 0.0
    %1834 = vmatprep.subr.mxu0 0.0
    %1835 = vmatpush1.msra.mxu0 0.0
    %1836 = vmatprep.subr.mxu0 0.0
    %1837 = vmatpush1.msra.mxu0 0.0
    %1838 = vmatprep.subr.mxu0 0.0
    %1839 = vmatpush1.msra.mxu0 0.0
    %1840 = vmatprep.subr.mxu0 0.0
    %1841 = vmatpush1.msra.mxu0 0.0
    %1842 = vmatprep.subr.mxu0 0.0
    %1843 = vmatpush1.msra.mxu0 0.0
    %1844 = vmatprep.subr.mxu0 0.0
    %1845 = vmatpush1.msra.mxu0 0.0
    %1846 = vmatprep.subr.mxu0 0.0
    %1847 = vmatpush1.msra.mxu0 0.0
    %1848 = vmatprep.subr.mxu0 0.0
    %1849 = vmatpush1.msra.mxu0 0.0
    %1850 = vmatprep.subr.mxu0 0.0
    %1851 = vmatpush1.msra.mxu0 0.0
    %1852 = vmatprep.subr.mxu0 0.0
    %1853 = vmatpush1.msra.mxu0 0.0
    %1854 = vmatprep.subr.mxu0 0.0
    %1855 = vmatpush1.msra.mxu0 0.0
    %1856 = vmatprep.subr.mxu0 0.0
    %1857 = vmatpush1.msra.mxu0 0.0
    %1858 = vmatprep.subr.mxu0 0.0
    %1859 = vmatpush1.msra.mxu0 0.0
    %1860 = vmatprep.subr.mxu0 0.0
    %1861 = vmatpush1.msra.mxu0 0.0
    %1862 = vmatprep.subr.mxu0 0.0
    %1863 = vmatpush1.msra.mxu0 0.0
    %1864 = vmatprep.subr.mxu0 0.0
    %1865 = vmatpush1.msra.mxu0 0.0
    %1866 = vmatprep.subr.mxu0 0.0
    %1867 = vmatpush1.msra.mxu0 0.0
    %1868 = vmatprep.subr.mxu0 0.0
    %1869 = vmatpush1.msra.mxu0 0.0
    %1870 = vmatprep.subr.mxu0 0.0
    %1871 = vmatpush1.msra.mxu0 0.0
    %1872 = vmatprep.subr.mxu0 0.0
    %1873 = vmatpush1.msra.mxu0 0.0
    %1874 = vmatprep.subr.mxu0 0.0
    %1875 = vmatpush1.msra.mxu0 0.0
    %1876 = vmatprep.subr.mxu0 0.0
    %1877 = vmatpush1.msra.mxu0 0.0
    %1878 = vmatprep.subr.mxu0 0.0
    %1879 = vmatpush1.msra.mxu0 0.0
    %1880 = vmatprep.mubr.f32.mxu0 0.0
    %1881 = vmatmul.mubr.f32.gmra.mrb[0].mxu0 %v1814
    %v1882 = vpop.f32.mrb[0].mxu0
    %v1883 = vadd.f32 %v1738, %v1882
    %v1884 = vpop.f32.mrb[0].mxu0
    %v1885 = vadd.f32 %v1740, %v1884
    %1886 = vdwg.mxu0
    %1887 = vmatprep.subr.mxu0 %v1649
    %1888 = vmatpush1.msra.mxu0 %v1648
    %1889 = vmatprep.subr.mxu0 0.0
    %1890 = vmatpush1.msra.mxu0 0.0
    %1891 = vmatprep.subr.mxu0 0.0
    %1892 = vmatpush1.msra.mxu0 0.0
    %1893 = vmatprep.subr.mxu0 0.0
    %1894 = vmatpush1.msra.mxu0 0.0
    %1895 = vmatprep.subr.mxu0 0.0
    %1896 = vmatpush1.msra.mxu0 0.0
    %1897 = vmatprep.subr.mxu0 0.0
    %1898 = vmatpush1.msra.mxu0 0.0
    %1899 = vmatprep.subr.mxu0 0.0
    %1900 = vmatpush1.msra.mxu0 0.0
    %1901 = vmatprep.subr.mxu0 0.0
    %1902 = vmatpush1.msra.mxu0 0.0
    %1903 = vmatprep.subr.mxu0 0.0
    %1904 = vmatpush1.msra.mxu0 0.0
    %1905 = vmatprep.subr.mxu0 0.0
    %1906 = vmatpush1.msra.mxu0 0.0
    %1907 = vmatprep.subr.mxu0 0.0
    %1908 = vmatpush1.msra.mxu0 0.0
    %1909 = vmatprep.subr.mxu0 0.0
    %1910 = vmatpush1.msra.mxu0 0.0
    %1911 = vmatprep.subr.mxu0 0.0
    %1912 = vmatpush1.msra.mxu0 0.0
    %1913 = vmatprep.subr.mxu0 0.0
    %1914 = vmatpush1.msra.mxu0 0.0
    %1915 = vmatprep.subr.mxu0 0.0
    %1916 = vmatpush1.msra.mxu0 0.0
    %1917 = vmatprep.subr.mxu0 0.0
    %1918 = vmatpush1.msra.mxu0 0.0
    %1919 = vmatprep.subr.mxu0 0.0
    %1920 = vmatpush1.msra.mxu0 0.0
    %1921 = vmatprep.subr.mxu0 0.0
    %1922 = vmatpush1.msra.mxu0 0.0
    %1923 = vmatprep.subr.mxu0 0.0
    %1924 = vmatpush1.msra.mxu0 0.0
    %1925 = vmatprep.subr.mxu0 0.0
    %1926 = vmatpush1.msra.mxu0 0.0
    %1927 = vmatprep.subr.mxu0 0.0
    %1928 = vmatpush1.msra.mxu0 0.0
    %1929 = vmatprep.subr.mxu0 0.0
    %1930 = vmatpush1.msra.mxu0 0.0
    %1931 = vmatprep.subr.mxu0 0.0
    %1932 = vmatpush1.msra.mxu0 0.0
    %1933 = vmatprep.subr.mxu0 0.0
    %1934 = vmatpush1.msra.mxu0 0.0
    %1935 = vmatprep.subr.mxu0 0.0
    %1936 = vmatpush1.msra.mxu0 0.0
    %1937 = vmatprep.subr.mxu0 0.0
    %1938 = vmatpush1.msra.mxu0 0.0
    %1939 = vmatprep.subr.mxu0 0.0
    %1940 = vmatpush1.msra.mxu0 0.0
    %1941 = vmatprep.subr.mxu0 0.0
    %1942 = vmatpush1.msra.mxu0 0.0
    %1943 = vmatprep.subr.mxu0 0.0
    %1944 = vmatpush1.msra.mxu0 0.0
    %1945 = vmatprep.subr.mxu0 0.0
    %1946 = vmatpush1.msra.mxu0 0.0
    %1947 = vmatprep.subr.mxu0 0.0
    %1948 = vmatpush1.msra.mxu0 0.0
    %1949 = vmatprep.subr.mxu0 0.0
    %1950 = vmatpush1.msra.mxu0 0.0
    %1951 = vmatprep.mubr.f32.mxu0 0.0
    %1952 = vmatmul.mubr.f32.gmra.mrb[0].mxu0 %v1814
    %v1953 = vpop.f32.mrb[0].mxu0
    %v1954 = vadd.f32 %v1809, %v1953
    %v1955 = vpop.f32.mrb[0].mxu0
    %v1956 = vadd.f32 %v1811, %v1955
    %1957 = vdwg.mxu0
    %1958 = vrot.lane.b32.xlu0 %v1630, 15
    %v1959 = vpop.permute.xlu0 %1958
    %1960 = vrot.lane.b32.xlu0 %v1631, 15
    %v1961 = vpop.permute.xlu0 %1960
    %1962 = vrot.lane.b32.xlu0 %v1632, 15
    %v1963 = vpop.permute.xlu0 %1962
    %1964 = vrot.lane.b32.xlu0 %v1633, 15
    %v1965 = vpop.permute.xlu0 %1964
    %v1966 = vsel %vm431, %v1963, %v1965
    %v1967 = vsel %vm431, %v1961, %v1963
    %v1968 = vsel %vm431, %v1959, %v1961
    %v1969 = vsel %vm431, %v1965, %v1959
    %v1970 = vmul.f32 %v1969, %v436
    %v1971 = vmul.f32 %v1968, %v437
    %v1972 = vmul.f32 %v1967, %v438
    %v1973 = vmul.f32 %v1966, %v439
    %v1974 = vld [vmem:[%s3 + $0x10] sm:$0xff]
    %v1976 = vsel %vm132, %v1974, 0
    %1978 = vmatprep.subr.mxu0 %v1971
    %1979 = vmatpush1.msra.mxu0 %v1970
    %1980 = vmatprep.subr.mxu0 0.0
    %1981 = vmatpush1.msra.mxu0 0.0
    %1982 = vmatprep.subr.mxu0 0.0
    %1983 = vmatpush1.msra.mxu0 0.0
    %1984 = vmatprep.subr.mxu0 0.0
    %1985 = vmatpush1.msra.mxu0 0.0
    %1986 = vmatprep.subr.mxu0 0.0
    %1987 = vmatpush1.msra.mxu0 0.0
    %1988 = vmatprep.subr.mxu0 0.0
    %1989 = vmatpush1.msra.mxu0 0.0
    %1990 = vmatprep.subr.mxu0 0.0
    %1991 = vmatpush1.msra.mxu0 0.0
    %1992 = vmatprep.subr.mxu0 0.0
    %1993 = vmatpush1.msra.mxu0 0.0
    %1994 = vmatprep.subr.mxu0 0.0
    %1995 = vmatpush1.msra.mxu0 0.0
    %1996 = vmatprep.subr.mxu0 0.0
    %1997 = vmatpush1.msra.mxu0 0.0
    %1998 = vmatprep.subr.mxu0 0.0
    %1999 = vmatpush1.msra.mxu0 0.0
    %2000 = vmatprep.subr.mxu0 0.0
    %2001 = vmatpush1.msra.mxu0 0.0
    %2002 = vmatprep.subr.mxu0 0.0
    %2003 = vmatpush1.msra.mxu0 0.0
    %2004 = vmatprep.subr.mxu0 0.0
    %2005 = vmatpush1.msra.mxu0 0.0
    %2006 = vmatprep.subr.mxu0 0.0
    %2007 = vmatpush1.msra.mxu0 0.0
    %2008 = vmatprep.subr.mxu0 0.0
    %2009 = vmatpush1.msra.mxu0 0.0
    %2010 = vmatprep.subr.mxu0 0.0
    %2011 = vmatpush1.msra.mxu0 0.0
    %2012 = vmatprep.subr.mxu0 0.0
    %2013 = vmatpush1.msra.mxu0 0.0
    %2014 = vmatprep.subr.mxu0 0.0
    %2015 = vmatpush1.msra.mxu0 0.0
    %2016 = vmatprep.subr.mxu0 0.0
    %2017 = vmatpush1.msra.mxu0 0.0
    %2018 = vmatprep.subr.mxu0 0.0
    %2019 = vmatpush1.msra.mxu0 0.0
    %2020 = vmatprep.subr.mxu0 0.0
    %2021 = vmatpush1.msra.mxu0 0.0
    %2022 = vmatprep.subr.mxu0 0.0
    %2023 = vmatpush1.msra.mxu0 0.0
    %2024 = vmatprep.subr.mxu0 0.0
    %2025 = vmatpush1.msra.mxu0 0.0
    %2026 = vmatprep.subr.mxu0 0.0
    %2027 = vmatpush1.msra.mxu0 0.0
    %2028 = vmatprep.subr.mxu0 0.0
    %2029 = vmatpush1.msra.mxu0 0.0
    %2030 = vmatprep.subr.mxu0 0.0
    %2031 = vmatpush1.msra.mxu0 0.0
    %2032 = vmatprep.subr.mxu0 0.0
    %2033 = vmatpush1.msra.mxu0 0.0
    %2034 = vmatprep.subr.mxu0 0.0
    %2035 = vmatpush1.msra.mxu0 0.0
    %2036 = vmatprep.subr.mxu0 0.0
    %2037 = vmatpush1.msra.mxu0 0.0
    %2038 = vmatprep.subr.mxu0 0.0
    %2039 = vmatpush1.msra.mxu0 0.0
    %2040 = vmatprep.subr.mxu0 0.0
    %2041 = vmatpush1.msra.mxu0 0.0
    %2042 = vmatprep.mubr.f32.mxu0 0.0
    %2043 = vmatmul.mubr.f32.gmra.mrb[0].mxu0 %v1976
    %v2044 = vpop.f32.mrb[0].mxu0
    %v2045 = vadd.f32 0.0, %v2044
    %v2046 = vpop.f32.mrb[0].mxu0
    %v2047 = vadd.f32 0.0, %v2046
    %2048 = vdwg.mxu0
    %2049 = vmatprep.subr.mxu0 %v1973
    %2050 = vmatpush1.msra.mxu0 %v1972
    %2051 = vmatprep.subr.mxu0 0.0
    %2052 = vmatpush1.msra.mxu0 0.0
    %2053 = vmatprep.subr.mxu0 0.0
    %2054 = vmatpush1.msra.mxu0 0.0
    %2055 = vmatprep.subr.mxu0 0.0
    %2056 = vmatpush1.msra.mxu0 0.0
    %2057 = vmatprep.subr.mxu0 0.0
    %2058 = vmatpush1.msra.mxu0 0.0
    %2059 = vmatprep.subr.mxu0 0.0
    %2060 = vmatpush1.msra.mxu0 0.0
    %2061 = vmatprep.subr.mxu0 0.0
    %2062 = vmatpush1.msra.mxu0 0.0
    %2063 = vmatprep.subr.mxu0 0.0
    %2064 = vmatpush1.msra.mxu0 0.0
    %2065 = vmatprep.subr.mxu0 0.0
    %2066 = vmatpush1.msra.mxu0 0.0
    %2067 = vmatprep.subr.mxu0 0.0
    %2068 = vmatpush1.msra.mxu0 0.0
    %2069 = vmatprep.subr.mxu0 0.0
    %2070 = vmatpush1.msra.mxu0 0.0
    %2071 = vmatprep.subr.mxu0 0.0
    %2072 = vmatpush1.msra.mxu0 0.0
    %2073 = vmatprep.subr.mxu0 0.0
    %2074 = vmatpush1.msra.mxu0 0.0
    %2075 = vmatprep.subr.mxu0 0.0
    %2076 = vmatpush1.msra.mxu0 0.0
    %2077 = vmatprep.subr.mxu0 0.0
    %2078 = vmatpush1.msra.mxu0 0.0
    %2079 = vmatprep.subr.mxu0 0.0
    %2080 = vmatpush1.msra.mxu0 0.0
    %2081 = vmatprep.subr.mxu0 0.0
    %2082 = vmatpush1.msra.mxu0 0.0
    %2083 = vmatprep.subr.mxu0 0.0
    %2084 = vmatpush1.msra.mxu0 0.0
    %2085 = vmatprep.subr.mxu0 0.0
    %2086 = vmatpush1.msra.mxu0 0.0
    %2087 = vmatprep.subr.mxu0 0.0
    %2088 = vmatpush1.msra.mxu0 0.0
    %2089 = vmatprep.subr.mxu0 0.0
    %2090 = vmatpush1.msra.mxu0 0.0
    %2091 = vmatprep.subr.mxu0 0.0
    %2092 = vmatpush1.msra.mxu0 0.0
    %2093 = vmatprep.subr.mxu0 0.0
    %2094 = vmatpush1.msra.mxu0 0.0
    %2095 = vmatprep.subr.mxu0 0.0
    %2096 = vmatpush1.msra.mxu0 0.0
    %2097 = vmatprep.subr.mxu0 0.0
    %2098 = vmatpush1.msra.mxu0 0.0
    %2099 = vmatprep.subr.mxu0 0.0
    %2100 = vmatpush1.msra.mxu0 0.0
    %2101 = vmatprep.subr.mxu0 0.0
    %2102 = vmatpush1.msra.mxu0 0.0
    %2103 = vmatprep.subr.mxu0 0.0
    %2104 = vmatpush1.msra.mxu0 0.0
    %2105 = vmatprep.subr.mxu0 0.0
    %2106 = vmatpush1.msra.mxu0 0.0
    %2107 = vmatprep.subr.mxu0 0.0
    %2108 = vmatpush1.msra.mxu0 0.0
    %2109 = vmatprep.subr.mxu0 0.0
    %2110 = vmatpush1.msra.mxu0 0.0
    %2111 = vmatprep.subr.mxu0 0.0
    %2112 = vmatpush1.msra.mxu0 0.0
    %2113 = vmatprep.mubr.f32.mxu0 0.0
    %2114 = vmatmul.mubr.f32.gmra.mrb[0].mxu0 %v1976
    %v2115 = vpop.f32.mrb[0].mxu0
    %v2116 = vadd.f32 0.0, %v2115
    %v2117 = vpop.f32.mrb[0].mxu0
    %v2118 = vadd.f32 0.0, %v2117
    %2119 = vdwg.mxu0
    %v2120 = vadd.f32 %v1883, %v2045
    %v2121 = vadd.f32 %v1885, %v2047
    %v2122 = vadd.f32 %v1954, %v2116
    %v2123 = vadd.f32 %v1956, %v2118
    %2124 = vrot.lane.b32.xlu0 %v1630, 1
    %v2125 = vpop.permute.xlu0 %2124
    %2126 = vrot.lane.b32.xlu0 %v1631, 1
    %v2127 = vpop.permute.xlu0 %2126
    %2128 = vrot.lane.b32.xlu0 %v1632, 1
    %v2129 = vpop.permute.xlu0 %2128
    %2130 = vrot.lane.b32.xlu0 %v1633, 1
    %v2131 = vpop.permute.xlu0 %2130
    %v2132 = vsel %vm602, %v2129, %v2131
    %v2133 = vsel %vm602, %v2127, %v2129
    %v2134 = vsel %vm602, %v2125, %v2127
    %v2135 = vsel %vm602, %v2131, %v2125
    %v2136 = vmul.f32 %v2135, %v607
    %v2137 = vmul.f32 %v2134, %v608
    %v2138 = vmul.f32 %v2133, %v609
    %v2139 = vmul.f32 %v2132, %v610
    %v2140 = vld [vmem:[%s3 + $0x18] sm:$0xff]
    %v2142 = vsel %vm132, %v2140, 0
    %2144 = vmatprep.subr.mxu0 %v2137
    %2145 = vmatpush1.msra.mxu0 %v2136
    %2146 = vmatprep.subr.mxu0 0.0
    %2147 = vmatpush1.msra.mxu0 0.0
    %2148 = vmatprep.subr.mxu0 0.0
    %2149 = vmatpush1.msra.mxu0 0.0
    %2150 = vmatprep.subr.mxu0 0.0
    %2151 = vmatpush1.msra.mxu0 0.0
    %2152 = vmatprep.subr.mxu0 0.0
    %2153 = vmatpush1.msra.mxu0 0.0
    %2154 = vmatprep.subr.mxu0 0.0
    %2155 = vmatpush1.msra.mxu0 0.0
    %2156 = vmatprep.subr.mxu0 0.0
    %2157 = vmatpush1.msra.mxu0 0.0
    %2158 = vmatprep.subr.mxu0 0.0
    %2159 = vmatpush1.msra.mxu0 0.0
    %2160 = vmatprep.subr.mxu0 0.0
    %2161 = vmatpush1.msra.mxu0 0.0
    %2162 = vmatprep.subr.mxu0 0.0
    %2163 = vmatpush1.msra.mxu0 0.0
    %2164 = vmatprep.subr.mxu0 0.0
    %2165 = vmatpush1.msra.mxu0 0.0
    %2166 = vmatprep.subr.mxu0 0.0
    %2167 = vmatpush1.msra.mxu0 0.0
    %2168 = vmatprep.subr.mxu0 0.0
    %2169 = vmatpush1.msra.mxu0 0.0
    %2170 = vmatprep.subr.mxu0 0.0
    %2171 = vmatpush1.msra.mxu0 0.0
    %2172 = vmatprep.subr.mxu0 0.0
    %2173 = vmatpush1.msra.mxu0 0.0
    %2174 = vmatprep.subr.mxu0 0.0
    %2175 = vmatpush1.msra.mxu0 0.0
    %2176 = vmatprep.subr.mxu0 0.0
    %2177 = vmatpush1.msra.mxu0 0.0
    %2178 = vmatprep.subr.mxu0 0.0
    %2179 = vmatpush1.msra.mxu0 0.0
    %2180 = vmatprep.subr.mxu0 0.0
    %2181 = vmatpush1.msra.mxu0 0.0
    %2182 = vmatprep.subr.mxu0 0.0
    %2183 = vmatpush1.msra.mxu0 0.0
    %2184 = vmatprep.subr.mxu0 0.0
    %2185 = vmatpush1.msra.mxu0 0.0
    %2186 = vmatprep.subr.mxu0 0.0
    %2187 = vmatpush1.msra.mxu0 0.0
    %2188 = vmatprep.subr.mxu0 0.0
    %2189 = vmatpush1.msra.mxu0 0.0
    %2190 = vmatprep.subr.mxu0 0.0
    %2191 = vmatpush1.msra.mxu0 0.0
    %2192 = vmatprep.subr.mxu0 0.0
    %2193 = vmatpush1.msra.mxu0 0.0
    %2194 = vmatprep.subr.mxu0 0.0
    %2195 = vmatpush1.msra.mxu0 0.0
    %2196 = vmatprep.subr.mxu0 0.0
    %2197 = vmatpush1.msra.mxu0 0.0
    %2198 = vmatprep.subr.mxu0 0.0
    %2199 = vmatpush1.msra.mxu0 0.0
    %2200 = vmatprep.subr.mxu0 0.0
    %2201 = vmatpush1.msra.mxu0 0.0
    %2202 = vmatprep.subr.mxu0 0.0
    %2203 = vmatpush1.msra.mxu0 0.0
    %2204 = vmatprep.subr.mxu0 0.0
    %2205 = vmatpush1.msra.mxu0 0.0
    %2206 = vmatprep.subr.mxu0 0.0
    %2207 = vmatpush1.msra.mxu0 0.0
    %2208 = vmatprep.mubr.f32.mxu0 0.0
    %2209 = vmatmul.mubr.f32.gmra.mrb[0].mxu0 %v2142
    %v2210 = vpop.f32.mrb[0].mxu0
    %v2211 = vadd.f32 0.0, %v2210
    %v2212 = vpop.f32.mrb[0].mxu0
    %v2213 = vadd.f32 0.0, %v2212
    %2214 = vdwg.mxu0
    %2215 = vmatprep.subr.mxu0 %v2139
    %2216 = vmatpush1.msra.mxu0 %v2138
    %2217 = vmatprep.subr.mxu0 0.0
    %2218 = vmatpush1.msra.mxu0 0.0
    %2219 = vmatprep.subr.mxu0 0.0
    %2220 = vmatpush1.msra.mxu0 0.0
    %2221 = vmatprep.subr.mxu0 0.0
    %2222 = vmatpush1.msra.mxu0 0.0
    %2223 = vmatprep.subr.mxu0 0.0
    %2224 = vmatpush1.msra.mxu0 0.0
    %2225 = vmatprep.subr.mxu0 0.0
    %2226 = vmatpush1.msra.mxu0 0.0
    %2227 = vmatprep.subr.mxu0 0.0
    %2228 = vmatpush1.msra.mxu0 0.0
    %2229 = vmatprep.subr.mxu0 0.0
    %2230 = vmatpush1.msra.mxu0 0.0
    %2231 = vmatprep.subr.mxu0 0.0
    %2232 = vmatpush1.msra.mxu0 0.0
    %2233 = vmatprep.subr.mxu0 0.0
    %2234 = vmatpush1.msra.mxu0 0.0
    %2235 = vmatprep.subr.mxu0 0.0
    %2236 = vmatpush1.msra.mxu0 0.0
    %2237 = vmatprep.subr.mxu0 0.0
    %2238 = vmatpush1.msra.mxu0 0.0
    %2239 = vmatprep.subr.mxu0 0.0
    %2240 = vmatpush1.msra.mxu0 0.0
    %2241 = vmatprep.subr.mxu0 0.0
    %2242 = vmatpush1.msra.mxu0 0.0
    %2243 = vmatprep.subr.mxu0 0.0
    %2244 = vmatpush1.msra.mxu0 0.0
    %2245 = vmatprep.subr.mxu0 0.0
    %2246 = vmatpush1.msra.mxu0 0.0
    %2247 = vmatprep.subr.mxu0 0.0
    %2248 = vmatpush1.msra.mxu0 0.0
    %2249 = vmatprep.subr.mxu0 0.0
    %2250 = vmatpush1.msra.mxu0 0.0
    %2251 = vmatprep.subr.mxu0 0.0
    %2252 = vmatpush1.msra.mxu0 0.0
    %2253 = vmatprep.subr.mxu0 0.0
    %2254 = vmatpush1.msra.mxu0 0.0
    %2255 = vmatprep.subr.mxu0 0.0
    %2256 = vmatpush1.msra.mxu0 0.0
    %2257 = vmatprep.subr.mxu0 0.0
    %2258 = vmatpush1.msra.mxu0 0.0
    %2259 = vmatprep.subr.mxu0 0.0
    %2260 = vmatpush1.msra.mxu0 0.0
    %2261 = vmatprep.subr.mxu0 0.0
    %2262 = vmatpush1.msra.mxu0 0.0
    %2263 = vmatprep.subr.mxu0 0.0
    %2264 = vmatpush1.msra.mxu0 0.0
    %2265 = vmatprep.subr.mxu0 0.0
    %2266 = vmatpush1.msra.mxu0 0.0
    %2267 = vmatprep.subr.mxu0 0.0
    %2268 = vmatpush1.msra.mxu0 0.0
    %2269 = vmatprep.subr.mxu0 0.0
    %2270 = vmatpush1.msra.mxu0 0.0
    %2271 = vmatprep.subr.mxu0 0.0
    %2272 = vmatpush1.msra.mxu0 0.0
    %2273 = vmatprep.subr.mxu0 0.0
    %2274 = vmatpush1.msra.mxu0 0.0
    %2275 = vmatprep.subr.mxu0 0.0
    %2276 = vmatpush1.msra.mxu0 0.0
    %2277 = vmatprep.subr.mxu0 0.0
    %2278 = vmatpush1.msra.mxu0 0.0
    %2279 = vmatprep.mubr.f32.mxu0 0.0
    %2280 = vmatmul.mubr.f32.gmra.mrb[0].mxu0 %v2142
    %v2281 = vpop.f32.mrb[0].mxu0
    %v2282 = vadd.f32 0.0, %v2281
    %v2283 = vpop.f32.mrb[0].mxu0
    %v2284 = vadd.f32 0.0, %v2283
    %2285 = vdwg.mxu0
    %v2286 = vadd.f32 %v2120, %v2211
    %v2287 = vadd.f32 %v2121, %v2213
    %v2288 = vadd.f32 %v2122, %v2282
    %v2289 = vadd.f32 %v2123, %v2284
    %v2290 = vld [vmem:[%s3 + $0x20] sm:$0xff]
    %v2292 = vsel %vm132, %v2290, 0
    %2294 = vmatprep.subr.mxu0 %v1631
    %2295 = vmatpush1.msra.mxu0 %v1630
    %2296 = vmatprep.subr.mxu0 0.0
    %2297 = vmatpush1.msra.mxu0 0.0
    %2298 = vmatprep.subr.mxu0 0.0
    %2299 = vmatpush1.msra.mxu0 0.0
    %2300 = vmatprep.subr.mxu0 0.0
    %2301 = vmatpush1.msra.mxu0 0.0
    %2302 = vmatprep.subr.mxu0 0.0
    %2303 = vmatpush1.msra.mxu0 0.0
    %2304 = vmatprep.subr.mxu0 0.0
    %2305 = vmatpush1.msra.mxu0 0.0
    %2306 = vmatprep.subr.mxu0 0.0
    %2307 = vmatpush1.msra.mxu0 0.0
    %2308 = vmatprep.subr.mxu0 0.0
    %2309 = vmatpush1.msra.mxu0 0.0
    %2310 = vmatprep.subr.mxu0 0.0
    %2311 = vmatpush1.msra.mxu0 0.0
    %2312 = vmatprep.subr.mxu0 0.0
    %2313 = vmatpush1.msra.mxu0 0.0
    %2314 = vmatprep.subr.mxu0 0.0
    %2315 = vmatpush1.msra.mxu0 0.0
    %2316 = vmatprep.subr.mxu0 0.0
    %2317 = vmatpush1.msra.mxu0 0.0
    %2318 = vmatprep.subr.mxu0 0.0
    %2319 = vmatpush1.msra.mxu0 0.0
    %2320 = vmatprep.subr.mxu0 0.0
    %2321 = vmatpush1.msra.mxu0 0.0
    %2322 = vmatprep.subr.mxu0 0.0
    %2323 = vmatpush1.msra.mxu0 0.0
    %2324 = vmatprep.subr.mxu0 0.0
    %2325 = vmatpush1.msra.mxu0 0.0
    %2326 = vmatprep.subr.mxu0 0.0
    %2327 = vmatpush1.msra.mxu0 0.0
    %2328 = vmatprep.subr.mxu0 0.0
    %2329 = vmatpush1.msra.mxu0 0.0
    %2330 = vmatprep.subr.mxu0 0.0
    %2331 = vmatpush1.msra.mxu0 0.0
    %2332 = vmatprep.subr.mxu0 0.0
    %2333 = vmatpush1.msra.mxu0 0.0
    %2334 = vmatprep.subr.mxu0 0.0
    %2335 = vmatpush1.msra.mxu0 0.0
    %2336 = vmatprep.subr.mxu0 0.0
    %2337 = vmatpush1.msra.mxu0 0.0
    %2338 = vmatprep.subr.mxu0 0.0
    %2339 = vmatpush1.msra.mxu0 0.0
    %2340 = vmatprep.subr.mxu0 0.0
    %2341 = vmatpush1.msra.mxu0 0.0
    %2342 = vmatprep.subr.mxu0 0.0
    %2343 = vmatpush1.msra.mxu0 0.0
    %2344 = vmatprep.subr.mxu0 0.0
    %2345 = vmatpush1.msra.mxu0 0.0
    %2346 = vmatprep.subr.mxu0 0.0
    %2347 = vmatpush1.msra.mxu0 0.0
    %2348 = vmatprep.subr.mxu0 0.0
    %2349 = vmatpush1.msra.mxu0 0.0
    %2350 = vmatprep.subr.mxu0 0.0
    %2351 = vmatpush1.msra.mxu0 0.0
    %2352 = vmatprep.subr.mxu0 0.0
    %2353 = vmatpush1.msra.mxu0 0.0
    %2354 = vmatprep.subr.mxu0 0.0
    %2355 = vmatpush1.msra.mxu0 0.0
    %2356 = vmatprep.subr.mxu0 0.0
    %2357 = vmatpush1.msra.mxu0 0.0
    %2358 = vmatprep.mubr.f32.mxu0 0.0
    %2359 = vmatmul.mubr.f32.gmra.mrb[0].mxu0 %v2292
    %v2360 = vpop.f32.mrb[0].mxu0
    %v2361 = vadd.f32 0.0, %v2360
    %v2362 = vpop.f32.mrb[0].mxu0
    %v2363 = vadd.f32 0.0, %v2362
    %2364 = vdwg.mxu0
    %2365 = vmatprep.subr.mxu0 %v1633
    %2366 = vmatpush1.msra.mxu0 %v1632
    %2367 = vmatprep.subr.mxu0 0.0
    %2368 = vmatpush1.msra.mxu0 0.0
    %2369 = vmatprep.subr.mxu0 0.0
    %2370 = vmatpush1.msra.mxu0 0.0
    %2371 = vmatprep.subr.mxu0 0.0
    %2372 = vmatpush1.msra.mxu0 0.0
    %2373 = vmatprep.subr.mxu0 0.0
    %2374 = vmatpush1.msra.mxu0 0.0
    %2375 = vmatprep.subr.mxu0 0.0
    %2376 = vmatpush1.msra.mxu0 0.0
    %2377 = vmatprep.subr.mxu0 0.0
    %2378 = vmatpush1.msra.mxu0 0.0
    %2379 = vmatprep.subr.mxu0 0.0
    %2380 = vmatpush1.msra.mxu0 0.0
    %2381 = vmatprep.subr.mxu0 0.0
    %2382 = vmatpush1.msra.mxu0 0.0
    %2383 = vmatprep.subr.mxu0 0.0
    %2384 = vmatpush1.msra.mxu0 0.0
    %2385 = vmatprep.subr.mxu0 0.0
    %2386 = vmatpush1.msra.mxu0 0.0
    %2387 = vmatprep.subr.mxu0 0.0
    %2388 = vmatpush1.msra.mxu0 0.0
    %2389 = vmatprep.subr.mxu0 0.0
    %2390 = vmatpush1.msra.mxu0 0.0
    %2391 = vmatprep.subr.mxu0 0.0
    %2392 = vmatpush1.msra.mxu0 0.0
    %2393 = vmatprep.subr.mxu0 0.0
    %2394 = vmatpush1.msra.mxu0 0.0
    %2395 = vmatprep.subr.mxu0 0.0
    %2396 = vmatpush1.msra.mxu0 0.0
    %2397 = vmatprep.subr.mxu0 0.0
    %2398 = vmatpush1.msra.mxu0 0.0
    %2399 = vmatprep.subr.mxu0 0.0
    %2400 = vmatpush1.msra.mxu0 0.0
    %2401 = vmatprep.subr.mxu0 0.0
    %2402 = vmatpush1.msra.mxu0 0.0
    %2403 = vmatprep.subr.mxu0 0.0
    %2404 = vmatpush1.msra.mxu0 0.0
    %2405 = vmatprep.subr.mxu0 0.0
    %2406 = vmatpush1.msra.mxu0 0.0
    %2407 = vmatprep.subr.mxu0 0.0
    %2408 = vmatpush1.msra.mxu0 0.0
    %2409 = vmatprep.subr.mxu0 0.0
    %2410 = vmatpush1.msra.mxu0 0.0
    %2411 = vmatprep.subr.mxu0 0.0
    %2412 = vmatpush1.msra.mxu0 0.0
    %2413 = vmatprep.subr.mxu0 0.0
    %2414 = vmatpush1.msra.mxu0 0.0
    %2415 = vmatprep.subr.mxu0 0.0
    %2416 = vmatpush1.msra.mxu0 0.0
    %2417 = vmatprep.subr.mxu0 0.0
    %2418 = vmatpush1.msra.mxu0 0.0
    %2419 = vmatprep.subr.mxu0 0.0
    %2420 = vmatpush1.msra.mxu0 0.0
    %2421 = vmatprep.subr.mxu0 0.0
    %2422 = vmatpush1.msra.mxu0 0.0
    %2423 = vmatprep.subr.mxu0 0.0
    %2424 = vmatpush1.msra.mxu0 0.0
    %2425 = vmatprep.subr.mxu0 0.0
    %2426 = vmatpush1.msra.mxu0 0.0
    %2427 = vmatprep.subr.mxu0 0.0
    %2428 = vmatpush1.msra.mxu0 0.0
    %2429 = vmatprep.mubr.f32.mxu0 0.0
    %2430 = vmatmul.mubr.f32.gmra.mrb[0].mxu0 %v2292
    %v2431 = vpop.f32.mrb[0].mxu0
    %v2432 = vadd.f32 0.0, %v2431
    %v2433 = vpop.f32.mrb[0].mxu0
    %v2434 = vadd.f32 0.0, %v2433
    %2435 = vdwg.mxu0
    %v2436 = vadd.f32 %v2286, %v2361
    %v2437 = vadd.f32 %v2287, %v2363
    %v2438 = vadd.f32 %v2288, %v2432
    %v2439 = vadd.f32 %v2289, %v2434
    %2440 = vrot.lane.b32.xlu0 %v1630, 127
    %v2441 = vpop.permute.xlu0 %2440
    %2442 = vrot.lane.b32.xlu0 %v1631, 127
    %v2443 = vpop.permute.xlu0 %2442
    %2444 = vrot.lane.b32.xlu0 %v1632, 127
    %v2445 = vpop.permute.xlu0 %2444
    %2446 = vrot.lane.b32.xlu0 %v1633, 127
    %v2447 = vpop.permute.xlu0 %2446
    %v2448 = vsel %vm923, %v2445, %v2447
    %v2449 = vsel %vm923, %v2443, %v2445
    %v2450 = vsel %vm923, %v2441, %v2443
    %v2451 = vsel %vm923, %v2447, %v2441
    %v2452 = vmul.f32 %v2450, %v928
    %v2453 = vmul.f32 %v2449, %v929
    %v2454 = vmul.f32 %v2448, %v930
    %v2455 = vmul.f32 %v2451, %v931
    %v2456 = vld [vmem:[%s3 + $0x28] sm:$0xff]
    %v2458 = vsel %vm132, %v2456, 0
    %2460 = vmatprep.subr.mxu0 %v2453
    %2461 = vmatpush1.msra.mxu0 %v2452
    %2462 = vmatprep.subr.mxu0 0.0
    %2463 = vmatpush1.msra.mxu0 0.0
    %2464 = vmatprep.subr.mxu0 0.0
    %2465 = vmatpush1.msra.mxu0 0.0
    %2466 = vmatprep.subr.mxu0 0.0
    %2467 = vmatpush1.msra.mxu0 0.0
    %2468 = vmatprep.subr.mxu0 0.0
    %2469 = vmatpush1.msra.mxu0 0.0
    %2470 = vmatprep.subr.mxu0 0.0
    %2471 = vmatpush1.msra.mxu0 0.0
    %2472 = vmatprep.subr.mxu0 0.0
    %2473 = vmatpush1.msra.mxu0 0.0
    %2474 = vmatprep.subr.mxu0 0.0
    %2475 = vmatpush1.msra.mxu0 0.0
    %2476 = vmatprep.subr.mxu0 0.0
    %2477 = vmatpush1.msra.mxu0 0.0
    %2478 = vmatprep.subr.mxu0 0.0
    %2479 = vmatpush1.msra.mxu0 0.0
    %2480 = vmatprep.subr.mxu0 0.0
    %2481 = vmatpush1.msra.mxu0 0.0
    %2482 = vmatprep.subr.mxu0 0.0
    %2483 = vmatpush1.msra.mxu0 0.0
    %2484 = vmatprep.subr.mxu0 0.0
    %2485 = vmatpush1.msra.mxu0 0.0
    %2486 = vmatprep.subr.mxu0 0.0
    %2487 = vmatpush1.msra.mxu0 0.0
    %2488 = vmatprep.subr.mxu0 0.0
    %2489 = vmatpush1.msra.mxu0 0.0
    %2490 = vmatprep.subr.mxu0 0.0
    %2491 = vmatpush1.msra.mxu0 0.0
    %2492 = vmatprep.subr.mxu0 0.0
    %2493 = vmatpush1.msra.mxu0 0.0
    %2494 = vmatprep.subr.mxu0 0.0
    %2495 = vmatpush1.msra.mxu0 0.0
    %2496 = vmatprep.subr.mxu0 0.0
    %2497 = vmatpush1.msra.mxu0 0.0
    %2498 = vmatprep.subr.mxu0 0.0
    %2499 = vmatpush1.msra.mxu0 0.0
    %2500 = vmatprep.subr.mxu0 0.0
    %2501 = vmatpush1.msra.mxu0 0.0
    %2502 = vmatprep.subr.mxu0 0.0
    %2503 = vmatpush1.msra.mxu0 0.0
    %2504 = vmatprep.subr.mxu0 0.0
    %2505 = vmatpush1.msra.mxu0 0.0
    %2506 = vmatprep.subr.mxu0 0.0
    %2507 = vmatpush1.msra.mxu0 0.0
    %2508 = vmatprep.subr.mxu0 0.0
    %2509 = vmatpush1.msra.mxu0 0.0
    %2510 = vmatprep.subr.mxu0 0.0
    %2511 = vmatpush1.msra.mxu0 0.0
    %2512 = vmatprep.subr.mxu0 0.0
    %2513 = vmatpush1.msra.mxu0 0.0
    %2514 = vmatprep.subr.mxu0 0.0
    %2515 = vmatpush1.msra.mxu0 0.0
    %2516 = vmatprep.subr.mxu0 0.0
    %2517 = vmatpush1.msra.mxu0 0.0
    %2518 = vmatprep.subr.mxu0 0.0
    %2519 = vmatpush1.msra.mxu0 0.0
    %2520 = vmatprep.subr.mxu0 0.0
    %2521 = vmatpush1.msra.mxu0 0.0
    %2522 = vmatprep.subr.mxu0 0.0
    %2523 = vmatpush1.msra.mxu0 0.0
    %2524 = vmatprep.mubr.f32.mxu0 0.0
    %2525 = vmatmul.mubr.f32.gmra.mrb[0].mxu0 %v2458
    %v2526 = vpop.f32.mrb[0].mxu0
    %v2527 = vadd.f32 0.0, %v2526
    %v2528 = vpop.f32.mrb[0].mxu0
    %v2529 = vadd.f32 0.0, %v2528
    %2530 = vdwg.mxu0
    %2531 = vmatprep.subr.mxu0 %v2455
    %2532 = vmatpush1.msra.mxu0 %v2454
    %2533 = vmatprep.subr.mxu0 0.0
    %2534 = vmatpush1.msra.mxu0 0.0
    %2535 = vmatprep.subr.mxu0 0.0
    %2536 = vmatpush1.msra.mxu0 0.0
    %2537 = vmatprep.subr.mxu0 0.0
    %2538 = vmatpush1.msra.mxu0 0.0
    %2539 = vmatprep.subr.mxu0 0.0
    %2540 = vmatpush1.msra.mxu0 0.0
    %2541 = vmatprep.subr.mxu0 0.0
    %2542 = vmatpush1.msra.mxu0 0.0
    %2543 = vmatprep.subr.mxu0 0.0
    %2544 = vmatpush1.msra.mxu0 0.0
    %2545 = vmatprep.subr.mxu0 0.0
    %2546 = vmatpush1.msra.mxu0 0.0
    %2547 = vmatprep.subr.mxu0 0.0
    %2548 = vmatpush1.msra.mxu0 0.0
    %2549 = vmatprep.subr.mxu0 0.0
    %2550 = vmatpush1.msra.mxu0 0.0
    %2551 = vmatprep.subr.mxu0 0.0
    %2552 = vmatpush1.msra.mxu0 0.0
    %2553 = vmatprep.subr.mxu0 0.0
    %2554 = vmatpush1.msra.mxu0 0.0
    %2555 = vmatprep.subr.mxu0 0.0
    %2556 = vmatpush1.msra.mxu0 0.0
    %2557 = vmatprep.subr.mxu0 0.0
    %2558 = vmatpush1.msra.mxu0 0.0
    %2559 = vmatprep.subr.mxu0 0.0
    %2560 = vmatpush1.msra.mxu0 0.0
    %2561 = vmatprep.subr.mxu0 0.0
    %2562 = vmatpush1.msra.mxu0 0.0
    %2563 = vmatprep.subr.mxu0 0.0
    %2564 = vmatpush1.msra.mxu0 0.0
    %2565 = vmatprep.subr.mxu0 0.0
    %2566 = vmatpush1.msra.mxu0 0.0
    %2567 = vmatprep.subr.mxu0 0.0
    %2568 = vmatpush1.msra.mxu0 0.0
    %2569 = vmatprep.subr.mxu0 0.0
    %2570 = vmatpush1.msra.mxu0 0.0
    %2571 = vmatprep.subr.mxu0 0.0
    %2572 = vmatpush1.msra.mxu0 0.0
    %2573 = vmatprep.subr.mxu0 0.0
    %2574 = vmatpush1.msra.mxu0 0.0
    %2575 = vmatprep.subr.mxu0 0.0
    %2576 = vmatpush1.msra.mxu0 0.0
    %2577 = vmatprep.subr.mxu0 0.0
    %2578 = vmatpush1.msra.mxu0 0.0
    %2579 = vmatprep.subr.mxu0 0.0
    %2580 = vmatpush1.msra.mxu0 0.0
    %2581 = vmatprep.subr.mxu0 0.0
    %2582 = vmatpush1.msra.mxu0 0.0
    %2583 = vmatprep.subr.mxu0 0.0
    %2584 = vmatpush1.msra.mxu0 0.0
    %2585 = vmatprep.subr.mxu0 0.0
    %2586 = vmatpush1.msra.mxu0 0.0
    %2587 = vmatprep.subr.mxu0 0.0
    %2588 = vmatpush1.msra.mxu0 0.0
    %2589 = vmatprep.subr.mxu0 0.0
    %2590 = vmatpush1.msra.mxu0 0.0
    %2591 = vmatprep.subr.mxu0 0.0
    %2592 = vmatpush1.msra.mxu0 0.0
    %2593 = vmatprep.subr.mxu0 0.0
    %2594 = vmatpush1.msra.mxu0 0.0
    %2595 = vmatprep.mubr.f32.mxu0 0.0
    %2596 = vmatmul.mubr.f32.gmra.mrb[0].mxu0 %v2458
    %v2597 = vpop.f32.mrb[0].mxu0
    %v2598 = vadd.f32 0.0, %v2597
    %v2599 = vpop.f32.mrb[0].mxu0
    %v2600 = vadd.f32 0.0, %v2599
    %2601 = vdwg.mxu0
    %v2602 = vadd.f32 %v2436, %v2527
    %v2603 = vadd.f32 %v2437, %v2529
    %v2604 = vadd.f32 %v2438, %v2598
    %v2605 = vadd.f32 %v2439, %v2600
    %2606 = vrot.lane.b32.xlu0 %v1630, 113
    %v2607 = vpop.permute.xlu0 %2606
    %2608 = vrot.lane.b32.xlu0 %v1631, 113
    %v2609 = vpop.permute.xlu0 %2608
    %2610 = vrot.lane.b32.xlu0 %v1632, 113
    %v2611 = vpop.permute.xlu0 %2610
    %2612 = vrot.lane.b32.xlu0 %v1633, 113
    %v2613 = vpop.permute.xlu0 %2612
    %v2614 = vsel %vm1094, %v2611, %v2613
    %v2615 = vsel %vm1094, %v2609, %v2611
    %v2616 = vsel %vm1094, %v2607, %v2609
    %v2617 = vsel %vm1094, %v2613, %v2607
    %v2618 = vmul.f32 %v2616, %v1099
    %v2619 = vmul.f32 %v2615, %v1100
    %v2620 = vmul.f32 %v2614, %v1101
    %v2621 = vmul.f32 %v2617, %v1102
    %v2622 = vld [vmem:[%s3 + $0x30] sm:$0xff]
    %v2624 = vsel %vm132, %v2622, 0
    %2626 = vmatprep.subr.mxu0 %v2619
    %2627 = vmatpush1.msra.mxu0 %v2618
    %2628 = vmatprep.subr.mxu0 0.0
    %2629 = vmatpush1.msra.mxu0 0.0
    %2630 = vmatprep.subr.mxu0 0.0
    %2631 = vmatpush1.msra.mxu0 0.0
    %2632 = vmatprep.subr.mxu0 0.0
    %2633 = vmatpush1.msra.mxu0 0.0
    %2634 = vmatprep.subr.mxu0 0.0
    %2635 = vmatpush1.msra.mxu0 0.0
    %2636 = vmatprep.subr.mxu0 0.0
    %2637 = vmatpush1.msra.mxu0 0.0
    %2638 = vmatprep.subr.mxu0 0.0
    %2639 = vmatpush1.msra.mxu0 0.0
    %2640 = vmatprep.subr.mxu0 0.0
    %2641 = vmatpush1.msra.mxu0 0.0
    %2642 = vmatprep.subr.mxu0 0.0
    %2643 = vmatpush1.msra.mxu0 0.0
    %2644 = vmatprep.subr.mxu0 0.0
    %2645 = vmatpush1.msra.mxu0 0.0
    %2646 = vmatprep.subr.mxu0 0.0
    %2647 = vmatpush1.msra.mxu0 0.0
    %2648 = vmatprep.subr.mxu0 0.0
    %2649 = vmatpush1.msra.mxu0 0.0
    %2650 = vmatprep.subr.mxu0 0.0
    %2651 = vmatpush1.msra.mxu0 0.0
    %2652 = vmatprep.subr.mxu0 0.0
    %2653 = vmatpush1.msra.mxu0 0.0
    %2654 = vmatprep.subr.mxu0 0.0
    %2655 = vmatpush1.msra.mxu0 0.0
    %2656 = vmatprep.subr.mxu0 0.0
    %2657 = vmatpush1.msra.mxu0 0.0
    %2658 = vmatprep.subr.mxu0 0.0
    %2659 = vmatpush1.msra.mxu0 0.0
    %2660 = vmatprep.subr.mxu0 0.0
    %2661 = vmatpush1.msra.mxu0 0.0
    %2662 = vmatprep.subr.mxu0 0.0
    %2663 = vmatpush1.msra.mxu0 0.0
    %2664 = vmatprep.subr.mxu0 0.0
    %2665 = vmatpush1.msra.mxu0 0.0
    %2666 = vmatprep.subr.mxu0 0.0
    %2667 = vmatpush1.msra.mxu0 0.0
    %2668 = vmatprep.subr.mxu0 0.0
    %2669 = vmatpush1.msra.mxu0 0.0
    %2670 = vmatprep.subr.mxu0 0.0
    %2671 = vmatpush1.msra.mxu0 0.0
    %2672 = vmatprep.subr.mxu0 0.0
    %2673 = vmatpush1.msra.mxu0 0.0
    %2674 = vmatprep.subr.mxu0 0.0
    %2675 = vmatpush1.msra.mxu0 0.0
    %2676 = vmatprep.subr.mxu0 0.0
    %2677 = vmatpush1.msra.mxu0 0.0
    %2678 = vmatprep.subr.mxu0 0.0
    %2679 = vmatpush1.msra.mxu0 0.0
    %2680 = vmatprep.subr.mxu0 0.0
    %2681 = vmatpush1.msra.mxu0 0.0
    %2682 = vmatprep.subr.mxu0 0.0
    %2683 = vmatpush1.msra.mxu0 0.0
    %2684 = vmatprep.subr.mxu0 0.0
    %2685 = vmatpush1.msra.mxu0 0.0
    %2686 = vmatprep.subr.mxu0 0.0
    %2687 = vmatpush1.msra.mxu0 0.0
    %2688 = vmatprep.subr.mxu0 0.0
    %2689 = vmatpush1.msra.mxu0 0.0
    %2690 = vmatprep.mubr.f32.mxu0 0.0
    %2691 = vmatmul.mubr.f32.gmra.mrb[0].mxu0 %v2624
    %v2692 = vpop.f32.mrb[0].mxu0
    %v2693 = vadd.f32 0.0, %v2692
    %v2694 = vpop.f32.mrb[0].mxu0
    %v2695 = vadd.f32 0.0, %v2694
    %2696 = vdwg.mxu0
    %2697 = vmatprep.subr.mxu0 %v2621
    %2698 = vmatpush1.msra.mxu0 %v2620
    %2699 = vmatprep.subr.mxu0 0.0
    %2700 = vmatpush1.msra.mxu0 0.0
    %2701 = vmatprep.subr.mxu0 0.0
    %2702 = vmatpush1.msra.mxu0 0.0
    %2703 = vmatprep.subr.mxu0 0.0
    %2704 = vmatpush1.msra.mxu0 0.0
    %2705 = vmatprep.subr.mxu0 0.0
    %2706 = vmatpush1.msra.mxu0 0.0
    %2707 = vmatprep.subr.mxu0 0.0
    %2708 = vmatpush1.msra.mxu0 0.0
    %2709 = vmatprep.subr.mxu0 0.0
    %2710 = vmatpush1.msra.mxu0 0.0
    %2711 = vmatprep.subr.mxu0 0.0
    %2712 = vmatpush1.msra.mxu0 0.0
    %2713 = vmatprep.subr.mxu0 0.0
    %2714 = vmatpush1.msra.mxu0 0.0
    %2715 = vmatprep.subr.mxu0 0.0
    %2716 = vmatpush1.msra.mxu0 0.0
    %2717 = vmatprep.subr.mxu0 0.0
    %2718 = vmatpush1.msra.mxu0 0.0
    %2719 = vmatprep.subr.mxu0 0.0
    %2720 = vmatpush1.msra.mxu0 0.0
    %2721 = vmatprep.subr.mxu0 0.0
    %2722 = vmatpush1.msra.mxu0 0.0
    %2723 = vmatprep.subr.mxu0 0.0
    %2724 = vmatpush1.msra.mxu0 0.0
    %2725 = vmatprep.subr.mxu0 0.0
    %2726 = vmatpush1.msra.mxu0 0.0
    %2727 = vmatprep.subr.mxu0 0.0
    %2728 = vmatpush1.msra.mxu0 0.0
    %2729 = vmatprep.subr.mxu0 0.0
    %2730 = vmatpush1.msra.mxu0 0.0
    %2731 = vmatprep.subr.mxu0 0.0
    %2732 = vmatpush1.msra.mxu0 0.0
    %2733 = vmatprep.subr.mxu0 0.0
    %2734 = vmatpush1.msra.mxu0 0.0
    %2735 = vmatprep.subr.mxu0 0.0
    %2736 = vmatpush1.msra.mxu0 0.0
    %2737 = vmatprep.subr.mxu0 0.0
    %2738 = vmatpush1.msra.mxu0 0.0
    %2739 = vmatprep.subr.mxu0 0.0
    %2740 = vmatpush1.msra.mxu0 0.0
    %2741 = vmatprep.subr.mxu0 0.0
    %2742 = vmatpush1.msra.mxu0 0.0
    %2743 = vmatprep.subr.mxu0 0.0
    %2744 = vmatpush1.msra.mxu0 0.0
    %2745 = vmatprep.subr.mxu0 0.0
    %2746 = vmatpush1.msra.mxu0 0.0
    %2747 = vmatprep.subr.mxu0 0.0
    %2748 = vmatpush1.msra.mxu0 0.0
    %2749 = vmatprep.subr.mxu0 0.0
    %2750 = vmatpush1.msra.mxu0 0.0
    %2751 = vmatprep.subr.mxu0 0.0
    %2752 = vmatpush1.msra.mxu0 0.0
    %2753 = vmatprep.subr.mxu0 0.0
    %2754 = vmatpush1.msra.mxu0 0.0
    %2755 = vmatprep.subr.mxu0 0.0
    %2756 = vmatpush1.msra.mxu0 0.0
    %2757 = vmatprep.subr.mxu0 0.0
    %2758 = vmatpush1.msra.mxu0 0.0
    %2759 = vmatprep.subr.mxu0 0.0
    %2760 = vmatpush1.msra.mxu0 0.0
    %2761 = vmatprep.mubr.f32.mxu0 0.0
    %2762 = vmatmul.mubr.f32.gmra.mrb[0].mxu0 %v2624
    %v2763 = vpop.f32.mrb[0].mxu0
    %v2764 = vadd.f32 0.0, %v2763
    %v2765 = vpop.f32.mrb[0].mxu0
    %v2766 = vadd.f32 0.0, %v2765
    %2767 = vdwg.mxu0
    %v2768 = vadd.f32 %v2602, %v2693
    %v2769 = vadd.f32 %v2603, %v2695
    %v2770 = vadd.f32 %v2604, %v2764
    %v2771 = vadd.f32 %v2605, %v2766
    %2772 = vrot.lane.b32.xlu0 %v1630, 112
    %v2773 = vpop.permute.xlu0 %2772
    %2774 = vrot.lane.b32.xlu0 %v1631, 112
    %v2775 = vpop.permute.xlu0 %2774
    %2776 = vrot.lane.b32.xlu0 %v1632, 112
    %v2777 = vpop.permute.xlu0 %2776
    %2778 = vrot.lane.b32.xlu0 %v1633, 112
    %v2779 = vpop.permute.xlu0 %2778
    %v2780 = vsel %vm1265, %v2777, %v2779
    %v2781 = vsel %vm1265, %v2775, %v2777
    %v2782 = vsel %vm1265, %v2773, %v2775
    %v2783 = vsel %vm1265, %v2779, %v2773
    %v2784 = vmul.f32 %v2782, %v1270
    %v2785 = vmul.f32 %v2781, %v1271
    %v2786 = vmul.f32 %v2780, %v1272
    %v2787 = vmul.f32 %v2783, %v1273
    %v2788 = vld [vmem:[%s3 + $0x38] sm:$0xff]
    %v2790 = vsel %vm132, %v2788, 0
    %2792 = vmatprep.subr.mxu0 %v2785
    %2793 = vmatpush1.msra.mxu0 %v2784
    %2794 = vmatprep.subr.mxu0 0.0
    %2795 = vmatpush1.msra.mxu0 0.0
    %2796 = vmatprep.subr.mxu0 0.0
    %2797 = vmatpush1.msra.mxu0 0.0
    %2798 = vmatprep.subr.mxu0 0.0
    %2799 = vmatpush1.msra.mxu0 0.0
    %2800 = vmatprep.subr.mxu0 0.0
    %2801 = vmatpush1.msra.mxu0 0.0
    %2802 = vmatprep.subr.mxu0 0.0
    %2803 = vmatpush1.msra.mxu0 0.0
    %2804 = vmatprep.subr.mxu0 0.0
    %2805 = vmatpush1.msra.mxu0 0.0
    %2806 = vmatprep.subr.mxu0 0.0
    %2807 = vmatpush1.msra.mxu0 0.0
    %2808 = vmatprep.subr.mxu0 0.0
    %2809 = vmatpush1.msra.mxu0 0.0
    %2810 = vmatprep.subr.mxu0 0.0
    %2811 = vmatpush1.msra.mxu0 0.0
    %2812 = vmatprep.subr.mxu0 0.0
    %2813 = vmatpush1.msra.mxu0 0.0
    %2814 = vmatprep.subr.mxu0 0.0
    %2815 = vmatpush1.msra.mxu0 0.0
    %2816 = vmatprep.subr.mxu0 0.0
    %2817 = vmatpush1.msra.mxu0 0.0
    %2818 = vmatprep.subr.mxu0 0.0
    %2819 = vmatpush1.msra.mxu0 0.0
    %2820 = vmatprep.subr.mxu0 0.0
    %2821 = vmatpush1.msra.mxu0 0.0
    %2822 = vmatprep.subr.mxu0 0.0
    %2823 = vmatpush1.msra.mxu0 0.0
    %2824 = vmatprep.subr.mxu0 0.0
    %2825 = vmatpush1.msra.mxu0 0.0
    %2826 = vmatprep.subr.mxu0 0.0
    %2827 = vmatpush1.msra.mxu0 0.0
    %2828 = vmatprep.subr.mxu0 0.0
    %2829 = vmatpush1.msra.mxu0 0.0
    %2830 = vmatprep.subr.mxu0 0.0
    %2831 = vmatpush1.msra.mxu0 0.0
    %2832 = vmatprep.subr.mxu0 0.0
    %2833 = vmatpush1.msra.mxu0 0.0
    %2834 = vmatprep.subr.mxu0 0.0
    %2835 = vmatpush1.msra.mxu0 0.0
    %2836 = vmatprep.subr.mxu0 0.0
    %2837 = vmatpush1.msra.mxu0 0.0
    %2838 = vmatprep.subr.mxu0 0.0
    %2839 = vmatpush1.msra.mxu0 0.0
    %2840 = vmatprep.subr.mxu0 0.0
    %2841 = vmatpush1.msra.mxu0 0.0
    %2842 = vmatprep.subr.mxu0 0.0
    %2843 = vmatpush1.msra.mxu0 0.0
    %2844 = vmatprep.subr.mxu0 0.0
    %2845 = vmatpush1.msra.mxu0 0.0
    %2846 = vmatprep.subr.mxu0 0.0
    %2847 = vmatpush1.msra.mxu0 0.0
    %2848 = vmatprep.subr.mxu0 0.0
    %2849 = vmatpush1.msra.mxu0 0.0
    %2850 = vmatprep.subr.mxu0 0.0
    %2851 = vmatpush1.msra.mxu0 0.0
    %2852 = vmatprep.subr.mxu0 0.0
    %2853 = vmatpush1.msra.mxu0 0.0
    %2854 = vmatprep.subr.mxu0 0.0
    %2855 = vmatpush1.msra.mxu0 0.0
    %2856 = vmatprep.mubr.f32.mxu0 0.0
    %2857 = vmatmul.mubr.f32.gmra.mrb[0].mxu0 %v2790
    %v2858 = vpop.f32.mrb[0].mxu0
    %v2859 = vadd.f32 0.0, %v2858
    %v2860 = vpop.f32.mrb[0].mxu0
    %v2861 = vadd.f32 0.0, %v2860
    %2862 = vdwg.mxu0
    %2863 = vmatprep.subr.mxu0 %v2787
    %2864 = vmatpush1.msra.mxu0 %v2786
    %2865 = vmatprep.subr.mxu0 0.0
    %2866 = vmatpush1.msra.mxu0 0.0
    %2867 = vmatprep.subr.mxu0 0.0
    %2868 = vmatpush1.msra.mxu0 0.0
    %2869 = vmatprep.subr.mxu0 0.0
    %2870 = vmatpush1.msra.mxu0 0.0
    %2871 = vmatprep.subr.mxu0 0.0
    %2872 = vmatpush1.msra.mxu0 0.0
    %2873 = vmatprep.subr.mxu0 0.0
    %2874 = vmatpush1.msra.mxu0 0.0
    %2875 = vmatprep.subr.mxu0 0.0
    %2876 = vmatpush1.msra.mxu0 0.0
    %2877 = vmatprep.subr.mxu0 0.0
    %2878 = vmatpush1.msra.mxu0 0.0
    %2879 = vmatprep.subr.mxu0 0.0
    %2880 = vmatpush1.msra.mxu0 0.0
    %2881 = vmatprep.subr.mxu0 0.0
    %2882 = vmatpush1.msra.mxu0 0.0
    %2883 = vmatprep.subr.mxu0 0.0
    %2884 = vmatpush1.msra.mxu0 0.0
    %2885 = vmatprep.subr.mxu0 0.0
    %2886 = vmatpush1.msra.mxu0 0.0
    %2887 = vmatprep.subr.mxu0 0.0
    %2888 = vmatpush1.msra.mxu0 0.0
    %2889 = vmatprep.subr.mxu0 0.0
    %2890 = vmatpush1.msra.mxu0 0.0
    %2891 = vmatprep.subr.mxu0 0.0
    %2892 = vmatpush1.msra.mxu0 0.0
    %2893 = vmatprep.subr.mxu0 0.0
    %2894 = vmatpush1.msra.mxu0 0.0
    %2895 = vmatprep.subr.mxu0 0.0
    %2896 = vmatpush1.msra.mxu0 0.0
    %2897 = vmatprep.subr.mxu0 0.0
    %2898 = vmatpush1.msra.mxu0 0.0
    %2899 = vmatprep.subr.mxu0 0.0
    %2900 = vmatpush1.msra.mxu0 0.0
    %2901 = vmatprep.subr.mxu0 0.0
    %2902 = vmatpush1.msra.mxu0 0.0
    %2903 = vmatprep.subr.mxu0 0.0
    %2904 = vmatpush1.msra.mxu0 0.0
    %2905 = vmatprep.subr.mxu0 0.0
    %2906 = vmatpush1.msra.mxu0 0.0
    %2907 = vmatprep.subr.mxu0 0.0
    %2908 = vmatpush1.msra.mxu0 0.0
    %2909 = vmatprep.subr.mxu0 0.0
    %2910 = vmatpush1.msra.mxu0 0.0
    %2911 = vmatprep.subr.mxu0 0.0
    %2912 = vmatpush1.msra.mxu0 0.0
    %2913 = vmatprep.subr.mxu0 0.0
    %2914 = vmatpush1.msra.mxu0 0.0
    %2915 = vmatprep.subr.mxu0 0.0
    %2916 = vmatpush1.msra.mxu0 0.0
    %2917 = vmatprep.subr.mxu0 0.0
    %2918 = vmatpush1.msra.mxu0 0.0
    %2919 = vmatprep.subr.mxu0 0.0
    %2920 = vmatpush1.msra.mxu0 0.0
    %2921 = vmatprep.subr.mxu0 0.0
    %2922 = vmatpush1.msra.mxu0 0.0
    %2923 = vmatprep.subr.mxu0 0.0
    %2924 = vmatpush1.msra.mxu0 0.0
    %2925 = vmatprep.subr.mxu0 0.0
    %2926 = vmatpush1.msra.mxu0 0.0
    %2927 = vmatprep.mubr.f32.mxu0 0.0
    %2928 = vmatmul.mubr.f32.gmra.mrb[0].mxu0 %v2790
    %v2929 = vpop.f32.mrb[0].mxu0
    %v2930 = vadd.f32 0.0, %v2929
    %v2931 = vpop.f32.mrb[0].mxu0
    %v2932 = vadd.f32 0.0, %v2931
    %2933 = vdwg.mxu0
    %v2934 = vadd.f32 %v2768, %v2859
    %v2935 = vadd.f32 %v2769, %v2861
    %v2936 = vadd.f32 %v2770, %v2930
    %v2937 = vadd.f32 %v2771, %v2932
    %2938 = vrot.lane.b32.xlu0 %v1630, 111
    %v2939 = vpop.permute.xlu0 %2938
    %2940 = vrot.lane.b32.xlu0 %v1631, 111
    %v2941 = vpop.permute.xlu0 %2940
    %2942 = vrot.lane.b32.xlu0 %v1632, 111
    %v2943 = vpop.permute.xlu0 %2942
    %2944 = vrot.lane.b32.xlu0 %v1633, 111
    %v2945 = vpop.permute.xlu0 %2944
    %v2946 = vsel %vm1436, %v2943, %v2945
    %v2947 = vsel %vm1436, %v2941, %v2943
    %v2948 = vsel %vm1436, %v2939, %v2941
    %v2949 = vsel %vm1436, %v2945, %v2939
    %v2950 = vmul.f32 %v2948, %v1441
    %v2951 = vmul.f32 %v2947, %v1442
    %v2952 = vmul.f32 %v2946, %v1443
    %v2953 = vmul.f32 %v2949, %v1444
    %v2954 = vld [vmem:[%s3 + $0x40] sm:$0xff]
    %v2956 = vsel %vm132, %v2954, 0
    %2958 = vmatprep.subr.mxu0 %v2951
    %2959 = vmatpush1.msra.mxu0 %v2950
    %2960 = vmatprep.subr.mxu0 0.0
    %2961 = vmatpush1.msra.mxu0 0.0
    %2962 = vmatprep.subr.mxu0 0.0
    %2963 = vmatpush1.msra.mxu0 0.0
    %2964 = vmatprep.subr.mxu0 0.0
    %2965 = vmatpush1.msra.mxu0 0.0
    %2966 = vmatprep.subr.mxu0 0.0
    %2967 = vmatpush1.msra.mxu0 0.0
    %2968 = vmatprep.subr.mxu0 0.0
    %2969 = vmatpush1.msra.mxu0 0.0
    %2970 = vmatprep.subr.mxu0 0.0
    %2971 = vmatpush1.msra.mxu0 0.0
    %2972 = vmatprep.subr.mxu0 0.0
    %2973 = vmatpush1.msra.mxu0 0.0
    %2974 = vmatprep.subr.mxu0 0.0
    %2975 = vmatpush1.msra.mxu0 0.0
    %2976 = vmatprep.subr.mxu0 0.0
    %2977 = vmatpush1.msra.mxu0 0.0
    %2978 = vmatprep.subr.mxu0 0.0
    %2979 = vmatpush1.msra.mxu0 0.0
    %2980 = vmatprep.subr.mxu0 0.0
    %2981 = vmatpush1.msra.mxu0 0.0
    %2982 = vmatprep.subr.mxu0 0.0
    %2983 = vmatpush1.msra.mxu0 0.0
    %2984 = vmatprep.subr.mxu0 0.0
    %2985 = vmatpush1.msra.mxu0 0.0
    %2986 = vmatprep.subr.mxu0 0.0
    %2987 = vmatpush1.msra.mxu0 0.0
    %2988 = vmatprep.subr.mxu0 0.0
    %2989 = vmatpush1.msra.mxu0 0.0
    %2990 = vmatprep.subr.mxu0 0.0
    %2991 = vmatpush1.msra.mxu0 0.0
    %2992 = vmatprep.subr.mxu0 0.0
    %2993 = vmatpush1.msra.mxu0 0.0
    %2994 = vmatprep.subr.mxu0 0.0
    %2995 = vmatpush1.msra.mxu0 0.0
    %2996 = vmatprep.subr.mxu0 0.0
    %2997 = vmatpush1.msra.mxu0 0.0
    %2998 = vmatprep.subr.mxu0 0.0
    %2999 = vmatpush1.msra.mxu0 0.0
    %3000 = vmatprep.subr.mxu0 0.0
    %3001 = vmatpush1.msra.mxu0 0.0
    %3002 = vmatprep.subr.mxu0 0.0
    %3003 = vmatpush1.msra.mxu0 0.0
    %3004 = vmatprep.subr.mxu0 0.0
    %3005 = vmatpush1.msra.mxu0 0.0
    %3006 = vmatprep.subr.mxu0 0.0
    %3007 = vmatpush1.msra.mxu0 0.0
    %3008 = vmatprep.subr.mxu0 0.0
    %3009 = vmatpush1.msra.mxu0 0.0
    %3010 = vmatprep.subr.mxu0 0.0
    %3011 = vmatpush1.msra.mxu0 0.0
    %3012 = vmatprep.subr.mxu0 0.0
    %3013 = vmatpush1.msra.mxu0 0.0
    %3014 = vmatprep.subr.mxu0 0.0
    %3015 = vmatpush1.msra.mxu0 0.0
    %3016 = vmatprep.subr.mxu0 0.0
    %3017 = vmatpush1.msra.mxu0 0.0
    %3018 = vmatprep.subr.mxu0 0.0
    %3019 = vmatpush1.msra.mxu0 0.0
    %3020 = vmatprep.subr.mxu0 0.0
    %3021 = vmatpush1.msra.mxu0 0.0
    %3022 = vmatprep.mubr.f32.mxu0 0.0
    %3023 = vmatmul.mubr.f32.gmra.mrb[0].mxu0 %v2956
    %v3024 = vpop.f32.mrb[0].mxu0
    %v3025 = vadd.f32 0.0, %v3024
    %v3026 = vpop.f32.mrb[0].mxu0
    %v3027 = vadd.f32 0.0, %v3026
    %3028 = vdwg.mxu0
    %3029 = vmatprep.subr.mxu0 %v2953
    %3030 = vmatpush1.msra.mxu0 %v2952
    %3031 = vmatprep.subr.mxu0 0.0
    %3032 = vmatpush1.msra.mxu0 0.0
    %3033 = vmatprep.subr.mxu0 0.0
    %3034 = vmatpush1.msra.mxu0 0.0
    %3035 = vmatprep.subr.mxu0 0.0
    %3036 = vmatpush1.msra.mxu0 0.0
    %3037 = vmatprep.subr.mxu0 0.0
    %3038 = vmatpush1.msra.mxu0 0.0
    %3039 = vmatprep.subr.mxu0 0.0
    %3040 = vmatpush1.msra.mxu0 0.0
    %3041 = vmatprep.subr.mxu0 0.0
    %3042 = vmatpush1.msra.mxu0 0.0
    %3043 = vmatprep.subr.mxu0 0.0
    %3044 = vmatpush1.msra.mxu0 0.0
    %3045 = vmatprep.subr.mxu0 0.0
    %3046 = vmatpush1.msra.mxu0 0.0
    %3047 = vmatprep.subr.mxu0 0.0
    %3048 = vmatpush1.msra.mxu0 0.0
    %3049 = vmatprep.subr.mxu0 0.0
    %3050 = vmatpush1.msra.mxu0 0.0
    %3051 = vmatprep.subr.mxu0 0.0
    %3052 = vmatpush1.msra.mxu0 0.0
    %3053 = vmatprep.subr.mxu0 0.0
    %3054 = vmatpush1.msra.mxu0 0.0
    %3055 = vmatprep.subr.mxu0 0.0
    %3056 = vmatpush1.msra.mxu0 0.0
    %3057 = vmatprep.subr.mxu0 0.0
    %3058 = vmatpush1.msra.mxu0 0.0
    %3059 = vmatprep.subr.mxu0 0.0
    %3060 = vmatpush1.msra.mxu0 0.0
    %3061 = vmatprep.subr.mxu0 0.0
    %3062 = vmatpush1.msra.mxu0 0.0
    %3063 = vmatprep.subr.mxu0 0.0
    %3064 = vmatpush1.msra.mxu0 0.0
    %3065 = vmatprep.subr.mxu0 0.0
    %3066 = vmatpush1.msra.mxu0 0.0
    %3067 = vmatprep.subr.mxu0 0.0
    %3068 = vmatpush1.msra.mxu0 0.0
    %3069 = vmatprep.subr.mxu0 0.0
    %3070 = vmatpush1.msra.mxu0 0.0
    %3071 = vmatprep.subr.mxu0 0.0
    %3072 = vmatpush1.msra.mxu0 0.0
    %3073 = vmatprep.subr.mxu0 0.0
    %3074 = vmatpush1.msra.mxu0 0.0
    %3075 = vmatprep.subr.mxu0 0.0
    %3076 = vmatpush1.msra.mxu0 0.0
    %3077 = vmatprep.subr.mxu0 0.0
    %3078 = vmatpush1.msra.mxu0 0.0
    %3079 = vmatprep.subr.mxu0 0.0
    %3080 = vmatpush1.msra.mxu0 0.0
    %3081 = vmatprep.subr.mxu0 0.0
    %3082 = vmatpush1.msra.mxu0 0.0
    %3083 = vmatprep.subr.mxu0 0.0
    %3084 = vmatpush1.msra.mxu0 0.0
    %3085 = vmatprep.subr.mxu0 0.0
    %3086 = vmatpush1.msra.mxu0 0.0
    %3087 = vmatprep.subr.mxu0 0.0
    %3088 = vmatpush1.msra.mxu0 0.0
    %3089 = vmatprep.subr.mxu0 0.0
    %3090 = vmatpush1.msra.mxu0 0.0
    %3091 = vmatprep.subr.mxu0 0.0
    %3092 = vmatpush1.msra.mxu0 0.0
    %3093 = vmatprep.mubr.f32.mxu0 0.0
    %3094 = vmatmul.mubr.f32.gmra.mrb[0].mxu0 %v2956
    %v3095 = vpop.f32.mrb[0].mxu0
    %v3096 = vadd.f32 0.0, %v3095
    %v3097 = vpop.f32.mrb[0].mxu0
    %v3098 = vadd.f32 0.0, %v3097
    %3099 = vdwg.mxu0
    %v3100 = vadd.f32 %v2934, %v3025
    %v3101 = vadd.f32 %v2935, %v3027
    %v3102 = vadd.f32 %v2936, %v3096
    %v3103 = vadd.f32 %v2937, %v3098
    %3105 = vset.pattern.permute.xlu0 0
    %3106 = vperm.xlu0 %3105, %v60
    %v3107 = vpop.permute.xlu0 %3106
    %v3109 = vadd.f32 %v3100, %v3107
    %v3110 = vadd.f32 %v3101, %v3107
    %v3111 = vadd.f32 %v3102, %v3107
    %v3112 = vadd.f32 %v3103, %v3107
    %v3113 = vstv %s55
    %v3114 = vmul.f32 %v3113, %v3109
    %v3115 = vmul.f32 %v3113, %v3110
    %v3116 = vmul.f32 %v3113, %v3111
    %v3117 = vmul.f32 %v3113, %v3112
    %v3118 = vadd.f32 %v65, %v3114
    %v3119 = vadd.f32 %v66, %v3115
    %v3120 = vadd.f32 %v67, %v3116
    %v3121 = vadd.f32 %v68, %v3117
    %v3122 = vstv %s56
    %v3123 = vmul.f32 %v1604, %v3122
    %v3124 = vmul.f32 %v1605, %v3122
    %v3125 = vmul.f32 %v1606, %v3122
    %v3126 = vmul.f32 %v1607, %v3122
    %v3127 = vadd.f32 %v3118, %v3123
    %v3128 = vadd.f32 %v3119, %v3124
    %v3129 = vadd.f32 %v3120, %v3125
    %v3130 = vadd.f32 %v3121, %v3126
    %vm3131 = vcmp.gt.f32.partialorder %v3127, 0.0
    %vm3132 = vcmp.gt.f32.partialorder %v3128, 0.0
    %vm3133 = vcmp.gt.f32.partialorder %v3129, 0.0
    %vm3134 = vcmp.gt.f32.partialorder %v3130, 0.0
    %3136 = vset.pattern.permute.xlu0 0
    %3137 = vperm.xlu0 %3136, %v64
    %v3138 = vpop.permute.xlu0 %3137
    %v3140 = vmul.f32 %v3138, %v3127
    %v3141 = vmul.f32 %v3138, %v3128
    %v3142 = vmul.f32 %v3138, %v3129
    %v3143 = vmul.f32 %v3138, %v3130
    %v3144 = vsel %vm3131, %v3127, %v3140
    %v3145 = vsel %vm3132, %v3128, %v3141
    %v3146 = vsel %vm3133, %v3129, %v3142
    %v3147 = vsel %vm3134, %v3130, %v3143
    %3148 = vrot.lane.b32.xlu0 %v3144, 17
    %v3149 = vpop.permute.xlu0 %3148
    %3150 = vrot.lane.b32.xlu0 %v3145, 17
    %v3151 = vpop.permute.xlu0 %3150
    %3152 = vrot.lane.b32.xlu0 %v3146, 17
    %v3153 = vpop.permute.xlu0 %3152
    %3154 = vrot.lane.b32.xlu0 %v3147, 17
    %v3155 = vpop.permute.xlu0 %3154
    %v3156 = vsel %vm96, %v3153, %v3155
    %v3157 = vsel %vm96, %v3151, %v3153
    %v3158 = vsel %vm96, %v3149, %v3151
    %v3159 = vsel %vm96, %v3155, %v3149
    %v3160 = vmul.f32 %v3159, %v101
    %v3161 = vmul.f32 %v3158, %v102
    %v3162 = vmul.f32 %v3157, %v103
    %v3163 = vmul.f32 %v3156, %v104
    %v3164 = vld [vmem:[%s5] sm:$0xff]
    %3165 = vrot.lane.b32.xlu0 %v3144, 16
    %v3166 = vpop.permute.xlu0 %3165
    %3167 = vrot.lane.b32.xlu0 %v3145, 16
    %v3168 = vpop.permute.xlu0 %3167
    %3169 = vrot.lane.b32.xlu0 %v3146, 16
    %v3170 = vpop.permute.xlu0 %3169
    %3171 = vrot.lane.b32.xlu0 %v3147, 16
    %v3172 = vpop.permute.xlu0 %3171
    %v3173 = vsel %vm118, %v3170, %v3172
    %v3174 = vsel %vm118, %v3168, %v3170
    %v3175 = vsel %vm118, %v3166, %v3168
    %v3176 = vsel %vm118, %v3172, %v3166
    %v3177 = vmul.f32 %v3176, %v123
    %v3178 = vmul.f32 %v3175, %v124
    %v3179 = vmul.f32 %v3174, %v125
    %v3180 = vmul.f32 %v3173, %v126
    %v3181 = vld [vmem:[%s5 + $0x8] sm:$0xff]
    %v3183 = vsel %vm132, %v3181, 0
    %3185 = vmatprep.subr.mxu0 %v3178
    %3186 = vmatpush1.msra.mxu0 %v3177
    %3187 = vmatprep.subr.mxu0 0.0
    %3188 = vmatpush1.msra.mxu0 0.0
    %3189 = vmatprep.subr.mxu0 0.0
    %3190 = vmatpush1.msra.mxu0 0.0
    %3191 = vmatprep.subr.mxu0 0.0
    %3192 = vmatpush1.msra.mxu0 0.0
    %3193 = vmatprep.subr.mxu0 0.0
    %3194 = vmatpush1.msra.mxu0 0.0
    %3195 = vmatprep.subr.mxu0 0.0
    %3196 = vmatpush1.msra.mxu0 0.0
    %3197 = vmatprep.subr.mxu0 0.0
    %3198 = vmatpush1.msra.mxu0 0.0
    %3199 = vmatprep.subr.mxu0 0.0
    %3200 = vmatpush1.msra.mxu0 0.0
    %3201 = vmatprep.subr.mxu0 0.0
    %3202 = vmatpush1.msra.mxu0 0.0
    %3203 = vmatprep.subr.mxu0 0.0
    %3204 = vmatpush1.msra.mxu0 0.0
    %3205 = vmatprep.subr.mxu0 0.0
    %3206 = vmatpush1.msra.mxu0 0.0
    %3207 = vmatprep.subr.mxu0 0.0
    %3208 = vmatpush1.msra.mxu0 0.0
    %3209 = vmatprep.subr.mxu0 0.0
    %3210 = vmatpush1.msra.mxu0 0.0
    %3211 = vmatprep.subr.mxu0 0.0
    %3212 = vmatpush1.msra.mxu0 0.0
    %3213 = vmatprep.subr.mxu0 0.0
    %3214 = vmatpush1.msra.mxu0 0.0
    %3215 = vmatprep.subr.mxu0 0.0
    %3216 = vmatpush1.msra.mxu0 0.0
    %3217 = vmatprep.subr.mxu0 0.0
    %3218 = vmatpush1.msra.mxu0 0.0
    %3219 = vmatprep.subr.mxu0 0.0
    %3220 = vmatpush1.msra.mxu0 0.0
    %3221 = vmatprep.subr.mxu0 0.0
    %3222 = vmatpush1.msra.mxu0 0.0
    %3223 = vmatprep.subr.mxu0 0.0
    %3224 = vmatpush1.msra.mxu0 0.0
    %3225 = vmatprep.subr.mxu0 0.0
    %3226 = vmatpush1.msra.mxu0 0.0
    %3227 = vmatprep.subr.mxu0 0.0
    %3228 = vmatpush1.msra.mxu0 0.0
    %3229 = vmatprep.subr.mxu0 0.0
    %3230 = vmatpush1.msra.mxu0 0.0
    %3231 = vmatprep.subr.mxu0 0.0
    %3232 = vmatpush1.msra.mxu0 0.0
    %3233 = vmatprep.subr.mxu0 0.0
    %3234 = vmatpush1.msra.mxu0 0.0
    %3235 = vmatprep.subr.mxu0 0.0
    %3236 = vmatpush1.msra.mxu0 0.0
    %3237 = vmatprep.subr.mxu0 0.0
    %3238 = vmatpush1.msra.mxu0 0.0
    %3239 = vmatprep.subr.mxu0 0.0
    %3240 = vmatpush1.msra.mxu0 0.0
    %3241 = vmatprep.subr.mxu0 0.0
    %3242 = vmatpush1.msra.mxu0 0.0
    %3243 = vmatprep.subr.mxu0 0.0
    %3244 = vmatpush1.msra.mxu0 0.0
    %3245 = vmatprep.subr.mxu0 0.0
    %3246 = vmatpush1.msra.mxu0 0.0
    %3247 = vmatprep.subr.mxu0 0.0
    %3248 = vmatpush1.msra.mxu0 0.0
    %3249 = vmatprep.mubr.f32.mxu0 0.0
    %3250 = vmatmul.mubr.f32.gmra.mrb[0].mxu0 %v3183
    %v3251 = vpop.f32.mrb[0].mxu0
    %v3252 = vadd.f32 0.0, %v3251
    %v3253 = vpop.f32.mrb[0].mxu0
    %v3254 = vadd.f32 0.0, %v3253
    %3255 = vdwg.mxu0
    %3256 = vmatprep.subr.mxu0 %v3180
    %3257 = vmatpush1.msra.mxu0 %v3179
    %3258 = vmatprep.subr.mxu0 0.0
    %3259 = vmatpush1.msra.mxu0 0.0
    %3260 = vmatprep.subr.mxu0 0.0
    %3261 = vmatpush1.msra.mxu0 0.0
    %3262 = vmatprep.subr.mxu0 0.0
    %3263 = vmatpush1.msra.mxu0 0.0
    %3264 = vmatprep.subr.mxu0 0.0
    %3265 = vmatpush1.msra.mxu0 0.0
    %3266 = vmatprep.subr.mxu0 0.0
    %3267 = vmatpush1.msra.mxu0 0.0
    %3268 = vmatprep.subr.mxu0 0.0
    %3269 = vmatpush1.msra.mxu0 0.0
    %3270 = vmatprep.subr.mxu0 0.0
    %3271 = vmatpush1.msra.mxu0 0.0
    %3272 = vmatprep.subr.mxu0 0.0
    %3273 = vmatpush1.msra.mxu0 0.0
    %3274 = vmatprep.subr.mxu0 0.0
    %3275 = vmatpush1.msra.mxu0 0.0
    %3276 = vmatprep.subr.mxu0 0.0
    %3277 = vmatpush1.msra.mxu0 0.0
    %3278 = vmatprep.subr.mxu0 0.0
    %3279 = vmatpush1.msra.mxu0 0.0
    %3280 = vmatprep.subr.mxu0 0.0
    %3281 = vmatpush1.msra.mxu0 0.0
    %3282 = vmatprep.subr.mxu0 0.0
    %3283 = vmatpush1.msra.mxu0 0.0
    %3284 = vmatprep.subr.mxu0 0.0
    %3285 = vmatpush1.msra.mxu0 0.0
    %3286 = vmatprep.subr.mxu0 0.0
    %3287 = vmatpush1.msra.mxu0 0.0
    %3288 = vmatprep.subr.mxu0 0.0
    %3289 = vmatpush1.msra.mxu0 0.0
    %3290 = vmatprep.subr.mxu0 0.0
    %3291 = vmatpush1.msra.mxu0 0.0
    %3292 = vmatprep.subr.mxu0 0.0
    %3293 = vmatpush1.msra.mxu0 0.0
    %3294 = vmatprep.subr.mxu0 0.0
    %3295 = vmatpush1.msra.mxu0 0.0
    %3296 = vmatprep.subr.mxu0 0.0
    %3297 = vmatpush1.msra.mxu0 0.0
    %3298 = vmatprep.subr.mxu0 0.0
    %3299 = vmatpush1.msra.mxu0 0.0
    %3300 = vmatprep.subr.mxu0 0.0
    %3301 = vmatpush1.msra.mxu0 0.0
    %3302 = vmatprep.subr.mxu0 0.0
    %3303 = vmatpush1.msra.mxu0 0.0
    %3304 = vmatprep.subr.mxu0 0.0
    %3305 = vmatpush1.msra.mxu0 0.0
    %3306 = vmatprep.subr.mxu0 0.0
    %3307 = vmatpush1.msra.mxu0 0.0
    %3308 = vmatprep.subr.mxu0 0.0
    %3309 = vmatpush1.msra.mxu0 0.0
    %3310 = vmatprep.subr.mxu0 0.0
    %3311 = vmatpush1.msra.mxu0 0.0
    %3312 = vmatprep.subr.mxu0 0.0
    %3313 = vmatpush1.msra.mxu0 0.0
    %3314 = vmatprep.subr.mxu0 0.0
    %3315 = vmatpush1.msra.mxu0 0.0
    %3316 = vmatprep.subr.mxu0 0.0
    %3317 = vmatpush1.msra.mxu0 0.0
    %3318 = vmatprep.subr.mxu0 0.0
    %3319 = vmatpush1.msra.mxu0 0.0
    %3320 = vmatprep.mubr.f32.mxu0 0.0
    %3321 = vmatmul.mubr.f32.gmra.mrb[0].mxu0 %v3183
    %v3322 = vpop.f32.mrb[0].mxu0
    %v3323 = vadd.f32 0.0, %v3322
    %v3324 = vpop.f32.mrb[0].mxu0
    %v3325 = vadd.f32 0.0, %v3324
    %3326 = vdwg.mxu0
    %v3328 = vsel %vm132, %v3164, 0
    %3330 = vmatprep.subr.mxu0 %v3161
    %3331 = vmatpush1.msra.mxu0 %v3160
    %3332 = vmatprep.subr.mxu0 0.0
    %3333 = vmatpush1.msra.mxu0 0.0
    %3334 = vmatprep.subr.mxu0 0.0
    %3335 = vmatpush1.msra.mxu0 0.0
    %3336 = vmatprep.subr.mxu0 0.0
    %3337 = vmatpush1.msra.mxu0 0.0
    %3338 = vmatprep.subr.mxu0 0.0
    %3339 = vmatpush1.msra.mxu0 0.0
    %3340 = vmatprep.subr.mxu0 0.0
    %3341 = vmatpush1.msra.mxu0 0.0
    %3342 = vmatprep.subr.mxu0 0.0
    %3343 = vmatpush1.msra.mxu0 0.0
    %3344 = vmatprep.subr.mxu0 0.0
    %3345 = vmatpush1.msra.mxu0 0.0
    %3346 = vmatprep.subr.mxu0 0.0
    %3347 = vmatpush1.msra.mxu0 0.0
    %3348 = vmatprep.subr.mxu0 0.0
    %3349 = vmatpush1.msra.mxu0 0.0
    %3350 = vmatprep.subr.mxu0 0.0
    %3351 = vmatpush1.msra.mxu0 0.0
    %3352 = vmatprep.subr.mxu0 0.0
    %3353 = vmatpush1.msra.mxu0 0.0
    %3354 = vmatprep.subr.mxu0 0.0
    %3355 = vmatpush1.msra.mxu0 0.0
    %3356 = vmatprep.subr.mxu0 0.0
    %3357 = vmatpush1.msra.mxu0 0.0
    %3358 = vmatprep.subr.mxu0 0.0
    %3359 = vmatpush1.msra.mxu0 0.0
    %3360 = vmatprep.subr.mxu0 0.0
    %3361 = vmatpush1.msra.mxu0 0.0
    %3362 = vmatprep.subr.mxu0 0.0
    %3363 = vmatpush1.msra.mxu0 0.0
    %3364 = vmatprep.subr.mxu0 0.0
    %3365 = vmatpush1.msra.mxu0 0.0
    %3366 = vmatprep.subr.mxu0 0.0
    %3367 = vmatpush1.msra.mxu0 0.0
    %3368 = vmatprep.subr.mxu0 0.0
    %3369 = vmatpush1.msra.mxu0 0.0
    %3370 = vmatprep.subr.mxu0 0.0
    %3371 = vmatpush1.msra.mxu0 0.0
    %3372 = vmatprep.subr.mxu0 0.0
    %3373 = vmatpush1.msra.mxu0 0.0
    %3374 = vmatprep.subr.mxu0 0.0
    %3375 = vmatpush1.msra.mxu0 0.0
    %3376 = vmatprep.subr.mxu0 0.0
    %3377 = vmatpush1.msra.mxu0 0.0
    %3378 = vmatprep.subr.mxu0 0.0
    %3379 = vmatpush1.msra.mxu0 0.0
    %3380 = vmatprep.subr.mxu0 0.0
    %3381 = vmatpush1.msra.mxu0 0.0
    %3382 = vmatprep.subr.mxu0 0.0
    %3383 = vmatpush1.msra.mxu0 0.0
    %3384 = vmatprep.subr.mxu0 0.0
    %3385 = vmatpush1.msra.mxu0 0.0
    %3386 = vmatprep.subr.mxu0 0.0
    %3387 = vmatpush1.msra.mxu0 0.0
    %3388 = vmatprep.subr.mxu0 0.0
    %3389 = vmatpush1.msra.mxu0 0.0
    %3390 = vmatprep.subr.mxu0 0.0
    %3391 = vmatpush1.msra.mxu0 0.0
    %3392 = vmatprep.subr.mxu0 0.0
    %3393 = vmatpush1.msra.mxu0 0.0
    %3394 = vmatprep.mubr.f32.mxu0 0.0
    %3395 = vmatmul.mubr.f32.gmra.mrb[0].mxu0 %v3328
    %v3396 = vpop.f32.mrb[0].mxu0
    %v3397 = vadd.f32 %v3252, %v3396
    %v3398 = vpop.f32.mrb[0].mxu0
    %v3399 = vadd.f32 %v3254, %v3398
    %3400 = vdwg.mxu0
    %3401 = vmatprep.subr.mxu0 %v3163
    %3402 = vmatpush1.msra.mxu0 %v3162
    %3403 = vmatprep.subr.mxu0 0.0
    %3404 = vmatpush1.msra.mxu0 0.0
    %3405 = vmatprep.subr.mxu0 0.0
    %3406 = vmatpush1.msra.mxu0 0.0
    %3407 = vmatprep.subr.mxu0 0.0
    %3408 = vmatpush1.msra.mxu0 0.0
    %3409 = vmatprep.subr.mxu0 0.0
    %3410 = vmatpush1.msra.mxu0 0.0
    %3411 = vmatprep.subr.mxu0 0.0
    %3412 = vmatpush1.msra.mxu0 0.0
    %3413 = vmatprep.subr.mxu0 0.0
    %3414 = vmatpush1.msra.mxu0 0.0
    %3415 = vmatprep.subr.mxu0 0.0
    %3416 = vmatpush1.msra.mxu0 0.0
    %3417 = vmatprep.subr.mxu0 0.0
    %3418 = vmatpush1.msra.mxu0 0.0
    %3419 = vmatprep.subr.mxu0 0.0
    %3420 = vmatpush1.msra.mxu0 0.0
    %3421 = vmatprep.subr.mxu0 0.0
    %3422 = vmatpush1.msra.mxu0 0.0
    %3423 = vmatprep.subr.mxu0 0.0
    %3424 = vmatpush1.msra.mxu0 0.0
    %3425 = vmatprep.subr.mxu0 0.0
    %3426 = vmatpush1.msra.mxu0 0.0
    %3427 = vmatprep.subr.mxu0 0.0
    %3428 = vmatpush1.msra.mxu0 0.0
    %3429 = vmatprep.subr.mxu0 0.0
    %3430 = vmatpush1.msra.mxu0 0.0
    %3431 = vmatprep.subr.mxu0 0.0
    %3432 = vmatpush1.msra.mxu0 0.0
    %3433 = vmatprep.subr.mxu0 0.0
    %3434 = vmatpush1.msra.mxu0 0.0
    %3435 = vmatprep.subr.mxu0 0.0
    %3436 = vmatpush1.msra.mxu0 0.0
    %3437 = vmatprep.subr.mxu0 0.0
    %3438 = vmatpush1.msra.mxu0 0.0
    %3439 = vmatprep.subr.mxu0 0.0
    %3440 = vmatpush1.msra.mxu0 0.0
    %3441 = vmatprep.subr.mxu0 0.0
    %3442 = vmatpush1.msra.mxu0 0.0
    %3443 = vmatprep.subr.mxu0 0.0
    %3444 = vmatpush1.msra.mxu0 0.0
    %3445 = vmatprep.subr.mxu0 0.0
    %3446 = vmatpush1.msra.mxu0 0.0
    %3447 = vmatprep.subr.mxu0 0.0
    %3448 = vmatpush1.msra.mxu0 0.0
    %3449 = vmatprep.subr.mxu0 0.0
    %3450 = vmatpush1.msra.mxu0 0.0
    %3451 = vmatprep.subr.mxu0 0.0
    %3452 = vmatpush1.msra.mxu0 0.0
    %3453 = vmatprep.subr.mxu0 0.0
    %3454 = vmatpush1.msra.mxu0 0.0
    %3455 = vmatprep.subr.mxu0 0.0
    %3456 = vmatpush1.msra.mxu0 0.0
    %3457 = vmatprep.subr.mxu0 0.0
    %3458 = vmatpush1.msra.mxu0 0.0
    %3459 = vmatprep.subr.mxu0 0.0
    %3460 = vmatpush1.msra.mxu0 0.0
    %3461 = vmatprep.subr.mxu0 0.0
    %3462 = vmatpush1.msra.mxu0 0.0
    %3463 = vmatprep.subr.mxu0 0.0
    %3464 = vmatpush1.msra.mxu0 0.0
    %3465 = vmatprep.mubr.f32.mxu0 0.0
    %3466 = vmatmul.mubr.f32.gmra.mrb[0].mxu0 %v3328
    %v3467 = vpop.f32.mrb[0].mxu0
    %v3468 = vadd.f32 %v3323, %v3467
    %v3469 = vpop.f32.mrb[0].mxu0
    %v3470 = vadd.f32 %v3325, %v3469
    %3471 = vdwg.mxu0
    %3472 = vrot.lane.b32.xlu0 %v3144, 15
    %v3473 = vpop.permute.xlu0 %3472
    %3474 = vrot.lane.b32.xlu0 %v3145, 15
    %v3475 = vpop.permute.xlu0 %3474
    %3476 = vrot.lane.b32.xlu0 %v3146, 15
    %v3477 = vpop.permute.xlu0 %3476
    %3478 = vrot.lane.b32.xlu0 %v3147, 15
    %v3479 = vpop.permute.xlu0 %3478
    %v3480 = vsel %vm431, %v3477, %v3479
    %v3481 = vsel %vm431, %v3475, %v3477
    %v3482 = vsel %vm431, %v3473, %v3475
    %v3483 = vsel %vm431, %v3479, %v3473
    %v3484 = vmul.f32 %v3483, %v436
    %v3485 = vmul.f32 %v3482, %v437
    %v3486 = vmul.f32 %v3481, %v438
    %v3487 = vmul.f32 %v3480, %v439
    %v3488 = vld [vmem:[%s5 + $0x10] sm:$0xff]
    %v3490 = vsel %vm132, %v3488, 0
    %3492 = vmatprep.subr.mxu0 %v3485
    %3493 = vmatpush1.msra.mxu0 %v3484
    %3494 = vmatprep.subr.mxu0 0.0
    %3495 = vmatpush1.msra.mxu0 0.0
    %3496 = vmatprep.subr.mxu0 0.0
    %3497 = vmatpush1.msra.mxu0 0.0
    %3498 = vmatprep.subr.mxu0 0.0
    %3499 = vmatpush1.msra.mxu0 0.0
    %3500 = vmatprep.subr.mxu0 0.0
    %3501 = vmatpush1.msra.mxu0 0.0
    %3502 = vmatprep.subr.mxu0 0.0
    %3503 = vmatpush1.msra.mxu0 0.0
    %3504 = vmatprep.subr.mxu0 0.0
    %3505 = vmatpush1.msra.mxu0 0.0
    %3506 = vmatprep.subr.mxu0 0.0
    %3507 = vmatpush1.msra.mxu0 0.0
    %3508 = vmatprep.subr.mxu0 0.0
    %3509 = vmatpush1.msra.mxu0 0.0
    %3510 = vmatprep.subr.mxu0 0.0
    %3511 = vmatpush1.msra.mxu0 0.0
    %3512 = vmatprep.subr.mxu0 0.0
    %3513 = vmatpush1.msra.mxu0 0.0
    %3514 = vmatprep.subr.mxu0 0.0
    %3515 = vmatpush1.msra.mxu0 0.0
    %3516 = vmatprep.subr.mxu0 0.0
    %3517 = vmatpush1.msra.mxu0 0.0
    %3518 = vmatprep.subr.mxu0 0.0
    %3519 = vmatpush1.msra.mxu0 0.0
    %3520 = vmatprep.subr.mxu0 0.0
    %3521 = vmatpush1.msra.mxu0 0.0
    %3522 = vmatprep.subr.mxu0 0.0
    %3523 = vmatpush1.msra.mxu0 0.0
    %3524 = vmatprep.subr.mxu0 0.0
    %3525 = vmatpush1.msra.mxu0 0.0
    %3526 = vmatprep.subr.mxu0 0.0
    %3527 = vmatpush1.msra.mxu0 0.0
    %3528 = vmatprep.subr.mxu0 0.0
    %3529 = vmatpush1.msra.mxu0 0.0
    %3530 = vmatprep.subr.mxu0 0.0
    %3531 = vmatpush1.msra.mxu0 0.0
    %3532 = vmatprep.subr.mxu0 0.0
    %3533 = vmatpush1.msra.mxu0 0.0
    %3534 = vmatprep.subr.mxu0 0.0
    %3535 = vmatpush1.msra.mxu0 0.0
    %3536 = vmatprep.subr.mxu0 0.0
    %3537 = vmatpush1.msra.mxu0 0.0
    %3538 = vmatprep.subr.mxu0 0.0
    %3539 = vmatpush1.msra.mxu0 0.0
    %3540 = vmatprep.subr.mxu0 0.0
    %3541 = vmatpush1.msra.mxu0 0.0
    %3542 = vmatprep.subr.mxu0 0.0
    %3543 = vmatpush1.msra.mxu0 0.0
    %3544 = vmatprep.subr.mxu0 0.0
    %3545 = vmatpush1.msra.mxu0 0.0
    %3546 = vmatprep.subr.mxu0 0.0
    %3547 = vmatpush1.msra.mxu0 0.0
    %3548 = vmatprep.subr.mxu0 0.0
    %3549 = vmatpush1.msra.mxu0 0.0
    %3550 = vmatprep.subr.mxu0 0.0
    %3551 = vmatpush1.msra.mxu0 0.0
    %3552 = vmatprep.subr.mxu0 0.0
    %3553 = vmatpush1.msra.mxu0 0.0
    %3554 = vmatprep.subr.mxu0 0.0
    %3555 = vmatpush1.msra.mxu0 0.0
    %3556 = vmatprep.mubr.f32.mxu0 0.0
    %3557 = vmatmul.mubr.f32.gmra.mrb[0].mxu0 %v3490
    %v3558 = vpop.f32.mrb[0].mxu0
    %v3559 = vadd.f32 0.0, %v3558
    %v3560 = vpop.f32.mrb[0].mxu0
    %v3561 = vadd.f32 0.0, %v3560
    %3562 = vdwg.mxu0
    %3563 = vmatprep.subr.mxu0 %v3487
    %3564 = vmatpush1.msra.mxu0 %v3486
    %3565 = vmatprep.subr.mxu0 0.0
    %3566 = vmatpush1.msra.mxu0 0.0
    %3567 = vmatprep.subr.mxu0 0.0
    %3568 = vmatpush1.msra.mxu0 0.0
    %3569 = vmatprep.subr.mxu0 0.0
    %3570 = vmatpush1.msra.mxu0 0.0
    %3571 = vmatprep.subr.mxu0 0.0
    %3572 = vmatpush1.msra.mxu0 0.0
    %3573 = vmatprep.subr.mxu0 0.0
    %3574 = vmatpush1.msra.mxu0 0.0
    %3575 = vmatprep.subr.mxu0 0.0
    %3576 = vmatpush1.msra.mxu0 0.0
    %3577 = vmatprep.subr.mxu0 0.0
    %3578 = vmatpush1.msra.mxu0 0.0
    %3579 = vmatprep.subr.mxu0 0.0
    %3580 = vmatpush1.msra.mxu0 0.0
    %3581 = vmatprep.subr.mxu0 0.0
    %3582 = vmatpush1.msra.mxu0 0.0
    %3583 = vmatprep.subr.mxu0 0.0
    %3584 = vmatpush1.msra.mxu0 0.0
    %3585 = vmatprep.subr.mxu0 0.0
    %3586 = vmatpush1.msra.mxu0 0.0
    %3587 = vmatprep.subr.mxu0 0.0
    %3588 = vmatpush1.msra.mxu0 0.0
    %3589 = vmatprep.subr.mxu0 0.0
    %3590 = vmatpush1.msra.mxu0 0.0
    %3591 = vmatprep.subr.mxu0 0.0
    %3592 = vmatpush1.msra.mxu0 0.0
    %3593 = vmatprep.subr.mxu0 0.0
    %3594 = vmatpush1.msra.mxu0 0.0
    %3595 = vmatprep.subr.mxu0 0.0
    %3596 = vmatpush1.msra.mxu0 0.0
    %3597 = vmatprep.subr.mxu0 0.0
    %3598 = vmatpush1.msra.mxu0 0.0
    %3599 = vmatprep.subr.mxu0 0.0
    %3600 = vmatpush1.msra.mxu0 0.0
    %3601 = vmatprep.subr.mxu0 0.0
    %3602 = vmatpush1.msra.mxu0 0.0
    %3603 = vmatprep.subr.mxu0 0.0
    %3604 = vmatpush1.msra.mxu0 0.0
    %3605 = vmatprep.subr.mxu0 0.0
    %3606 = vmatpush1.msra.mxu0 0.0
    %3607 = vmatprep.subr.mxu0 0.0
    %3608 = vmatpush1.msra.mxu0 0.0
    %3609 = vmatprep.subr.mxu0 0.0
    %3610 = vmatpush1.msra.mxu0 0.0
    %3611 = vmatprep.subr.mxu0 0.0
    %3612 = vmatpush1.msra.mxu0 0.0
    %3613 = vmatprep.subr.mxu0 0.0
    %3614 = vmatpush1.msra.mxu0 0.0
    %3615 = vmatprep.subr.mxu0 0.0
    %3616 = vmatpush1.msra.mxu0 0.0
    %3617 = vmatprep.subr.mxu0 0.0
    %3618 = vmatpush1.msra.mxu0 0.0
    %3619 = vmatprep.subr.mxu0 0.0
    %3620 = vmatpush1.msra.mxu0 0.0
    %3621 = vmatprep.subr.mxu0 0.0
    %3622 = vmatpush1.msra.mxu0 0.0
    %3623 = vmatprep.subr.mxu0 0.0
    %3624 = vmatpush1.msra.mxu0 0.0
    %3625 = vmatprep.subr.mxu0 0.0
    %3626 = vmatpush1.msra.mxu0 0.0
    %3627 = vmatprep.mubr.f32.mxu0 0.0
    %3628 = vmatmul.mubr.f32.gmra.mrb[0].mxu0 %v3490
    %v3629 = vpop.f32.mrb[0].mxu0
    %v3630 = vadd.f32 0.0, %v3629
    %v3631 = vpop.f32.mrb[0].mxu0
    %v3632 = vadd.f32 0.0, %v3631
    %3633 = vdwg.mxu0
    %v3634 = vadd.f32 %v3397, %v3559
    %v3635 = vadd.f32 %v3399, %v3561
    %v3636 = vadd.f32 %v3468, %v3630
    %v3637 = vadd.f32 %v3470, %v3632
    %3638 = vrot.lane.b32.xlu0 %v3144, 1
    %v3639 = vpop.permute.xlu0 %3638
    %3640 = vrot.lane.b32.xlu0 %v3145, 1
    %v3641 = vpop.permute.xlu0 %3640
    %3642 = vrot.lane.b32.xlu0 %v3146, 1
    %v3643 = vpop.permute.xlu0 %3642
    %3644 = vrot.lane.b32.xlu0 %v3147, 1
    %v3645 = vpop.permute.xlu0 %3644
    %v3646 = vsel %vm602, %v3643, %v3645
    %v3647 = vsel %vm602, %v3641, %v3643
    %v3648 = vsel %vm602, %v3639, %v3641
    %v3649 = vsel %vm602, %v3645, %v3639
    %v3650 = vmul.f32 %v3649, %v607
    %v3651 = vmul.f32 %v3648, %v608
    %v3652 = vmul.f32 %v3647, %v609
    %v3653 = vmul.f32 %v3646, %v610
    %v3654 = vld [vmem:[%s5 + $0x18] sm:$0xff]
    %v3656 = vsel %vm132, %v3654, 0
    %3658 = vmatprep.subr.mxu0 %v3651
    %3659 = vmatpush1.msra.mxu0 %v3650
    %3660 = vmatprep.subr.mxu0 0.0
    %3661 = vmatpush1.msra.mxu0 0.0
    %3662 = vmatprep.subr.mxu0 0.0
    %3663 = vmatpush1.msra.mxu0 0.0
    %3664 = vmatprep.subr.mxu0 0.0
    %3665 = vmatpush1.msra.mxu0 0.0
    %3666 = vmatprep.subr.mxu0 0.0
    %3667 = vmatpush1.msra.mxu0 0.0
    %3668 = vmatprep.subr.mxu0 0.0
    %3669 = vmatpush1.msra.mxu0 0.0
    %3670 = vmatprep.subr.mxu0 0.0
    %3671 = vmatpush1.msra.mxu0 0.0
    %3672 = vmatprep.subr.mxu0 0.0
    %3673 = vmatpush1.msra.mxu0 0.0
    %3674 = vmatprep.subr.mxu0 0.0
    %3675 = vmatpush1.msra.mxu0 0.0
    %3676 = vmatprep.subr.mxu0 0.0
    %3677 = vmatpush1.msra.mxu0 0.0
    %3678 = vmatprep.subr.mxu0 0.0
    %3679 = vmatpush1.msra.mxu0 0.0
    %3680 = vmatprep.subr.mxu0 0.0
    %3681 = vmatpush1.msra.mxu0 0.0
    %3682 = vmatprep.subr.mxu0 0.0
    %3683 = vmatpush1.msra.mxu0 0.0
    %3684 = vmatprep.subr.mxu0 0.0
    %3685 = vmatpush1.msra.mxu0 0.0
    %3686 = vmatprep.subr.mxu0 0.0
    %3687 = vmatpush1.msra.mxu0 0.0
    %3688 = vmatprep.subr.mxu0 0.0
    %3689 = vmatpush1.msra.mxu0 0.0
    %3690 = vmatprep.subr.mxu0 0.0
    %3691 = vmatpush1.msra.mxu0 0.0
    %3692 = vmatprep.subr.mxu0 0.0
    %3693 = vmatpush1.msra.mxu0 0.0
    %3694 = vmatprep.subr.mxu0 0.0
    %3695 = vmatpush1.msra.mxu0 0.0
    %3696 = vmatprep.subr.mxu0 0.0
    %3697 = vmatpush1.msra.mxu0 0.0
    %3698 = vmatprep.subr.mxu0 0.0
    %3699 = vmatpush1.msra.mxu0 0.0
    %3700 = vmatprep.subr.mxu0 0.0
    %3701 = vmatpush1.msra.mxu0 0.0
    %3702 = vmatprep.subr.mxu0 0.0
    %3703 = vmatpush1.msra.mxu0 0.0
    %3704 = vmatprep.subr.mxu0 0.0
    %3705 = vmatpush1.msra.mxu0 0.0
    %3706 = vmatprep.subr.mxu0 0.0
    %3707 = vmatpush1.msra.mxu0 0.0
    %3708 = vmatprep.subr.mxu0 0.0
    %3709 = vmatpush1.msra.mxu0 0.0
    %3710 = vmatprep.subr.mxu0 0.0
    %3711 = vmatpush1.msra.mxu0 0.0
    %3712 = vmatprep.subr.mxu0 0.0
    %3713 = vmatpush1.msra.mxu0 0.0
    %3714 = vmatprep.subr.mxu0 0.0
    %3715 = vmatpush1.msra.mxu0 0.0
    %3716 = vmatprep.subr.mxu0 0.0
    %3717 = vmatpush1.msra.mxu0 0.0
    %3718 = vmatprep.subr.mxu0 0.0
    %3719 = vmatpush1.msra.mxu0 0.0
    %3720 = vmatprep.subr.mxu0 0.0
    %3721 = vmatpush1.msra.mxu0 0.0
    %3722 = vmatprep.mubr.f32.mxu0 0.0
    %3723 = vmatmul.mubr.f32.gmra.mrb[0].mxu0 %v3656
    %v3724 = vpop.f32.mrb[0].mxu0
    %v3725 = vadd.f32 0.0, %v3724
    %v3726 = vpop.f32.mrb[0].mxu0
    %v3727 = vadd.f32 0.0, %v3726
    %3728 = vdwg.mxu0
    %3729 = vmatprep.subr.mxu0 %v3653
    %3730 = vmatpush1.msra.mxu0 %v3652
    %3731 = vmatprep.subr.mxu0 0.0
    %3732 = vmatpush1.msra.mxu0 0.0
    %3733 = vmatprep.subr.mxu0 0.0
    %3734 = vmatpush1.msra.mxu0 0.0
    %3735 = vmatprep.subr.mxu0 0.0
    %3736 = vmatpush1.msra.mxu0 0.0
    %3737 = vmatprep.subr.mxu0 0.0
    %3738 = vmatpush1.msra.mxu0 0.0
    %3739 = vmatprep.subr.mxu0 0.0
    %3740 = vmatpush1.msra.mxu0 0.0
    %3741 = vmatprep.subr.mxu0 0.0
    %3742 = vmatpush1.msra.mxu0 0.0
    %3743 = vmatprep.subr.mxu0 0.0
    %3744 = vmatpush1.msra.mxu0 0.0
    %3745 = vmatprep.subr.mxu0 0.0
    %3746 = vmatpush1.msra.mxu0 0.0
    %3747 = vmatprep.subr.mxu0 0.0
    %3748 = vmatpush1.msra.mxu0 0.0
    %3749 = vmatprep.subr.mxu0 0.0
    %3750 = vmatpush1.msra.mxu0 0.0
    %3751 = vmatprep.subr.mxu0 0.0
    %3752 = vmatpush1.msra.mxu0 0.0
    %3753 = vmatprep.subr.mxu0 0.0
    %3754 = vmatpush1.msra.mxu0 0.0
    %3755 = vmatprep.subr.mxu0 0.0
    %3756 = vmatpush1.msra.mxu0 0.0
    %3757 = vmatprep.subr.mxu0 0.0
    %3758 = vmatpush1.msra.mxu0 0.0
    %3759 = vmatprep.subr.mxu0 0.0
    %3760 = vmatpush1.msra.mxu0 0.0
    %3761 = vmatprep.subr.mxu0 0.0
    %3762 = vmatpush1.msra.mxu0 0.0
    %3763 = vmatprep.subr.mxu0 0.0
    %3764 = vmatpush1.msra.mxu0 0.0
    %3765 = vmatprep.subr.mxu0 0.0
    %3766 = vmatpush1.msra.mxu0 0.0
    %3767 = vmatprep.subr.mxu0 0.0
    %3768 = vmatpush1.msra.mxu0 0.0
    %3769 = vmatprep.subr.mxu0 0.0
    %3770 = vmatpush1.msra.mxu0 0.0
    %3771 = vmatprep.subr.mxu0 0.0
    %3772 = vmatpush1.msra.mxu0 0.0
    %3773 = vmatprep.subr.mxu0 0.0
    %3774 = vmatpush1.msra.mxu0 0.0
    %3775 = vmatprep.subr.mxu0 0.0
    %3776 = vmatpush1.msra.mxu0 0.0
    %3777 = vmatprep.subr.mxu0 0.0
    %3778 = vmatpush1.msra.mxu0 0.0
    %3779 = vmatprep.subr.mxu0 0.0
    %3780 = vmatpush1.msra.mxu0 0.0
    %3781 = vmatprep.subr.mxu0 0.0
    %3782 = vmatpush1.msra.mxu0 0.0
    %3783 = vmatprep.subr.mxu0 0.0
    %3784 = vmatpush1.msra.mxu0 0.0
    %3785 = vmatprep.subr.mxu0 0.0
    %3786 = vmatpush1.msra.mxu0 0.0
    %3787 = vmatprep.subr.mxu0 0.0
    %3788 = vmatpush1.msra.mxu0 0.0
    %3789 = vmatprep.subr.mxu0 0.0
    %3790 = vmatpush1.msra.mxu0 0.0
    %3791 = vmatprep.subr.mxu0 0.0
    %3792 = vmatpush1.msra.mxu0 0.0
    %3793 = vmatprep.mubr.f32.mxu0 0.0
    %3794 = vmatmul.mubr.f32.gmra.mrb[0].mxu0 %v3656
    %v3795 = vpop.f32.mrb[0].mxu0
    %v3796 = vadd.f32 0.0, %v3795
    %v3797 = vpop.f32.mrb[0].mxu0
    %v3798 = vadd.f32 0.0, %v3797
    %3799 = vdwg.mxu0
    %v3800 = vadd.f32 %v3634, %v3725
    %v3801 = vadd.f32 %v3635, %v3727
    %v3802 = vadd.f32 %v3636, %v3796
    %v3803 = vadd.f32 %v3637, %v3798
    %v3804 = vld [vmem:[%s5 + $0x20] sm:$0xff]
    %v3806 = vsel %vm132, %v3804, 0
    %3808 = vmatprep.subr.mxu0 %v3145
    %3809 = vmatpush1.msra.mxu0 %v3144
    %3810 = vmatprep.subr.mxu0 0.0
    %3811 = vmatpush1.msra.mxu0 0.0
    %3812 = vmatprep.subr.mxu0 0.0
    %3813 = vmatpush1.msra.mxu0 0.0
    %3814 = vmatprep.subr.mxu0 0.0
    %3815 = vmatpush1.msra.mxu0 0.0
    %3816 = vmatprep.subr.mxu0 0.0
    %3817 = vmatpush1.msra.mxu0 0.0
    %3818 = vmatprep.subr.mxu0 0.0
    %3819 = vmatpush1.msra.mxu0 0.0
    %3820 = vmatprep.subr.mxu0 0.0
    %3821 = vmatpush1.msra.mxu0 0.0
    %3822 = vmatprep.subr.mxu0 0.0
    %3823 = vmatpush1.msra.mxu0 0.0
    %3824 = vmatprep.subr.mxu0 0.0
    %3825 = vmatpush1.msra.mxu0 0.0
    %3826 = vmatprep.subr.mxu0 0.0
    %3827 = vmatpush1.msra.mxu0 0.0
    %3828 = vmatprep.subr.mxu0 0.0
    %3829 = vmatpush1.msra.mxu0 0.0
    %3830 = vmatprep.subr.mxu0 0.0
    %3831 = vmatpush1.msra.mxu0 0.0
    %3832 = vmatprep.subr.mxu0 0.0
    %3833 = vmatpush1.msra.mxu0 0.0
    %3834 = vmatprep.subr.mxu0 0.0
    %3835 = vmatpush1.msra.mxu0 0.0
    %3836 = vmatprep.subr.mxu0 0.0
    %3837 = vmatpush1.msra.mxu0 0.0
    %3838 = vmatprep.subr.mxu0 0.0
    %3839 = vmatpush1.msra.mxu0 0.0
    %3840 = vmatprep.subr.mxu0 0.0
    %3841 = vmatpush1.msra.mxu0 0.0
    %3842 = vmatprep.subr.mxu0 0.0
    %3843 = vmatpush1.msra.mxu0 0.0
    %3844 = vmatprep.subr.mxu0 0.0
    %3845 = vmatpush1.msra.mxu0 0.0
    %3846 = vmatprep.subr.mxu0 0.0
    %3847 = vmatpush1.msra.mxu0 0.0
    %3848 = vmatprep.subr.mxu0 0.0
    %3849 = vmatpush1.msra.mxu0 0.0
    %3850 = vmatprep.subr.mxu0 0.0
    %3851 = vmatpush1.msra.mxu0 0.0
    %3852 = vmatprep.subr.mxu0 0.0
    %3853 = vmatpush1.msra.mxu0 0.0
    %3854 = vmatprep.subr.mxu0 0.0
    %3855 = vmatpush1.msra.mxu0 0.0
    %3856 = vmatprep.subr.mxu0 0.0
    %3857 = vmatpush1.msra.mxu0 0.0
    %3858 = vmatprep.subr.mxu0 0.0
    %3859 = vmatpush1.msra.mxu0 0.0
    %3860 = vmatprep.subr.mxu0 0.0
    %3861 = vmatpush1.msra.mxu0 0.0
    %3862 = vmatprep.subr.mxu0 0.0
    %3863 = vmatpush1.msra.mxu0 0.0
    %3864 = vmatprep.subr.mxu0 0.0
    %3865 = vmatpush1.msra.mxu0 0.0
    %3866 = vmatprep.subr.mxu0 0.0
    %3867 = vmatpush1.msra.mxu0 0.0
    %3868 = vmatprep.subr.mxu0 0.0
    %3869 = vmatpush1.msra.mxu0 0.0
    %3870 = vmatprep.subr.mxu0 0.0
    %3871 = vmatpush1.msra.mxu0 0.0
    %3872 = vmatprep.mubr.f32.mxu0 0.0
    %3873 = vmatmul.mubr.f32.gmra.mrb[0].mxu0 %v3806
    %v3874 = vpop.f32.mrb[0].mxu0
    %v3875 = vadd.f32 0.0, %v3874
    %v3876 = vpop.f32.mrb[0].mxu0
    %v3877 = vadd.f32 0.0, %v3876
    %3878 = vdwg.mxu0
    %3879 = vmatprep.subr.mxu0 %v3147
    %3880 = vmatpush1.msra.mxu0 %v3146
    %3881 = vmatprep.subr.mxu0 0.0
    %3882 = vmatpush1.msra.mxu0 0.0
    %3883 = vmatprep.subr.mxu0 0.0
    %3884 = vmatpush1.msra.mxu0 0.0
    %3885 = vmatprep.subr.mxu0 0.0
    %3886 = vmatpush1.msra.mxu0 0.0
    %3887 = vmatprep.subr.mxu0 0.0
    %3888 = vmatpush1.msra.mxu0 0.0
    %3889 = vmatprep.subr.mxu0 0.0
    %3890 = vmatpush1.msra.mxu0 0.0
    %3891 = vmatprep.subr.mxu0 0.0
    %3892 = vmatpush1.msra.mxu0 0.0
    %3893 = vmatprep.subr.mxu0 0.0
    %3894 = vmatpush1.msra.mxu0 0.0
    %3895 = vmatprep.subr.mxu0 0.0
    %3896 = vmatpush1.msra.mxu0 0.0
    %3897 = vmatprep.subr.mxu0 0.0
    %3898 = vmatpush1.msra.mxu0 0.0
    %3899 = vmatprep.subr.mxu0 0.0
    %3900 = vmatpush1.msra.mxu0 0.0
    %3901 = vmatprep.subr.mxu0 0.0
    %3902 = vmatpush1.msra.mxu0 0.0
    %3903 = vmatprep.subr.mxu0 0.0
    %3904 = vmatpush1.msra.mxu0 0.0
    %3905 = vmatprep.subr.mxu0 0.0
    %3906 = vmatpush1.msra.mxu0 0.0
    %3907 = vmatprep.subr.mxu0 0.0
    %3908 = vmatpush1.msra.mxu0 0.0
    %3909 = vmatprep.subr.mxu0 0.0
    %3910 = vmatpush1.msra.mxu0 0.0
    %3911 = vmatprep.subr.mxu0 0.0
    %3912 = vmatpush1.msra.mxu0 0.0
    %3913 = vmatprep.subr.mxu0 0.0
    %3914 = vmatpush1.msra.mxu0 0.0
    %3915 = vmatprep.subr.mxu0 0.0
    %3916 = vmatpush1.msra.mxu0 0.0
    %3917 = vmatprep.subr.mxu0 0.0
    %3918 = vmatpush1.msra.mxu0 0.0
    %3919 = vmatprep.subr.mxu0 0.0
    %3920 = vmatpush1.msra.mxu0 0.0
    %3921 = vmatprep.subr.mxu0 0.0
    %3922 = vmatpush1.msra.mxu0 0.0
    %3923 = vmatprep.subr.mxu0 0.0
    %3924 = vmatpush1.msra.mxu0 0.0
    %3925 = vmatprep.subr.mxu0 0.0
    %3926 = vmatpush1.msra.mxu0 0.0
    %3927 = vmatprep.subr.mxu0 0.0
    %3928 = vmatpush1.msra.mxu0 0.0
    %3929 = vmatprep.subr.mxu0 0.0
    %3930 = vmatpush1.msra.mxu0 0.0
    %3931 = vmatprep.subr.mxu0 0.0
    %3932 = vmatpush1.msra.mxu0 0.0
    %3933 = vmatprep.subr.mxu0 0.0
    %3934 = vmatpush1.msra.mxu0 0.0
    %3935 = vmatprep.subr.mxu0 0.0
    %3936 = vmatpush1.msra.mxu0 0.0
    %3937 = vmatprep.subr.mxu0 0.0
    %3938 = vmatpush1.msra.mxu0 0.0
    %3939 = vmatprep.subr.mxu0 0.0
    %3940 = vmatpush1.msra.mxu0 0.0
    %3941 = vmatprep.subr.mxu0 0.0
    %3942 = vmatpush1.msra.mxu0 0.0
    %3943 = vmatprep.mubr.f32.mxu0 0.0
    %3944 = vmatmul.mubr.f32.gmra.mrb[0].mxu0 %v3806
    %v3945 = vpop.f32.mrb[0].mxu0
    %v3946 = vadd.f32 0.0, %v3945
    %v3947 = vpop.f32.mrb[0].mxu0
    %v3948 = vadd.f32 0.0, %v3947
    %3949 = vdwg.mxu0
    %v3950 = vadd.f32 %v3800, %v3875
    %v3951 = vadd.f32 %v3801, %v3877
    %v3952 = vadd.f32 %v3802, %v3946
    %v3953 = vadd.f32 %v3803, %v3948
    %3954 = vrot.lane.b32.xlu0 %v3144, 127
    %v3955 = vpop.permute.xlu0 %3954
    %3956 = vrot.lane.b32.xlu0 %v3145, 127
    %v3957 = vpop.permute.xlu0 %3956
    %3958 = vrot.lane.b32.xlu0 %v3146, 127
    %v3959 = vpop.permute.xlu0 %3958
    %3960 = vrot.lane.b32.xlu0 %v3147, 127
    %v3961 = vpop.permute.xlu0 %3960
    %v3962 = vsel %vm923, %v3959, %v3961
    %v3963 = vsel %vm923, %v3957, %v3959
    %v3964 = vsel %vm923, %v3955, %v3957
    %v3965 = vsel %vm923, %v3961, %v3955
    %v3966 = vmul.f32 %v3964, %v928
    %v3967 = vmul.f32 %v3963, %v929
    %v3968 = vmul.f32 %v3962, %v930
    %v3969 = vmul.f32 %v3965, %v931
    %v3970 = vld [vmem:[%s5 + $0x28] sm:$0xff]
    %v3972 = vsel %vm132, %v3970, 0
    %3974 = vmatprep.subr.mxu0 %v3967
    %3975 = vmatpush1.msra.mxu0 %v3966
    %3976 = vmatprep.subr.mxu0 0.0
    %3977 = vmatpush1.msra.mxu0 0.0
    %3978 = vmatprep.subr.mxu0 0.0
    %3979 = vmatpush1.msra.mxu0 0.0
    %3980 = vmatprep.subr.mxu0 0.0
    %3981 = vmatpush1.msra.mxu0 0.0
    %3982 = vmatprep.subr.mxu0 0.0
    %3983 = vmatpush1.msra.mxu0 0.0
    %3984 = vmatprep.subr.mxu0 0.0
    %3985 = vmatpush1.msra.mxu0 0.0
    %3986 = vmatprep.subr.mxu0 0.0
    %3987 = vmatpush1.msra.mxu0 0.0
    %3988 = vmatprep.subr.mxu0 0.0
    %3989 = vmatpush1.msra.mxu0 0.0
    %3990 = vmatprep.subr.mxu0 0.0
    %3991 = vmatpush1.msra.mxu0 0.0
    %3992 = vmatprep.subr.mxu0 0.0
    %3993 = vmatpush1.msra.mxu0 0.0
    %3994 = vmatprep.subr.mxu0 0.0
    %3995 = vmatpush1.msra.mxu0 0.0
    %3996 = vmatprep.subr.mxu0 0.0
    %3997 = vmatpush1.msra.mxu0 0.0
    %3998 = vmatprep.subr.mxu0 0.0
    %3999 = vmatpush1.msra.mxu0 0.0
    %4000 = vmatprep.subr.mxu0 0.0
    %4001 = vmatpush1.msra.mxu0 0.0
    %4002 = vmatprep.subr.mxu0 0.0
    %4003 = vmatpush1.msra.mxu0 0.0
    %4004 = vmatprep.subr.mxu0 0.0
    %4005 = vmatpush1.msra.mxu0 0.0
    %4006 = vmatprep.subr.mxu0 0.0
    %4007 = vmatpush1.msra.mxu0 0.0
    %4008 = vmatprep.subr.mxu0 0.0
    %4009 = vmatpush1.msra.mxu0 0.0
    %4010 = vmatprep.subr.mxu0 0.0
    %4011 = vmatpush1.msra.mxu0 0.0
    %4012 = vmatprep.subr.mxu0 0.0
    %4013 = vmatpush1.msra.mxu0 0.0
    %4014 = vmatprep.subr.mxu0 0.0
    %4015 = vmatpush1.msra.mxu0 0.0
    %4016 = vmatprep.subr.mxu0 0.0
    %4017 = vmatpush1.msra.mxu0 0.0
    %4018 = vmatprep.subr.mxu0 0.0
    %4019 = vmatpush1.msra.mxu0 0.0
    %4020 = vmatprep.subr.mxu0 0.0
    %4021 = vmatpush1.msra.mxu0 0.0
    %4022 = vmatprep.subr.mxu0 0.0
    %4023 = vmatpush1.msra.mxu0 0.0
    %4024 = vmatprep.subr.mxu0 0.0
    %4025 = vmatpush1.msra.mxu0 0.0
    %4026 = vmatprep.subr.mxu0 0.0
    %4027 = vmatpush1.msra.mxu0 0.0
    %4028 = vmatprep.subr.mxu0 0.0
    %4029 = vmatpush1.msra.mxu0 0.0
    %4030 = vmatprep.subr.mxu0 0.0
    %4031 = vmatpush1.msra.mxu0 0.0
    %4032 = vmatprep.subr.mxu0 0.0
    %4033 = vmatpush1.msra.mxu0 0.0
    %4034 = vmatprep.subr.mxu0 0.0
    %4035 = vmatpush1.msra.mxu0 0.0
    %4036 = vmatprep.subr.mxu0 0.0
    %4037 = vmatpush1.msra.mxu0 0.0
    %4038 = vmatprep.mubr.f32.mxu0 0.0
    %4039 = vmatmul.mubr.f32.gmra.mrb[0].mxu0 %v3972
    %v4040 = vpop.f32.mrb[0].mxu0
    %v4041 = vadd.f32 0.0, %v4040
    %v4042 = vpop.f32.mrb[0].mxu0
    %v4043 = vadd.f32 0.0, %v4042
    %4044 = vdwg.mxu0
    %4045 = vmatprep.subr.mxu0 %v3969
    %4046 = vmatpush1.msra.mxu0 %v3968
    %4047 = vmatprep.subr.mxu0 0.0
    %4048 = vmatpush1.msra.mxu0 0.0
    %4049 = vmatprep.subr.mxu0 0.0
    %4050 = vmatpush1.msra.mxu0 0.0
    %4051 = vmatprep.subr.mxu0 0.0
    %4052 = vmatpush1.msra.mxu0 0.0
    %4053 = vmatprep.subr.mxu0 0.0
    %4054 = vmatpush1.msra.mxu0 0.0
    %4055 = vmatprep.subr.mxu0 0.0
    %4056 = vmatpush1.msra.mxu0 0.0
    %4057 = vmatprep.subr.mxu0 0.0
    %4058 = vmatpush1.msra.mxu0 0.0
    %4059 = vmatprep.subr.mxu0 0.0
    %4060 = vmatpush1.msra.mxu0 0.0
    %4061 = vmatprep.subr.mxu0 0.0
    %4062 = vmatpush1.msra.mxu0 0.0
    %4063 = vmatprep.subr.mxu0 0.0
    %4064 = vmatpush1.msra.mxu0 0.0
    %4065 = vmatprep.subr.mxu0 0.0
    %4066 = vmatpush1.msra.mxu0 0.0
    %4067 = vmatprep.subr.mxu0 0.0
    %4068 = vmatpush1.msra.mxu0 0.0
    %4069 = vmatprep.subr.mxu0 0.0
    %4070 = vmatpush1.msra.mxu0 0.0
    %4071 = vmatprep.subr.mxu0 0.0
    %4072 = vmatpush1.msra.mxu0 0.0
    %4073 = vmatprep.subr.mxu0 0.0
    %4074 = vmatpush1.msra.mxu0 0.0
    %4075 = vmatprep.subr.mxu0 0.0
    %4076 = vmatpush1.msra.mxu0 0.0
    %4077 = vmatprep.subr.mxu0 0.0
    %4078 = vmatpush1.msra.mxu0 0.0
    %4079 = vmatprep.subr.mxu0 0.0
    %4080 = vmatpush1.msra.mxu0 0.0
    %4081 = vmatprep.subr.mxu0 0.0
    %4082 = vmatpush1.msra.mxu0 0.0
    %4083 = vmatprep.subr.mxu0 0.0
    %4084 = vmatpush1.msra.mxu0 0.0
    %4085 = vmatprep.subr.mxu0 0.0
    %4086 = vmatpush1.msra.mxu0 0.0
    %4087 = vmatprep.subr.mxu0 0.0
    %4088 = vmatpush1.msra.mxu0 0.0
    %4089 = vmatprep.subr.mxu0 0.0
    %4090 = vmatpush1.msra.mxu0 0.0
    %4091 = vmatprep.subr.mxu0 0.0
    %4092 = vmatpush1.msra.mxu0 0.0
    %4093 = vmatprep.subr.mxu0 0.0
    %4094 = vmatpush1.msra.mxu0 0.0
    %4095 = vmatprep.subr.mxu0 0.0
    %4096 = vmatpush1.msra.mxu0 0.0
    %4097 = vmatprep.subr.mxu0 0.0
    %4098 = vmatpush1.msra.mxu0 0.0
    %4099 = vmatprep.subr.mxu0 0.0
    %4100 = vmatpush1.msra.mxu0 0.0
    %4101 = vmatprep.subr.mxu0 0.0
    %4102 = vmatpush1.msra.mxu0 0.0
    %4103 = vmatprep.subr.mxu0 0.0
    %4104 = vmatpush1.msra.mxu0 0.0
    %4105 = vmatprep.subr.mxu0 0.0
    %4106 = vmatpush1.msra.mxu0 0.0
    %4107 = vmatprep.subr.mxu0 0.0
    %4108 = vmatpush1.msra.mxu0 0.0
    %4109 = vmatprep.mubr.f32.mxu0 0.0
    %4110 = vmatmul.mubr.f32.gmra.mrb[0].mxu0 %v3972
    %v4111 = vpop.f32.mrb[0].mxu0
    %v4112 = vadd.f32 0.0, %v4111
    %v4113 = vpop.f32.mrb[0].mxu0
    %v4114 = vadd.f32 0.0, %v4113
    %4115 = vdwg.mxu0
    %v4116 = vadd.f32 %v3950, %v4041
    %v4117 = vadd.f32 %v3951, %v4043
    %v4118 = vadd.f32 %v3952, %v4112
    %v4119 = vadd.f32 %v3953, %v4114
    %4120 = vrot.lane.b32.xlu0 %v3144, 113
    %v4121 = vpop.permute.xlu0 %4120
    %4122 = vrot.lane.b32.xlu0 %v3145, 113
    %v4123 = vpop.permute.xlu0 %4122
    %4124 = vrot.lane.b32.xlu0 %v3146, 113
    %v4125 = vpop.permute.xlu0 %4124
    %4126 = vrot.lane.b32.xlu0 %v3147, 113
    %v4127 = vpop.permute.xlu0 %4126
    %v4128 = vsel %vm1094, %v4125, %v4127
    %v4129 = vsel %vm1094, %v4123, %v4125
    %v4130 = vsel %vm1094, %v4121, %v4123
    %v4131 = vsel %vm1094, %v4127, %v4121
    %v4132 = vmul.f32 %v4130, %v1099
    %v4133 = vmul.f32 %v4129, %v1100
    %v4134 = vmul.f32 %v4128, %v1101
    %v4135 = vmul.f32 %v4131, %v1102
    %v4136 = vld [vmem:[%s5 + $0x30] sm:$0xff]
    %v4138 = vsel %vm132, %v4136, 0
    %4140 = vmatprep.subr.mxu0 %v4133
    %4141 = vmatpush1.msra.mxu0 %v4132
    %4142 = vmatprep.subr.mxu0 0.0
    %4143 = vmatpush1.msra.mxu0 0.0
    %4144 = vmatprep.subr.mxu0 0.0
    %4145 = vmatpush1.msra.mxu0 0.0
    %4146 = vmatprep.subr.mxu0 0.0
    %4147 = vmatpush1.msra.mxu0 0.0
    %4148 = vmatprep.subr.mxu0 0.0
    %4149 = vmatpush1.msra.mxu0 0.0
    %4150 = vmatprep.subr.mxu0 0.0
    %4151 = vmatpush1.msra.mxu0 0.0
    %4152 = vmatprep.subr.mxu0 0.0
    %4153 = vmatpush1.msra.mxu0 0.0
    %4154 = vmatprep.subr.mxu0 0.0
    %4155 = vmatpush1.msra.mxu0 0.0
    %4156 = vmatprep.subr.mxu0 0.0
    %4157 = vmatpush1.msra.mxu0 0.0
    %4158 = vmatprep.subr.mxu0 0.0
    %4159 = vmatpush1.msra.mxu0 0.0
    %4160 = vmatprep.subr.mxu0 0.0
    %4161 = vmatpush1.msra.mxu0 0.0
    %4162 = vmatprep.subr.mxu0 0.0
    %4163 = vmatpush1.msra.mxu0 0.0
    %4164 = vmatprep.subr.mxu0 0.0
    %4165 = vmatpush1.msra.mxu0 0.0
    %4166 = vmatprep.subr.mxu0 0.0
    %4167 = vmatpush1.msra.mxu0 0.0
    %4168 = vmatprep.subr.mxu0 0.0
    %4169 = vmatpush1.msra.mxu0 0.0
    %4170 = vmatprep.subr.mxu0 0.0
    %4171 = vmatpush1.msra.mxu0 0.0
    %4172 = vmatprep.subr.mxu0 0.0
    %4173 = vmatpush1.msra.mxu0 0.0
    %4174 = vmatprep.subr.mxu0 0.0
    %4175 = vmatpush1.msra.mxu0 0.0
    %4176 = vmatprep.subr.mxu0 0.0
    %4177 = vmatpush1.msra.mxu0 0.0
    %4178 = vmatprep.subr.mxu0 0.0
    %4179 = vmatpush1.msra.mxu0 0.0
    %4180 = vmatprep.subr.mxu0 0.0
    %4181 = vmatpush1.msra.mxu0 0.0
    %4182 = vmatprep.subr.mxu0 0.0
    %4183 = vmatpush1.msra.mxu0 0.0
    %4184 = vmatprep.subr.mxu0 0.0
    %4185 = vmatpush1.msra.mxu0 0.0
    %4186 = vmatprep.subr.mxu0 0.0
    %4187 = vmatpush1.msra.mxu0 0.0
    %4188 = vmatprep.subr.mxu0 0.0
    %4189 = vmatpush1.msra.mxu0 0.0
    %4190 = vmatprep.subr.mxu0 0.0
    %4191 = vmatpush1.msra.mxu0 0.0
    %4192 = vmatprep.subr.mxu0 0.0
    %4193 = vmatpush1.msra.mxu0 0.0
    %4194 = vmatprep.subr.mxu0 0.0
    %4195 = vmatpush1.msra.mxu0 0.0
    %4196 = vmatprep.subr.mxu0 0.0
    %4197 = vmatpush1.msra.mxu0 0.0
    %4198 = vmatprep.subr.mxu0 0.0
    %4199 = vmatpush1.msra.mxu0 0.0
    %4200 = vmatprep.subr.mxu0 0.0
    %4201 = vmatpush1.msra.mxu0 0.0
    %4202 = vmatprep.subr.mxu0 0.0
    %4203 = vmatpush1.msra.mxu0 0.0
    %4204 = vmatprep.mubr.f32.mxu0 0.0
    %4205 = vmatmul.mubr.f32.gmra.mrb[0].mxu0 %v4138
    %v4206 = vpop.f32.mrb[0].mxu0
    %v4207 = vadd.f32 0.0, %v4206
    %v4208 = vpop.f32.mrb[0].mxu0
    %v4209 = vadd.f32 0.0, %v4208
    %4210 = vdwg.mxu0
    %4211 = vmatprep.subr.mxu0 %v4135
    %4212 = vmatpush1.msra.mxu0 %v4134
    %4213 = vmatprep.subr.mxu0 0.0
    %4214 = vmatpush1.msra.mxu0 0.0
    %4215 = vmatprep.subr.mxu0 0.0
    %4216 = vmatpush1.msra.mxu0 0.0
    %4217 = vmatprep.subr.mxu0 0.0
    %4218 = vmatpush1.msra.mxu0 0.0
    %4219 = vmatprep.subr.mxu0 0.0
    %4220 = vmatpush1.msra.mxu0 0.0
    %4221 = vmatprep.subr.mxu0 0.0
    %4222 = vmatpush1.msra.mxu0 0.0
    %4223 = vmatprep.subr.mxu0 0.0
    %4224 = vmatpush1.msra.mxu0 0.0
    %4225 = vmatprep.subr.mxu0 0.0
    %4226 = vmatpush1.msra.mxu0 0.0
    %4227 = vmatprep.subr.mxu0 0.0
    %4228 = vmatpush1.msra.mxu0 0.0
    %4229 = vmatprep.subr.mxu0 0.0
    %4230 = vmatpush1.msra.mxu0 0.0
    %4231 = vmatprep.subr.mxu0 0.0
    %4232 = vmatpush1.msra.mxu0 0.0
    %4233 = vmatprep.subr.mxu0 0.0
    %4234 = vmatpush1.msra.mxu0 0.0
    %4235 = vmatprep.subr.mxu0 0.0
    %4236 = vmatpush1.msra.mxu0 0.0
    %4237 = vmatprep.subr.mxu0 0.0
    %4238 = vmatpush1.msra.mxu0 0.0
    %4239 = vmatprep.subr.mxu0 0.0
    %4240 = vmatpush1.msra.mxu0 0.0
    %4241 = vmatprep.subr.mxu0 0.0
    %4242 = vmatpush1.msra.mxu0 0.0
    %4243 = vmatprep.subr.mxu0 0.0
    %4244 = vmatpush1.msra.mxu0 0.0
    %4245 = vmatprep.subr.mxu0 0.0
    %4246 = vmatpush1.msra.mxu0 0.0
    %4247 = vmatprep.subr.mxu0 0.0
    %4248 = vmatpush1.msra.mxu0 0.0
    %4249 = vmatprep.subr.mxu0 0.0
    %4250 = vmatpush1.msra.mxu0 0.0
    %4251 = vmatprep.subr.mxu0 0.0
    %4252 = vmatpush1.msra.mxu0 0.0
    %4253 = vmatprep.subr.mxu0 0.0
    %4254 = vmatpush1.msra.mxu0 0.0
    %4255 = vmatprep.subr.mxu0 0.0
    %4256 = vmatpush1.msra.mxu0 0.0
    %4257 = vmatprep.subr.mxu0 0.0
    %4258 = vmatpush1.msra.mxu0 0.0
    %4259 = vmatprep.subr.mxu0 0.0
    %4260 = vmatpush1.msra.mxu0 0.0
    %4261 = vmatprep.subr.mxu0 0.0
    %4262 = vmatpush1.msra.mxu0 0.0
    %4263 = vmatprep.subr.mxu0 0.0
    %4264 = vmatpush1.msra.mxu0 0.0
    %4265 = vmatprep.subr.mxu0 0.0
    %4266 = vmatpush1.msra.mxu0 0.0
    %4267 = vmatprep.subr.mxu0 0.0
    %4268 = vmatpush1.msra.mxu0 0.0
    %4269 = vmatprep.subr.mxu0 0.0
    %4270 = vmatpush1.msra.mxu0 0.0
    %4271 = vmatprep.subr.mxu0 0.0
    %4272 = vmatpush1.msra.mxu0 0.0
    %4273 = vmatprep.subr.mxu0 0.0
    %4274 = vmatpush1.msra.mxu0 0.0
    %4275 = vmatprep.mubr.f32.mxu0 0.0
    %4276 = vmatmul.mubr.f32.gmra.mrb[0].mxu0 %v4138
    %v4277 = vpop.f32.mrb[0].mxu0
    %v4278 = vadd.f32 0.0, %v4277
    %v4279 = vpop.f32.mrb[0].mxu0
    %v4280 = vadd.f32 0.0, %v4279
    %4281 = vdwg.mxu0
    %v4282 = vadd.f32 %v4116, %v4207
    %v4283 = vadd.f32 %v4117, %v4209
    %v4284 = vadd.f32 %v4118, %v4278
    %v4285 = vadd.f32 %v4119, %v4280
    %4286 = vrot.lane.b32.xlu0 %v3144, 112
    %v4287 = vpop.permute.xlu0 %4286
    %4288 = vrot.lane.b32.xlu0 %v3145, 112
    %v4289 = vpop.permute.xlu0 %4288
    %4290 = vrot.lane.b32.xlu0 %v3146, 112
    %v4291 = vpop.permute.xlu0 %4290
    %4292 = vrot.lane.b32.xlu0 %v3147, 112
    %v4293 = vpop.permute.xlu0 %4292
    %v4294 = vsel %vm1265, %v4291, %v4293
    %v4295 = vsel %vm1265, %v4289, %v4291
    %v4296 = vsel %vm1265, %v4287, %v4289
    %v4297 = vsel %vm1265, %v4293, %v4287
    %v4298 = vmul.f32 %v4296, %v1270
    %v4299 = vmul.f32 %v4295, %v1271
    %v4300 = vmul.f32 %v4294, %v1272
    %v4301 = vmul.f32 %v4297, %v1273
    %v4302 = vld [vmem:[%s5 + $0x38] sm:$0xff]
    %v4304 = vsel %vm132, %v4302, 0
    %4306 = vmatprep.subr.mxu0 %v4299
    %4307 = vmatpush1.msra.mxu0 %v4298
    %4308 = vmatprep.subr.mxu0 0.0
    %4309 = vmatpush1.msra.mxu0 0.0
    %4310 = vmatprep.subr.mxu0 0.0
    %4311 = vmatpush1.msra.mxu0 0.0
    %4312 = vmatprep.subr.mxu0 0.0
    %4313 = vmatpush1.msra.mxu0 0.0
    %4314 = vmatprep.subr.mxu0 0.0
    %4315 = vmatpush1.msra.mxu0 0.0
    %4316 = vmatprep.subr.mxu0 0.0
    %4317 = vmatpush1.msra.mxu0 0.0
    %4318 = vmatprep.subr.mxu0 0.0
    %4319 = vmatpush1.msra.mxu0 0.0
    %4320 = vmatprep.subr.mxu0 0.0
    %4321 = vmatpush1.msra.mxu0 0.0
    %4322 = vmatprep.subr.mxu0 0.0
    %4323 = vmatpush1.msra.mxu0 0.0
    %4324 = vmatprep.subr.mxu0 0.0
    %4325 = vmatpush1.msra.mxu0 0.0
    %4326 = vmatprep.subr.mxu0 0.0
    %4327 = vmatpush1.msra.mxu0 0.0
    %4328 = vmatprep.subr.mxu0 0.0
    %4329 = vmatpush1.msra.mxu0 0.0
    %4330 = vmatprep.subr.mxu0 0.0
    %4331 = vmatpush1.msra.mxu0 0.0
    %4332 = vmatprep.subr.mxu0 0.0
    %4333 = vmatpush1.msra.mxu0 0.0
    %4334 = vmatprep.subr.mxu0 0.0
    %4335 = vmatpush1.msra.mxu0 0.0
    %4336 = vmatprep.subr.mxu0 0.0
    %4337 = vmatpush1.msra.mxu0 0.0
    %4338 = vmatprep.subr.mxu0 0.0
    %4339 = vmatpush1.msra.mxu0 0.0
    %4340 = vmatprep.subr.mxu0 0.0
    %4341 = vmatpush1.msra.mxu0 0.0
    %4342 = vmatprep.subr.mxu0 0.0
    %4343 = vmatpush1.msra.mxu0 0.0
    %4344 = vmatprep.subr.mxu0 0.0
    %4345 = vmatpush1.msra.mxu0 0.0
    %4346 = vmatprep.subr.mxu0 0.0
    %4347 = vmatpush1.msra.mxu0 0.0
    %4348 = vmatprep.subr.mxu0 0.0
    %4349 = vmatpush1.msra.mxu0 0.0
    %4350 = vmatprep.subr.mxu0 0.0
    %4351 = vmatpush1.msra.mxu0 0.0
    %4352 = vmatprep.subr.mxu0 0.0
    %4353 = vmatpush1.msra.mxu0 0.0
    %4354 = vmatprep.subr.mxu0 0.0
    %4355 = vmatpush1.msra.mxu0 0.0
    %4356 = vmatprep.subr.mxu0 0.0
    %4357 = vmatpush1.msra.mxu0 0.0
    %4358 = vmatprep.subr.mxu0 0.0
    %4359 = vmatpush1.msra.mxu0 0.0
    %4360 = vmatprep.subr.mxu0 0.0
    %4361 = vmatpush1.msra.mxu0 0.0
    %4362 = vmatprep.subr.mxu0 0.0
    %4363 = vmatpush1.msra.mxu0 0.0
    %4364 = vmatprep.subr.mxu0 0.0
    %4365 = vmatpush1.msra.mxu0 0.0
    %4366 = vmatprep.subr.mxu0 0.0
    %4367 = vmatpush1.msra.mxu0 0.0
    %4368 = vmatprep.subr.mxu0 0.0
    %4369 = vmatpush1.msra.mxu0 0.0
    %4370 = vmatprep.mubr.f32.mxu0 0.0
    %4371 = vmatmul.mubr.f32.gmra.mrb[0].mxu0 %v4304
    %v4372 = vpop.f32.mrb[0].mxu0
    %v4373 = vadd.f32 0.0, %v4372
    %v4374 = vpop.f32.mrb[0].mxu0
    %v4375 = vadd.f32 0.0, %v4374
    %4376 = vdwg.mxu0
    %4377 = vmatprep.subr.mxu0 %v4301
    %4378 = vmatpush1.msra.mxu0 %v4300
    %4379 = vmatprep.subr.mxu0 0.0
    %4380 = vmatpush1.msra.mxu0 0.0
    %4381 = vmatprep.subr.mxu0 0.0
    %4382 = vmatpush1.msra.mxu0 0.0
    %4383 = vmatprep.subr.mxu0 0.0
    %4384 = vmatpush1.msra.mxu0 0.0
    %4385 = vmatprep.subr.mxu0 0.0
    %4386 = vmatpush1.msra.mxu0 0.0
    %4387 = vmatprep.subr.mxu0 0.0
    %4388 = vmatpush1.msra.mxu0 0.0
    %4389 = vmatprep.subr.mxu0 0.0
    %4390 = vmatpush1.msra.mxu0 0.0
    %4391 = vmatprep.subr.mxu0 0.0
    %4392 = vmatpush1.msra.mxu0 0.0
    %4393 = vmatprep.subr.mxu0 0.0
    %4394 = vmatpush1.msra.mxu0 0.0
    %4395 = vmatprep.subr.mxu0 0.0
    %4396 = vmatpush1.msra.mxu0 0.0
    %4397 = vmatprep.subr.mxu0 0.0
    %4398 = vmatpush1.msra.mxu0 0.0
    %4399 = vmatprep.subr.mxu0 0.0
    %4400 = vmatpush1.msra.mxu0 0.0
    %4401 = vmatprep.subr.mxu0 0.0
    %4402 = vmatpush1.msra.mxu0 0.0
    %4403 = vmatprep.subr.mxu0 0.0
    %4404 = vmatpush1.msra.mxu0 0.0
    %4405 = vmatprep.subr.mxu0 0.0
    %4406 = vmatpush1.msra.mxu0 0.0
    %4407 = vmatprep.subr.mxu0 0.0
    %4408 = vmatpush1.msra.mxu0 0.0
    %4409 = vmatprep.subr.mxu0 0.0
    %4410 = vmatpush1.msra.mxu0 0.0
    %4411 = vmatprep.subr.mxu0 0.0
    %4412 = vmatpush1.msra.mxu0 0.0
    %4413 = vmatprep.subr.mxu0 0.0
    %4414 = vmatpush1.msra.mxu0 0.0
    %4415 = vmatprep.subr.mxu0 0.0
    %4416 = vmatpush1.msra.mxu0 0.0
    %4417 = vmatprep.subr.mxu0 0.0
    %4418 = vmatpush1.msra.mxu0 0.0
    %4419 = vmatprep.subr.mxu0 0.0
    %4420 = vmatpush1.msra.mxu0 0.0
    %4421 = vmatprep.subr.mxu0 0.0
    %4422 = vmatpush1.msra.mxu0 0.0
    %4423 = vmatprep.subr.mxu0 0.0
    %4424 = vmatpush1.msra.mxu0 0.0
    %4425 = vmatprep.subr.mxu0 0.0
    %4426 = vmatpush1.msra.mxu0 0.0
    %4427 = vmatprep.subr.mxu0 0.0
    %4428 = vmatpush1.msra.mxu0 0.0
    %4429 = vmatprep.subr.mxu0 0.0
    %4430 = vmatpush1.msra.mxu0 0.0
    %4431 = vmatprep.subr.mxu0 0.0
    %4432 = vmatpush1.msra.mxu0 0.0
    %4433 = vmatprep.subr.mxu0 0.0
    %4434 = vmatpush1.msra.mxu0 0.0
    %4435 = vmatprep.subr.mxu0 0.0
    %4436 = vmatpush1.msra.mxu0 0.0
    %4437 = vmatprep.subr.mxu0 0.0
    %4438 = vmatpush1.msra.mxu0 0.0
    %4439 = vmatprep.subr.mxu0 0.0
    %4440 = vmatpush1.msra.mxu0 0.0
    %4441 = vmatprep.mubr.f32.mxu0 0.0
    %4442 = vmatmul.mubr.f32.gmra.mrb[0].mxu0 %v4304
    %v4443 = vpop.f32.mrb[0].mxu0
    %v4444 = vadd.f32 0.0, %v4443
    %v4445 = vpop.f32.mrb[0].mxu0
    %v4446 = vadd.f32 0.0, %v4445
    %4447 = vdwg.mxu0
    %v4448 = vadd.f32 %v4282, %v4373
    %v4449 = vadd.f32 %v4283, %v4375
    %v4450 = vadd.f32 %v4284, %v4444
    %v4451 = vadd.f32 %v4285, %v4446
    %4452 = vrot.lane.b32.xlu0 %v3144, 111
    %v4453 = vpop.permute.xlu0 %4452
    %4454 = vrot.lane.b32.xlu0 %v3145, 111
    %v4455 = vpop.permute.xlu0 %4454
    %4456 = vrot.lane.b32.xlu0 %v3146, 111
    %v4457 = vpop.permute.xlu0 %4456
    %4458 = vrot.lane.b32.xlu0 %v3147, 111
    %v4459 = vpop.permute.xlu0 %4458
    %v4460 = vsel %vm1436, %v4457, %v4459
    %v4461 = vsel %vm1436, %v4455, %v4457
    %v4462 = vsel %vm1436, %v4453, %v4455
    %v4463 = vsel %vm1436, %v4459, %v4453
    %v4464 = vmul.f32 %v4462, %v1441
    %v4465 = vmul.f32 %v4461, %v1442
    %v4466 = vmul.f32 %v4460, %v1443
    %v4467 = vmul.f32 %v4463, %v1444
    %v4468 = vld [vmem:[%s5 + $0x40] sm:$0xff]
    %v4470 = vsel %vm132, %v4468, 0
    %4472 = vmatprep.subr.mxu0 %v4465
    %4473 = vmatpush1.msra.mxu0 %v4464
    %4474 = vmatprep.subr.mxu0 0.0
    %4475 = vmatpush1.msra.mxu0 0.0
    %4476 = vmatprep.subr.mxu0 0.0
    %4477 = vmatpush1.msra.mxu0 0.0
    %4478 = vmatprep.subr.mxu0 0.0
    %4479 = vmatpush1.msra.mxu0 0.0
    %4480 = vmatprep.subr.mxu0 0.0
    %4481 = vmatpush1.msra.mxu0 0.0
    %4482 = vmatprep.subr.mxu0 0.0
    %4483 = vmatpush1.msra.mxu0 0.0
    %4484 = vmatprep.subr.mxu0 0.0
    %4485 = vmatpush1.msra.mxu0 0.0
    %4486 = vmatprep.subr.mxu0 0.0
    %4487 = vmatpush1.msra.mxu0 0.0
    %4488 = vmatprep.subr.mxu0 0.0
    %4489 = vmatpush1.msra.mxu0 0.0
    %4490 = vmatprep.subr.mxu0 0.0
    %4491 = vmatpush1.msra.mxu0 0.0
    %4492 = vmatprep.subr.mxu0 0.0
    %4493 = vmatpush1.msra.mxu0 0.0
    %4494 = vmatprep.subr.mxu0 0.0
    %4495 = vmatpush1.msra.mxu0 0.0
    %4496 = vmatprep.subr.mxu0 0.0
    %4497 = vmatpush1.msra.mxu0 0.0
    %4498 = vmatprep.subr.mxu0 0.0
    %4499 = vmatpush1.msra.mxu0 0.0
    %4500 = vmatprep.subr.mxu0 0.0
    %4501 = vmatpush1.msra.mxu0 0.0
    %4502 = vmatprep.subr.mxu0 0.0
    %4503 = vmatpush1.msra.mxu0 0.0
    %4504 = vmatprep.subr.mxu0 0.0
    %4505 = vmatpush1.msra.mxu0 0.0
    %4506 = vmatprep.subr.mxu0 0.0
    %4507 = vmatpush1.msra.mxu0 0.0
    %4508 = vmatprep.subr.mxu0 0.0
    %4509 = vmatpush1.msra.mxu0 0.0
    %4510 = vmatprep.subr.mxu0 0.0
    %4511 = vmatpush1.msra.mxu0 0.0
    %4512 = vmatprep.subr.mxu0 0.0
    %4513 = vmatpush1.msra.mxu0 0.0
    %4514 = vmatprep.subr.mxu0 0.0
    %4515 = vmatpush1.msra.mxu0 0.0
    %4516 = vmatprep.subr.mxu0 0.0
    %4517 = vmatpush1.msra.mxu0 0.0
    %4518 = vmatprep.subr.mxu0 0.0
    %4519 = vmatpush1.msra.mxu0 0.0
    %4520 = vmatprep.subr.mxu0 0.0
    %4521 = vmatpush1.msra.mxu0 0.0
    %4522 = vmatprep.subr.mxu0 0.0
    %4523 = vmatpush1.msra.mxu0 0.0
    %4524 = vmatprep.subr.mxu0 0.0
    %4525 = vmatpush1.msra.mxu0 0.0
    %4526 = vmatprep.subr.mxu0 0.0
    %4527 = vmatpush1.msra.mxu0 0.0
    %4528 = vmatprep.subr.mxu0 0.0
    %4529 = vmatpush1.msra.mxu0 0.0
    %4530 = vmatprep.subr.mxu0 0.0
    %4531 = vmatpush1.msra.mxu0 0.0
    %4532 = vmatprep.subr.mxu0 0.0
    %4533 = vmatpush1.msra.mxu0 0.0
    %4534 = vmatprep.subr.mxu0 0.0
    %4535 = vmatpush1.msra.mxu0 0.0
    %4536 = vmatprep.mubr.f32.mxu0 0.0
    %4537 = vmatmul.mubr.f32.gmra.mrb[0].mxu0 %v4470
    %v4538 = vpop.f32.mrb[0].mxu0
    %v4539 = vadd.f32 0.0, %v4538
    %v4540 = vpop.f32.mrb[0].mxu0
    %v4541 = vadd.f32 0.0, %v4540
    %4542 = vdwg.mxu0
    %4543 = vmatprep.subr.mxu0 %v4467
    %4544 = vmatpush1.msra.mxu0 %v4466
    %4545 = vmatprep.subr.mxu0 0.0
    %4546 = vmatpush1.msra.mxu0 0.0
    %4547 = vmatprep.subr.mxu0 0.0
    %4548 = vmatpush1.msra.mxu0 0.0
    %4549 = vmatprep.subr.mxu0 0.0
    %4550 = vmatpush1.msra.mxu0 0.0
    %4551 = vmatprep.subr.mxu0 0.0
    %4552 = vmatpush1.msra.mxu0 0.0
    %4553 = vmatprep.subr.mxu0 0.0
    %4554 = vmatpush1.msra.mxu0 0.0
    %4555 = vmatprep.subr.mxu0 0.0
    %4556 = vmatpush1.msra.mxu0 0.0
    %4557 = vmatprep.subr.mxu0 0.0
    %4558 = vmatpush1.msra.mxu0 0.0
    %4559 = vmatprep.subr.mxu0 0.0
    %4560 = vmatpush1.msra.mxu0 0.0
    %4561 = vmatprep.subr.mxu0 0.0
    %4562 = vmatpush1.msra.mxu0 0.0
    %4563 = vmatprep.subr.mxu0 0.0
    %4564 = vmatpush1.msra.mxu0 0.0
    %4565 = vmatprep.subr.mxu0 0.0
    %4566 = vmatpush1.msra.mxu0 0.0
    %4567 = vmatprep.subr.mxu0 0.0
    %4568 = vmatpush1.msra.mxu0 0.0
    %4569 = vmatprep.subr.mxu0 0.0
    %4570 = vmatpush1.msra.mxu0 0.0
    %4571 = vmatprep.subr.mxu0 0.0
    %4572 = vmatpush1.msra.mxu0 0.0
    %4573 = vmatprep.subr.mxu0 0.0
    %4574 = vmatpush1.msra.mxu0 0.0
    %4575 = vmatprep.subr.mxu0 0.0
    %4576 = vmatpush1.msra.mxu0 0.0
    %4577 = vmatprep.subr.mxu0 0.0
    %4578 = vmatpush1.msra.mxu0 0.0
    %4579 = vmatprep.subr.mxu0 0.0
    %4580 = vmatpush1.msra.mxu0 0.0
    %4581 = vmatprep.subr.mxu0 0.0
    %4582 = vmatpush1.msra.mxu0 0.0
    %4583 = vmatprep.subr.mxu0 0.0
    %4584 = vmatpush1.msra.mxu0 0.0
    %4585 = vmatprep.subr.mxu0 0.0
    %4586 = vmatpush1.msra.mxu0 0.0
    %4587 = vmatprep.subr.mxu0 0.0
    %4588 = vmatpush1.msra.mxu0 0.0
    %4589 = vmatprep.subr.mxu0 0.0
    %4590 = vmatpush1.msra.mxu0 0.0
    %4591 = vmatprep.subr.mxu0 0.0
    %4592 = vmatpush1.msra.mxu0 0.0
    %4593 = vmatprep.subr.mxu0 0.0
    %4594 = vmatpush1.msra.mxu0 0.0
    %4595 = vmatprep.subr.mxu0 0.0
    %4596 = vmatpush1.msra.mxu0 0.0
    %4597 = vmatprep.subr.mxu0 0.0
    %4598 = vmatpush1.msra.mxu0 0.0
    %4599 = vmatprep.subr.mxu0 0.0
    %4600 = vmatpush1.msra.mxu0 0.0
    %4601 = vmatprep.subr.mxu0 0.0
    %4602 = vmatpush1.msra.mxu0 0.0
    %4603 = vmatprep.subr.mxu0 0.0
    %4604 = vmatpush1.msra.mxu0 0.0
    %4605 = vmatprep.subr.mxu0 0.0
    %4606 = vmatpush1.msra.mxu0 0.0
    %4607 = vmatprep.mubr.f32.mxu0 0.0
    %4608 = vmatmul.mubr.f32.gmra.mrb[0].mxu0 %v4470
    %v4609 = vpop.f32.mrb[0].mxu0
    %v4610 = vadd.f32 0.0, %v4609
    %v4611 = vpop.f32.mrb[0].mxu0
    %v4612 = vadd.f32 0.0, %v4611
    %4613 = vdwg.mxu0
    %v4614 = vadd.f32 %v4448, %v4539
    %v4615 = vadd.f32 %v4449, %v4541
    %v4616 = vadd.f32 %v4450, %v4610
    %v4617 = vadd.f32 %v4451, %v4612
    %4619 = vset.pattern.permute.xlu0 0
    %4620 = vperm.xlu0 %4619, %v61
    %v4621 = vpop.permute.xlu0 %4620
    %v4623 = vadd.f32 %v4614, %v4621
    %v4624 = vadd.f32 %v4615, %v4621
    %v4625 = vadd.f32 %v4616, %v4621
    %v4626 = vadd.f32 %v4617, %v4621
    %v4627 = vstv %s57
    %v4628 = vmul.f32 %v3109, %v4627
    %v4629 = vmul.f32 %v3110, %v4627
    %v4630 = vmul.f32 %v3111, %v4627
    %v4631 = vmul.f32 %v3112, %v4627
    %v4632 = vadd.f32 %v4623, %v4628
    %v4633 = vadd.f32 %v4624, %v4629
    %v4634 = vadd.f32 %v4625, %v4630
    %v4635 = vadd.f32 %v4626, %v4631
    %v4636 = vadd.f32 %v4632, %v1604
    %v4637 = vadd.f32 %v4633, %v1605
    %v4638 = vadd.f32 %v4634, %v1606
    %v4639 = vadd.f32 %v4635, %v1607
    %v4640 = vstv %s58
    %v4641 = vmul.f32 %v4636, %v4640
    %v4642 = vmul.f32 %v4637, %v4640
    %v4643 = vmul.f32 %v4638, %v4640
    %v4644 = vmul.f32 %v4639, %v4640
    %v4645 = vadd.f32 %v4641, %v65
    %v4646 = vadd.f32 %v4642, %v66
    %v4647 = vadd.f32 %v4643, %v67
    %v4648 = vadd.f32 %v4644, %v68
    %4649 = vst [vmem:[%s12] sm:$0xff] %v4645
    %4650 = vst [vmem:[%s12 + $0x8] sm:$0xff] %v4646
    %4651 = vst [vmem:[%s12 + $0x10] sm:$0xff] %v4647
    %4652 = vst [vmem:[%s12 + $0x18] sm:$0xff] %v4648
    // Predicated region
    $region54: #{resblock_forward.1} parent=1 // pred_check
      _
    $region55: #{resblock_forward.1} parent=1 // pred_check_branch
      %4654 = sbr.rel (0) target = $region57
    $region56: #{resblock_forward.1} parent=1 // pred_region
      _
    $region57: #{resblock_forward.1} parent=1 // pred_fallthru
      _
    // Predicated region
    $region58: #{resblock_forward.1} parent=1 // pred_check
      _
    $region59: #{resblock_forward.1} parent=1 // pred_check_branch
      %4656 = sbr.rel (0) target = $region61
    $region60: #{resblock_forward.1} parent=1 // pred_region
      _
    $region61: #{resblock_forward.1} parent=1 // pred_fallthru
      _
    %4657 = vsyncpa [#allocation3], 1

</llo_original>
